<compile_context>
chip_gen: v6e
topology: v6e:2x2x1
jax: 0.10.0
libtpu: 0.0.40
codegen_flags: <defaults>
</compile_context>

<pallas_src>
import functools
import numpy as np

import jax
import jax.numpy as jnp
from jax import lax
from jax.experimental import pallas as pl
from jax.experimental.pallas import tpu as pltpu


# ------------------------------ in-kernel helpers ------------------------------

_OFFSETS_3X3 = tuple((dy, dx) for dy in (-1, 0, 1) for dx in (-1, 0, 1))


def _row_shift(x, s):
    """out[r] = x[r + s] on the row (sublane) axis; rows shifted in from outside are zero."""
    if s == 0:
        return x
    n, c = x.shape
    pad = jnp.zeros((abs(s), c), x.dtype)
    if s > 0:
        return jnp.concatenate([x[s:, :], pad], axis=0)
    return jnp.concatenate([pad, x[: n + s, :]], axis=0)


# ------------------------------ Pallas kernels ------------------------------

def _stem_kernel(W, x_ref, w_ref, b_ref, mask_ref, o_ref):
    """conv0 (im2col matmul, BN0 folded) + ReLU + full-res 3x3 max (MaxPool 3/s2/p1).

    x_ref   : [N, K]      bf16 im2col patches of the 7x7/stride-2 conv  (N = B*H*W)
    w_ref   : [K, C0]     bf16 conv0 weights with BN0 scale folded in
    b_ref   : [1, C0]     f32  BN0 shift (bias)
    mask_ref: [9, N, C0]  f32  0/1 validity of each 3x3 tap per output row
    o_ref   : [N, C0]     f32  3x3 max centred at every conv-output pixel; the wrapper
                               keeps the stride-2 rows to finish the pool.
    """
    y = jnp.dot(x_ref[...], w_ref[...], preferred_element_type=jnp.float32) + b_ref[...]
    y = jnp.maximum(y, 0.0)
    m = y  # centre tap, always valid
    for k, (dy, dx) in enumerate(_OFFSETS_3X3):
        if dy == 0 and dx == 0:
            continue
        # post-ReLU values are >= 0 and the centre tap is always present, so taps
        # masked to 0 can never win the max.
        m = jnp.maximum(m, _row_shift(y, dy * W + dx) * mask_ref[k])
    o_ref[...] = m


def _dense_block_kernel(W, c0, growth, num_layers,
                        x_ref, s1_ref, sh1_ref, w1_ref, b1_ref, w2_ref, mask_ref, o_ref):
    """A whole dense block in ONE kernel (all layers, in-place channel-slice writes).

    x_ref   : [N, c_final]    f32  input features zero-padded on channels c0..c_final
    s1_ref  : [L, 1, c_final] f32  folded BN1 scale (zero on not-yet-valid channels)
    sh1_ref : [L, 1, c_final] f32  folded BN1 shift
    w1_ref  : [L, c_final, cmid]   bf16 1x1 conv weights (BN2 scale folded, padded rows 0)
    b1_ref  : [L, 1, cmid]    f32  folded BN2 shift
    w2_ref  : [L*9, cmid, growth]  bf16 3x3 conv tap weights
    mask_ref: [9, N, cmid]    f32  0/1 validity of each 3x3 tap per output row
    o_ref   : [N, c_final]    f32  concatenated block output (DenseNet feature reuse)
    """
    o_ref[...] = x_ref[...]
    for l in range(num_layers):
        x = o_ref[...]
        h = jnp.maximum(x * s1_ref[l] + sh1_ref[l], 0.0)
        bott = jnp.dot(h.astype(jnp.bfloat16), w1_ref[l],
                       preferred_element_type=jnp.float32) + b1_ref[l]
        bott = jnp.maximum(bott, 0.0)                                     # [N, cmid]
        acc = jnp.zeros((bott.shape[0], growth), jnp.float32)
        for k, (dy, dx) in enumerate(_OFFSETS_3X3):
            tap = _row_shift(bott, dy * W + dx) * mask_ref[k]             # shifted + masked
            acc = acc + jnp.dot(tap.astype(jnp.bfloat16), w2_ref[l * 9 + k],
                                preferred_element_type=jnp.float32)
        # TODO(synk): training-mode dropout not implemented (identity at inference).
        o_ref[:, c0 + l * growth: c0 + (l + 1) * growth] = acc


def _transition_kernel(W, x_ref, s_ref, sh_ref, w_ref, o_ref):
    """BN + ReLU + 2x2 average (as neighbour sum) + 1x1 conv, at full resolution.

    The 2x2/stride-2 average pool commutes with the 1x1 conv.  Rows whose neighbour
    sums would cross an image boundary are exactly the rows the wrapper discards
    (only even y / even x rows are kept), so no masking is needed.
    """
    h = jnp.maximum(x_ref[...] * s_ref[...] + sh_ref[...], 0.0)
    hs = h + _row_shift(h, 1) + _row_shift(h, W) + _row_shift(h, W + 1)
    o_ref[...] = jnp.dot((0.25 * hs).astype(jnp.bfloat16), w_ref[...],
                         preferred_element_type=jnp.float32)


def _head_kernel(num_images, hw, x_ref, s_ref, sh_ref, wc_ref, bc_ref, o_ref):
    """BN5 + ReLU + global average pool (in-kernel sublane reduction) + classifier."""
    h = jnp.maximum(x_ref[...] * s_ref[...] + sh_ref[...], 0.0)           # [B*HW, C]
    for b in range(num_images):
        m = jnp.mean(h[b * hw:(b + 1) * hw, :], axis=0, keepdims=True)    # [1, C]
        o_ref[b:b + 1, :] = (jnp.dot(m.astype(jnp.bfloat16), wc_ref[...],
                                     preferred_element_type=jnp.float32) + bc_ref[...])


# ------------------------------ pallas_call wrapper ------------------------------

def _vmem_call(kernel, out_shape, *args):
    """Single-invocation pallas_call; every operand is a whole-array VMEM block.

    Everything at these toy sizes is a few KB, so no grid is needed.  At real DenseNet
    sizes a row-tiled grid with dimension_semantics=('parallel',) (and vmem_limit_bytes)
    would replace these whole-array blocks, especially on v7x (64 MiB VMEM, 2 TCs).
    """
    return pl.pallas_call(
        kernel,
        out_shape=out_shape,
        in_specs=[pl.BlockSpec(memory_space=pltpu.MemorySpace.VMEM)] * len(args),
        out_specs=pl.BlockSpec(memory_space=pltpu.MemorySpace.VMEM),
    )(*args)


# ------------------------------ wrapper-side layout plumbing ------------------------------

def _conv_w_to_mat(w):
    # torch conv weight [Cout, Cin, kh, kw] -> matmul weight [kh*kw*Cin, Cout]
    cout, cin, kh, kw = w.shape
    return jnp.transpose(w, (2, 3, 1, 0)).reshape(kh * kw * cin, cout)


def _im2col_nhwc(x, k, stride, pad):
    # pure data rearrangement for the one-time stem conv; compute stays in Pallas.
    B, H, W, C = x.shape
    xp = jnp.pad(x, ((0, 0), (pad, pad), (pad, pad), (0, 0)))
    Ho = (H + 2 * pad - k) // stride + 1
    Wo = (W + 2 * pad - k) // stride + 1
    cols = []
    for dy in range(k):
        for dx in range(k):
            cols.append(xp[:, dy:dy + stride * Ho:stride, dx:dx + stride * Wo:stride, :])
    patches = jnp.concatenate(cols, axis=-1)                      # [B, Ho, Wo, k*k*C]
    return patches.reshape(B * Ho * Wo, k * k * C), (Ho, Wo)


def _make_tap_masks(n_images, H, W, width):
    """[9, N, width] 0/1 masks: is tap (dy, dx) in-bounds for flattened row (b, y, x)."""
    r = np.arange(n_images * H * W)
    xs = r % W
    ys = (r // W) % H
    masks = []
    for dy, dx in _OFFSETS_3X3:
        valid = (xs + dx >= 0) & (xs + dx < W) & (ys + dy >= 0) & (ys + dy < H)
        masks.append(np.repeat(valid[:, None].astype(np.float32), width, axis=1))
    return jnp.asarray(np.stack(masks, axis=0))


# ------------------------------ Model (parameter setup + forward) ------------------------------

class DenseNetPallas:
    """JAX/Pallas re-implementation of torchvision-style DenseNet (inference forward)."""

    def __init__(self, key, growth_rate=8, block_config=(2, 2), num_init_features=16,
                 bn_size=2, drop_rate=0.0, num_classes=10, eps=1e-5):
        self.drop_rate = float(drop_rate)   # identity at inference
        self.growth_rate = growth_rate
        keys = iter(jax.random.split(key, 256))

        def conv_w(cout, cin, kh, kw):      # kaiming-normal-ish
            fan_in = cin * kh * kw
            return (2.0 / fan_in) ** 0.5 * jax.random.normal(
                next(keys), (cout, cin, kh, kw), jnp.float32)

        def bn_fold(c):
            gamma = 1.0 + 0.2 * jax.random.normal(next(keys), (c,), jnp.float32)
            beta = 0.1 * jax.random.normal(next(keys), (c,), jnp.float32)
            mean = 0.1 * jax.random.normal(next(keys), (c,), jnp.float32)
            var = jax.random.uniform(next(keys), (c,), jnp.float32, minval=0.5, maxval=1.5)
            scale = gamma / jnp.sqrt(var + eps)
            shift = beta - mean * scale
            return scale, shift

        raw, kp = {}, {}

        # ---- stem: conv0 + norm0 (+relu0 + maxpool fused in the kernel) ----
        w0 = conv_w(num_init_features, 3, 7, 7)
        bn0 = bn_fold(num_init_features)
        raw["conv0"], raw["bn0"] = w0, bn0
        kp["stem_w"] = (_conv_w_to_mat(w0) * bn0[0][None, :]).astype(jnp.bfloat16)
        kp["stem_b"] = bn0[1].reshape(1, -1)

        # ---- dense blocks & transitions (stacked / zero-padded per-block params) ----
        raw["blocks"], raw["transitions"] = [], []
        kp["blocks"], kp["transitions"] = [], []
        c = num_init_features
        cmid = bn_size * growth_rate
        for bi, num_layers in enumerate(block_config):
            c_final = c + num_layers * growth_rate
            rlayers = []
            s1_st, sh1_st, w1_st, b1_st, w2_st = [], [], [], [], []
            for li in range(num_layers):
                cin = c + li * growth_rate
                bn1 = bn_fold(cin)
                w1 = conv_w(cmid, cin, 1, 1)
                bn2 = bn_fold(cmid)
                w2 = conv_w(growth_rate, cmid, 3, 3)
                rlayers.append(dict(bn1=bn1, conv1=w1, bn2=bn2, conv2=w2))
                s1_st.append(jnp.zeros((c_final,), jnp.float32).at[:cin].set(bn1[0]))
                sh1_st.append(jnp.zeros((c_final,), jnp.float32).at[:cin].set(bn1[1]))
                w1m = w1[:, :, 0, 0].T * bn2[0][None, :]               # [cin, cmid], BN2 folded
                w1_st.append(jnp.zeros((c_final, cmid), jnp.float32).at[:cin, :].set(w1m))
                b1_st.append(bn2[1])
                for ky in range(3):                                    # tap order == _OFFSETS_3X3
                    for kx in range(3):
                        w2_st.append(w2[:, :, ky, kx].T)               # [cmid, growth]
            raw["blocks"].append(rlayers)
            kp["blocks"].append(dict(
                c0=c, c_final=c_final, num_layers=num_layers,
                s1=jnp.stack(s1_st)[:, None, :],
                sh1=jnp.stack(sh1_st)[:, None, :],
                w1=jnp.stack(w1_st).astype(jnp.bfloat16),
                b1=jnp.stack(b1_st)[:, None, :],
                w2=jnp.stack(w2_st).astype(jnp.bfloat16)))
            c = c_final
            if bi != len(block_config) - 1:
                bnt = bn_fold(c)
                wt = conv_w(c // 2, c, 1, 1)
                raw["transitions"].append(dict(bn=bnt, conv=wt))
                kp["transitions"].append(dict(
                    s=bnt[0].reshape(1, -1), sh=bnt[1].reshape(1, -1),
                    w=wt[:, :, 0, 0].T.astype(jnp.bfloat16)))
                c = c // 2

        # ---- head: norm5 + relu + global-avg-pool + classifier ----
        bn5 = bn_fold(c)
        wc = 0.05 * jax.random.normal(next(keys), (num_classes, c), jnp.float32)
        bc = jnp.zeros((num_classes,), jnp.float32)     # nn.init.constant_(bias, 0)
        raw["bn5"], raw["fc"] = bn5, (wc, bc)
        kp["head"] = dict(s=bn5[0].reshape(1, -1), sh=bn5[1].reshape(1, -1),
                          wc=wc.T.astype(jnp.bfloat16), bc=bc.reshape(1, -1))

        self.raw, self.kp = raw, kp
        self.num_classes = num_classes

    def __call__(self, x_nchw):
        kp = self.kp
        x = jnp.transpose(x_nchw.astype(jnp.float32), (0, 2, 3, 1))     # NHWC
        B = x.shape[0]
        growth = self.growth_rate

        # ---- stem: conv0 + BN0 + ReLU + MaxPool(3, s2, p1), ONE kernel ----
        patches, (H, W) = _im2col_nhwc(x, k=7, stride=2, pad=3)
        c0 = kp["stem_w"].shape[1]
        masks = _make_tap_masks(B, H, W, c0)
        m_full = _vmem_call(
            functools.partial(_stem_kernel, W),
            jax.ShapeDtypeStruct((B * H * W, c0), jnp.float32),
            patches.astype(jnp.bfloat16), kp["stem_w"], kp["stem_b"], masks)
        Ho, Wo = (H + 1) // 2, (W + 1) // 2
        feat = m_full.reshape(B, H, W, c0)[:, ::2, ::2, :].reshape(B * Ho * Wo, c0)
        H, W = Ho, Wo

        # ---- dense blocks (one kernel each) + transitions (one kernel each) ----
        nblocks = len(kp["blocks"])
        for bi, bp in enumerate(kp["blocks"]):
            c_in, c_final = bp["c0"], bp["c_final"]
            feat_p = jnp.pad(feat, ((0, 0), (0, c_final - c_in)))
            masks = _make_tap_masks(B, H, W, bp["w1"].shape[-1])
            feat = _vmem_call(
                functools.partial(_dense_block_kernel, W, c_in, growth, bp["num_layers"]),
                jax.ShapeDtypeStruct((B * H * W, c_final), jnp.float32),
                feat_p, bp["s1"], bp["sh1"], bp["w1"], bp["b1"], bp["w2"], masks)
            if bi != nblocks - 1:
                tp = kp["transitions"][bi]
                c_out = tp["w"].shape[1]
                full = _vmem_call(
                    functools.partial(_transition_kernel, W),
                    jax.ShapeDtypeStruct((B * H * W, c_out), jnp.float32),
                    feat, tp["s"], tp["sh"], tp["w"])
                Ho, Wo = H // 2, W // 2
                feat = full.reshape(B, H, W, c_out)[:, ::2, ::2, :].reshape(B * Ho * Wo, c_out)
                H, W = Ho, Wo

        # ---- head: BN5 + ReLU + global-avg-pool + classifier, ONE kernel ----
        hp = kp["head"]
        return _vmem_call(
            functools.partial(_head_kernel, B, H * W),
            jax.ShapeDtypeStruct((B, self.num_classes), jnp.float32),
            feat, hp["s"], hp["sh"], hp["wc"], hp["bc"])


# ------------------------------ Pure-JAX reference (lax convs, f32) ------------------------------

def _ref_forward(model, x_nchw):
    p = model.raw
    prec = lax.Precision.HIGHEST

    def bn(h, sc_sh):
        s, sh = sc_sh
        return h * s[None, :, None, None] + sh[None, :, None, None]

    def conv(h, w, stride, pad):
        return lax.conv_general_dilated(
            h, w, window_strides=(stride, stride),
            padding=((pad, pad), (pad, pad)),
            dimension_numbers=("NCHW", "OIHW", "NCHW"), precision=prec)

    h = conv(x_nchw.astype(jnp.float32), p["conv0"], 2, 3)
    h = jnp.maximum(bn(h, p["bn0"]), 0.0)
    h = lax.reduce_window(h, -jnp.inf, lax.max, (1, 1, 3, 3), (1, 1, 2, 2),
                          ((0, 0), (0, 0), (1, 1), (1, 1)))
    nblocks = len(p["blocks"])
    for bi, layers in enumerate(p["blocks"]):
        feats = h
        for lp in layers:
            t = jnp.maximum(bn(feats, lp["bn1"]), 0.0)
            t = conv(t, lp["conv1"], 1, 0)
            t = jnp.maximum(bn(t, lp["bn2"]), 0.0)
            t = conv(t, lp["conv2"], 1, 1)
            feats = jnp.concatenate([feats, t], axis=1)
        h = feats
        if bi != nblocks - 1:
            tp = p["transitions"][bi]
            h = jnp.maximum(bn(h, tp["bn"]), 0.0)
            h = conv(h, tp["conv"], 1, 0)
            h = lax.reduce_window(h, 0.0, lax.add, (1, 1, 2, 2), (1, 1, 2, 2),
                                  ((0, 0), (0, 0), (0, 0), (0, 0))) * 0.25
    h = jnp.maximum(bn(h, p["bn5"]), 0.0)
    h = jnp.mean(h, axis=(2, 3))
    wc, bc = p["fc"]
    return h @ wc.T + bc


# ------------------------------ Main ------------------------------

if __name__ == "__main__":
    key = jax.random.PRNGKey(0)
    k_param, k_x = jax.random.split(key)

    model = DenseNetPallas(k_param, growth_rate=8, block_config=(2, 2),
                           num_init_features=16, bn_size=2, drop_rate=0.0, num_classes=10)

    x = jax.random.normal(k_x, (2, 3, 16, 16), dtype=jnp.float32)   # NCHW like torch

    fwd = jax.jit(model.__call__)
    out = jax.block_until_ready(fwd(x))
    assert out.shape == (2, 10)

    ref = jax.block_until_ready(_ref_forward(model, x))
    max_err = float(jnp.max(jnp.abs(out - ref)))
    scale = float(jnp.max(jnp.abs(ref))) + 1e-6
    # bf16 MXU operands (f32 accumulation) -> slightly looser tolerance than pure f32.
    assert max_err / scale < 4e-2, f"mismatch vs reference: max_err={max_err}, scale={scale}"

    print("KERNEL_OK")
</pallas_src>

<mosaic_0001>
module attributes {stable_mosaic.version = 11 : i64} {
  func.func @_stem_kernel(%arg0: memref<128x147xbf16, #tpu.memory_space<vmem>>, %arg1: memref<147x16xbf16, #tpu.memory_space<vmem>>, %arg2: memref<1x16xf32, #tpu.memory_space<vmem>>, %arg3: memref<9x128x16xf32, #tpu.memory_space<vmem>>, %arg4: memref<128x16xf32, #tpu.memory_space<vmem>>) attributes {dimension_semantics = [], scalar_prefetch = 0 : i64, scratch_operands = 0 : i64, tpu.core_type = #tpu.core_type<tc>} {
    %c0 = arith.constant 0 : index
    %c0_0 = arith.constant 0 : index
    %0 = vector.load %arg0[%c0, %c0_0] : memref<128x147xbf16, #tpu.memory_space<vmem>>, vector<128x147xbf16>
    %c0_1 = arith.constant 0 : index
    %c0_2 = arith.constant 0 : index
    %1 = vector.load %arg1[%c0_1, %c0_2] : memref<147x16xbf16, #tpu.memory_space<vmem>>, vector<147x16xbf16>
    %cst = arith.constant dense<0.000000e+00> : vector<128x16xf32>
    %2 = tpu.matmul %0, %1, %cst {dimension_numbers = #tpu.dot_dimension_numbers<[1], [0], [0], [1], [0, 0, 1, 1], [], []>} : vector<128x147xbf16>, vector<147x16xbf16>, vector<128x16xf32> -> vector<128x16xf32>
    %c0_3 = arith.constant 0 : index
    %c0_4 = arith.constant 0 : index
    %3 = vector.load %arg2[%c0_3, %c0_4] : memref<1x16xf32, #tpu.memory_space<vmem>>, vector<1x16xf32>
    %4 = vector.broadcast %3 : vector<1x16xf32> to vector<128x16xf32>
    %5 = arith.addf %2, %4 : vector<128x16xf32>
    %cst_5 = arith.constant 0.000000e+00 : f32
    %6 = vector.broadcast %cst_5 : f32 to vector<128x16xf32>
    %7 = arith.maximumf %5, %6 : vector<128x16xf32>
    %cst_6 = arith.constant 0.000000e+00 : f32
    %8 = vector.broadcast %cst_6 : f32 to vector<9x16xf32>
    %9 = vector.extract_strided_slice %7 {offsets = [0, 0], sizes = [119, 16], strides = [1, 1]} : vector<128x16xf32> to vector<119x16xf32>
    %10 = tpu.concatenate %8, %9 in 0 : vector<9x16xf32>, vector<119x16xf32> -> vector<128x16xf32>
    %c0_7 = arith.constant 0 : index
    %c0_8 = arith.constant 0 : index
    %c0_9 = arith.constant 0 : index
    %11 = vector.load %arg3[%c0_7, %c0_8, %c0_9] : memref<9x128x16xf32, #tpu.memory_space<vmem>>, vector<1x128x16xf32>
    %12 = vector.shape_cast %11 : vector<1x128x16xf32> to vector<128x16xf32>
    %13 = arith.mulf %10, %12 : vector<128x16xf32>
    %14 = arith.maximumf %7, %13 : vector<128x16xf32>
    %cst_10 = arith.constant 0.000000e+00 : f32
    %15 = vector.broadcast %cst_10 : f32 to vector<8x16xf32>
    %16 = vector.extract_strided_slice %7 {offsets = [0, 0], sizes = [120, 16], strides = [1, 1]} : vector<128x16xf32> to vector<120x16xf32>
    %17 = tpu.concatenate %15, %16 in 0 : vector<8x16xf32>, vector<120x16xf32> -> vector<128x16xf32>
    %c1 = arith.constant 1 : index
    %c0_11 = arith.constant 0 : index
    %c0_12 = arith.constant 0 : index
    %18 = vector.load %arg3[%c1, %c0_11, %c0_12] : memref<9x128x16xf32, #tpu.memory_space<vmem>>, vector<1x128x16xf32>
    %19 = vector.shape_cast %18 : vector<1x128x16xf32> to vector<128x16xf32>
    %20 = arith.mulf %17, %19 : vector<128x16xf32>
    %21 = arith.maximumf %14, %20 : vector<128x16xf32>
    %cst_13 = arith.constant 0.000000e+00 : f32
    %22 = vector.broadcast %cst_13 : f32 to vector<7x16xf32>
    %23 = vector.extract_strided_slice %7 {offsets = [0, 0], sizes = [121, 16], strides = [1, 1]} : vector<128x16xf32> to vector<121x16xf32>
    %24 = tpu.concatenate %22, %23 in 0 : vector<7x16xf32>, vector<121x16xf32> -> vector<128x16xf32>
    %c2 = arith.constant 2 : index
    %c0_14 = arith.constant 0 : index
    %c0_15 = arith.constant 0 : index
    %25 = vector.load %arg3[%c2, %c0_14, %c0_15] : memref<9x128x16xf32, #tpu.memory_space<vmem>>, vector<1x128x16xf32>
    %26 = vector.shape_cast %25 : vector<1x128x16xf32> to vector<128x16xf32>
    %27 = arith.mulf %24, %26 : vector<128x16xf32>
    %28 = arith.maximumf %21, %27 : vector<128x16xf32>
    %cst_16 = arith.constant 0.000000e+00 : f32
    %29 = vector.broadcast %cst_16 : f32 to vector<1x16xf32>
    %30 = vector.extract_strided_slice %7 {offsets = [0, 0], sizes = [127, 16], strides = [1, 1]} : vector<128x16xf32> to vector<127x16xf32>
    %31 = tpu.concatenate %29, %30 in 0 : vector<1x16xf32>, vector<127x16xf32> -> vector<128x16xf32>
    %c3 = arith.constant 3 : index
    %c0_17 = arith.constant 0 : index
    %c0_18 = arith.constant 0 : index
    %32 = vector.load %arg3[%c3, %c0_17, %c0_18] : memref<9x128x16xf32, #tpu.memory_space<vmem>>, vector<1x128x16xf32>
    %33 = vector.shape_cast %32 : vector<1x128x16xf32> to vector<128x16xf32>
    %34 = arith.mulf %31, %33 : vector<128x16xf32>
    %35 = arith.maximumf %28, %34 : vector<128x16xf32>
    %cst_19 = arith.constant 0.000000e+00 : f32
    %36 = vector.broadcast %cst_19 : f32 to vector<1x16xf32>
    %37 = vector.extract_strided_slice %7 {offsets = [1, 0], sizes = [127, 16], strides = [1, 1]} : vector<128x16xf32> to vector<127x16xf32>
    %38 = tpu.concatenate %37, %36 in 0 : vector<127x16xf32>, vector<1x16xf32> -> vector<128x16xf32>
    %c5 = arith.constant 5 : index
    %c0_20 = arith.constant 0 : index
    %c0_21 = arith.constant 0 : index
    %39 = vector.load %arg3[%c5, %c0_20, %c0_21] : memref<9x128x16xf32, #tpu.memory_space<vmem>>, vector<1x128x16xf32>
    %40 = vector.shape_cast %39 : vector<1x128x16xf32> to vector<128x16xf32>
    %41 = arith.mulf %38, %40 : vector<128x16xf32>
    %42 = arith.maximumf %35, %41 : vector<128x16xf32>
    %cst_22 = arith.constant 0.000000e+00 : f32
    %43 = vector.broadcast %cst_22 : f32 to vector<7x16xf32>
    %44 = vector.extract_strided_slice %7 {offsets = [7, 0], sizes = [121, 16], strides = [1, 1]} : vector<128x16xf32> to vector<121x16xf32>
    %45 = tpu.concatenate %44, %43 in 0 : vector<121x16xf32>, vector<7x16xf32> -> vector<128x16xf32>
    %c6 = arith.constant 6 : index
    %c0_23 = arith.constant 0 : index
    %c0_24 = arith.constant 0 : index
    %46 = vector.load %arg3[%c6, %c0_23, %c0_24] : memref<9x128x16xf32, #tpu.memory_space<vmem>>, vector<1x128x16xf32>
    %47 = vector.shape_cast %46 : vector<1x128x16xf32> to vector<128x16xf32>
    %48 = arith.mulf %45, %47 : vector<128x16xf32>
    %49 = arith.maximumf %42, %48 : vector<128x16xf32>
    %cst_25 = arith.constant 0.000000e+00 : f32
    %50 = vector.broadcast %cst_25 : f32 to vector<8x16xf32>
    %51 = vector.extract_strided_slice %7 {offsets = [8, 0], sizes = [120, 16], strides = [1, 1]} : vector<128x16xf32> to vector<120x16xf32>
    %52 = tpu.concatenate %51, %50 in 0 : vector<120x16xf32>, vector<8x16xf32> -> vector<128x16xf32>
    %c7 = arith.constant 7 : index
    %c0_26 = arith.constant 0 : index
    %c0_27 = arith.constant 0 : index
    %53 = vector.load %arg3[%c7, %c0_26, %c0_27] : memref<9x128x16xf32, #tpu.memory_space<vmem>>, vector<1x128x16xf32>
    %54 = vector.shape_cast %53 : vector<1x128x16xf32> to vector<128x16xf32>
    %55 = arith.mulf %52, %54 : vector<128x16xf32>
    %56 = arith.maximumf %49, %55 : vector<128x16xf32>
    %cst_28 = arith.constant 0.000000e+00 : f32
    %57 = vector.broadcast %cst_28 : f32 to vector<9x16xf32>
    %58 = vector.extract_strided_slice %7 {offsets = [9, 0], sizes = [119, 16], strides = [1, 1]} : vector<128x16xf32> to vector<119x16xf32>
    %59 = tpu.concatenate %58, %57 in 0 : vector<119x16xf32>, vector<9x16xf32> -> vector<128x16xf32>
    %c8 = arith.constant 8 : index
    %c0_29 = arith.constant 0 : index
    %c0_30 = arith.constant 0 : index
    %60 = vector.load %arg3[%c8, %c0_29, %c0_30] : memref<9x128x16xf32, #tpu.memory_space<vmem>>, vector<1x128x16xf32>
    %61 = vector.shape_cast %60 : vector<1x128x16xf32> to vector<128x16xf32>
    %62 = arith.mulf %59, %61 : vector<128x16xf32>
    %63 = arith.maximumf %56, %62 : vector<128x16xf32>
    %c0_31 = arith.constant 0 : index
    %c0_32 = arith.constant 0 : index
    %64 = vector.load %arg4[%c0_31, %c0_32] : memref<128x16xf32, #tpu.memory_space<vmem>>, vector<128x16xf32>
    tpu.vector_store %arg4[%c0_31, %c0_32], %63 {strides = array<i32>} : memref<128x16xf32, #tpu.memory_space<vmem>>, vector<128x16xf32>,
    return
  }
}

module attributes {stable_mosaic.version = 11 : i64} {
  func.func @_dense_block_kernel(%arg0: memref<32x32xf32, #tpu.memory_space<vmem>>, %arg1: memref<2x1x32xf32, #tpu.memory_space<vmem>>, %arg2: memref<2x1x32xf32, #tpu.memory_space<vmem>>, %arg3: memref<2x32x16xbf16, #tpu.memory_space<vmem>>, %arg4: memref<2x1x16xf32, #tpu.memory_space<vmem>>, %arg5: memref<18x16x8xbf16, #tpu.memory_space<vmem>>, %arg6: memref<9x32x16xf32, #tpu.memory_space<vmem>>, %arg7: memref<32x32xf32, #tpu.memory_space<vmem>>) attributes {dimension_semantics = [], scalar_prefetch = 0 : i64, scratch_operands = 0 : i64, tpu.core_type = #tpu.core_type<tc>} {
    %c0 = arith.constant 0 : index
    %c0_0 = arith.constant 0 : index
    %0 = vector.load %arg0[%c0, %c0_0] : memref<32x32xf32, #tpu.memory_space<vmem>>, vector<32x32xf32>
    %c0_1 = arith.constant 0 : index
    %c0_2 = arith.constant 0 : index
    %1 = vector.load %arg7[%c0_1, %c0_2] : memref<32x32xf32, #tpu.memory_space<vmem>>, vector<32x32xf32>
    tpu.vector_store %arg7[%c0_1, %c0_2], %0 {strides = array<i32>} : memref<32x32xf32, #tpu.memory_space<vmem>>, vector<32x32xf32>,
    %c0_3 = arith.constant 0 : index
    %c0_4 = arith.constant 0 : index
    %2 = vector.load %arg7[%c0_3, %c0_4] : memref<32x32xf32, #tpu.memory_space<vmem>>, vector<32x32xf32>
    %c0_5 = arith.constant 0 : index
    %c0_6 = arith.constant 0 : index
    %c0_7 = arith.constant 0 : index
    %3 = vector.load %arg1[%c0_5, %c0_6, %c0_7] : memref<2x1x32xf32, #tpu.memory_space<vmem>>, vector<1x1x32xf32>
    %4 = vector.shape_cast %3 : vector<1x1x32xf32> to vector<1x32xf32>
    %5 = vector.broadcast %4 : vector<1x32xf32> to vector<32x32xf32>
    %6 = arith.mulf %2, %5 : vector<32x32xf32>
    %c0_8 = arith.constant 0 : index
    %c0_9 = arith.constant 0 : index
    %c0_10 = arith.constant 0 : index
    %7 = vector.load %arg2[%c0_8, %c0_9, %c0_10] : memref<2x1x32xf32, #tpu.memory_space<vmem>>, vector<1x1x32xf32>
    %8 = vector.shape_cast %7 : vector<1x1x32xf32> to vector<1x32xf32>
    %9 = vector.broadcast %8 : vector<1x32xf32> to vector<32x32xf32>
    %10 = arith.addf %6, %9 : vector<32x32xf32>
    %cst = arith.constant 0.000000e+00 : f32
    %11 = vector.broadcast %cst : f32 to vector<32x32xf32>
    %12 = arith.maximumf %10, %11 : vector<32x32xf32>
    %13 = arith.truncf %12 : vector<32x32xf32> to vector<32x32xbf16>
    %c0_11 = arith.constant 0 : index
    %c0_12 = arith.constant 0 : index
    %c0_13 = arith.constant 0 : index
    %14 = vector.load %arg3[%c0_11, %c0_12, %c0_13] : memref<2x32x16xbf16, #tpu.memory_space<vmem>>, vector<1x32x16xbf16>
    %15 = vector.shape_cast %14 : vector<1x32x16xbf16> to vector<32x16xbf16>
    %cst_14 = arith.constant dense<0.000000e+00> : vector<32x16xf32>
    %16 = tpu.matmul %13, %15, %cst_14 {dimension_numbers = #tpu.dot_dimension_numbers<[1], [0], [0], [1], [0, 0, 1, 1], [], []>} : vector<32x32xbf16>, vector<32x16xbf16>, vector<32x16xf32> -> vector<32x16xf32>
    %c0_15 = arith.constant 0 : index
    %c0_16 = arith.constant 0 : index
    %c0_17 = arith.constant 0 : index
    %17 = vector.load %arg4[%c0_15, %c0_16, %c0_17] : memref<2x1x16xf32, #tpu.memory_space<vmem>>, vector<1x1x16xf32>
    %18 = vector.shape_cast %17 : vector<1x1x16xf32> to vector<1x16xf32>
    %19 = vector.broadcast %18 : vector<1x16xf32> to vector<32x16xf32>
    %20 = arith.addf %16, %19 : vector<32x16xf32>
    %cst_18 = arith.constant 0.000000e+00 : f32
    %21 = vector.broadcast %cst_18 : f32 to vector<32x16xf32>
    %22 = arith.maximumf %20, %21 : vector<32x16xf32>
    %cst_19 = arith.constant 0.000000e+00 : f32
    %23 = vector.broadcast %cst_19 : f32 to vector<32x8xf32>
    %cst_20 = arith.constant 0.000000e+00 : f32
    %24 = vector.broadcast %cst_20 : f32 to vector<5x16xf32>
    %25 = vector.extract_strided_slice %22 {offsets = [0, 0], sizes = [27, 16], strides = [1, 1]} : vector<32x16xf32> to vector<27x16xf32>
    %26 = tpu.concatenate %24, %25 in 0 : vector<5x16xf32>, vector<27x16xf32> -> vector<32x16xf32>
    %c0_21 = arith.constant 0 : index
    %c0_22 = arith.constant 0 : index
    %c0_23 = arith.constant 0 : index
    %27 = vector.load %arg6[%c0_21, %c0_22, %c0_23] : memref<9x32x16xf32, #tpu.memory_space<vmem>>, vector<1x32x16xf32>
    %28 = vector.shape_cast %27 : vector<1x32x16xf32> to vector<32x16xf32>
    %29 = arith.mulf %26, %28 : vector<32x16xf32>
    %30 = arith.truncf %29 : vector<32x16xf32> to vector<32x16xbf16>
    %c0_24 = arith.constant 0 : index
    %c0_25 = arith.constant 0 : index
    %c0_26 = arith.constant 0 : index
    %31 = vector.load %arg5[%c0_24, %c0_25, %c0_26] : memref<18x16x8xbf16, #tpu.memory_space<vmem>>, vector<1x16x8xbf16>
    %32 = vector.shape_cast %31 : vector<1x16x8xbf16> to vector<16x8xbf16>
    %cst_27 = arith.constant dense<0.000000e+00> : vector<32x8xf32>
    %33 = tpu.matmul %30, %32, %cst_27 {dimension_numbers = #tpu.dot_dimension_numbers<[1], [0], [0], [1], [0, 0, 1, 1], [], []>} : vector<32x16xbf16>, vector<16x8xbf16>, vector<32x8xf32> -> vector<32x8xf32>
    %34 = arith.addf %23, %33 : vector<32x8xf32>
    %cst_28 = arith.constant 0.000000e+00 : f32
    %35 = vector.broadcast %cst_28 : f32 to vector<4x16xf32>
    %36 = vector.extract_strided_slice %22 {offsets = [0, 0], sizes = [28, 16], strides = [1, 1]} : vector<32x16xf32> to vector<28x16xf32>
    %37 = tpu.concatenate %35, %36 in 0 : vector<4x16xf32>, vector<28x16xf32> -> vector<32x16xf32>
    %c1 = arith.constant 1 : index
    %c0_29 = arith.constant 0 : index
    %c0_30 = arith.constant 0 : index
    %38 = vector.load %arg6[%c1, %c0_29, %c0_30] : memref<9x32x16xf32, #tpu.memory_space<vmem>>, vector<1x32x16xf32>
    %39 = vector.shape_cast %38 : vector<1x32x16xf32> to vector<32x16xf32>
    %40 = arith.mulf %37, %39 : vector<32x16xf32>
    %41 = arith.truncf %40 : vector<32x16xf32> to vector<32x16xbf16>
    %c1_31 = arith.constant 1 : index
    %c0_32 = arith.constant 0 : index
    %c0_33 = arith.constant 0 : index
    %42 = vector.load %arg5[%c1_31, %c0_32, %c0_33] : memref<18x16x8xbf16, #tpu.memory_space<vmem>>, vector<1x16x8xbf16>
    %43 = vector.shape_cast %42 : vector<1x16x8xbf16> to vector<16x8xbf16>
    %cst_34 = arith.constant dense<0.000000e+00> : vector<32x8xf32>
    %44 = tpu.matmul %41, %43, %cst_34 {dimension_numbers = #tpu.dot_dimension_numbers<[1], [0], [0], [1], [0, 0, 1, 1], [], []>} : vector<32x16xbf16>, vector<16x8xbf16>, vector<32x8xf32> -> vector<32x8xf32>
    %45 = arith.addf %34, %44 : vector<32x8xf32>
    %cst_35 = arith.constant 0.000000e+00 : f32
    %46 = vector.broadcast %cst_35 : f32 to vector<3x16xf32>
    %47 = vector.extract_strided_slice %22 {offsets = [0, 0], sizes = [29, 16], strides = [1, 1]} : vector<32x16xf32> to vector<29x16xf32>
    %48 = tpu.concatenate %46, %47 in 0 : vector<3x16xf32>, vector<29x16xf32> -> vector<32x16xf32>
    %c2 = arith.constant 2 : index
    %c0_36 = arith.constant 0 : index
    %c0_37 = arith.constant 0 : index
    %49 = vector.load %arg6[%c2, %c0_36, %c0_37] : memref<9x32x16xf32, #tpu.memory_space<vmem>>, vector<1x32x16xf32>
    %50 = vector.shape_cast %49 : vector<1x32x16xf32> to vector<32x16xf32>
    %51 = arith.mulf %48, %50 : vector<32x16xf32>
    %52 = arith.truncf %51 : vector<32x16xf32> to vector<32x16xbf16>
    %c2_38 = arith.constant 2 : index
    %c0_39 = arith.constant 0 : index
    %c0_40 = arith.constant 0 : index
    %53 = vector.load %arg5[%c2_38, %c0_39, %c0_40] : memref<18x16x8xbf16, #tpu.memory_space<vmem>>, vector<1x16x8xbf16>
    %54 = vector.shape_cast %53 : vector<1x16x8xbf16> to vector<16x8xbf16>
    %cst_41 = arith.constant dense<0.000000e+00> : vector<32x8xf32>
    %55 = tpu.matmul %52, %54, %cst_41 {dimension_numbers = #tpu.dot_dimension_numbers<[1], [0], [0], [1], [0, 0, 1, 1], [], []>} : vector<32x16xbf16>, vector<16x8xbf16>, vector<32x8xf32> -> vector<32x8xf32>
    %56 = arith.addf %45, %55 : vector<32x8xf32>
    %cst_42 = arith.constant 0.000000e+00 : f32
    %57 = vector.broadcast %cst_42 : f32 to vector<1x16xf32>
    %58 = vector.extract_strided_slice %22 {offsets = [0, 0], sizes = [31, 16], strides = [1, 1]} : vector<32x16xf32> to vector<31x16xf32>
    %59 = tpu.concatenate %57, %58 in 0 : vector<1x16xf32>, vector<31x16xf32> -> vector<32x16xf32>
    %c3 = arith.constant 3 : index
    %c0_43 = arith.constant 0 : index
    %c0_44 = arith.constant 0 : index
    %60 = vector.load %arg6[%c3, %c0_43, %c0_44] : memref<9x32x16xf32, #tpu.memory_space<vmem>>, vector<1x32x16xf32>
    %61 = vector.shape_cast %60 : vector<1x32x16xf32> to vector<32x16xf32>
    %62 = arith.mulf %59, %61 : vector<32x16xf32>
    %63 = arith.truncf %62 : vector<32x16xf32> to vector<32x16xbf16>
    %c3_45 = arith.constant 3 : index
    %c0_46 = arith.constant 0 : index
    %c0_47 = arith.constant 0 : index
    %64 = vector.load %arg5[%c3_45, %c0_46, %c0_47] : memref<18x16x8xbf16, #tpu.memory_space<vmem>>, vector<1x16x8xbf16>
    %65 = vector.shape_cast %64 : vector<1x16x8xbf16> to vector<16x8xbf16>
    %cst_48 = arith.constant dense<0.000000e+00> : vector<32x8xf32>
    %66 = tpu.matmul %63, %65, %cst_48 {dimension_numbers = #tpu.dot_dimension_numbers<[1], [0], [0], [1], [0, 0, 1, 1], [], []>} : vector<32x16xbf16>, vector<16x8xbf16>, vector<32x8xf32> -> vector<32x8xf32>
    %67 = arith.addf %56, %66 : vector<32x8xf32>
    %c4 = arith.constant 4 : index
    %c0_49 = arith.constant 0 : index
    %c0_50 = arith.constant 0 : index
    %68 = vector.load %arg6[%c4, %c0_49, %c0_50] : memref<9x32x16xf32, #tpu.memory_space<vmem>>, vector<1x32x16xf32>
    %69 = vector.shape_cast %68 : vector<1x32x16xf32> to vector<32x16xf32>
    %70 = arith.mulf %22, %69 : vector<32x16xf32>
    %71 = arith.truncf %70 : vector<32x16xf32> to vector<32x16xbf16>
    %c4_51 = arith.constant 4 : index
    %c0_52 = arith.constant 0 : index
    %c0_53 = arith.constant 0 : index
    %72 = vector.load %arg5[%c4_51, %c0_52, %c0_53] : memref<18x16x8xbf16, #tpu.memory_space<vmem>>, vector<1x16x8xbf16>
    %73 = vector.shape_cast %72 : vector<1x16x8xbf16> to vector<16x8xbf16>
    %cst_54 = arith.constant dense<0.000000e+00> : vector<32x8xf32>
    %74 = tpu.matmul %71, %73, %cst_54 {dimension_numbers = #tpu.dot_dimension_numbers<[1], [0], [0], [1], [0, 0, 1, 1], [], []>} : vector<32x16xbf16>, vector<16x8xbf16>, vector<32x8xf32> -> vector<32x8xf32>
    %75 = arith.addf %67, %74 : vector<32x8xf32>
    %cst_55 = arith.constant 0.000000e+00 : f32
    %76 = vector.broadcast %cst_55 : f32 to vector<1x16xf32>
    %77 = vector.extract_strided_slice %22 {offsets = [1, 0], sizes = [31, 16], strides = [1, 1]} : vector<32x16xf32> to vector<31x16xf32>
    %78 = tpu.concatenate %77, %76 in 0 : vector<31x16xf32>, vector<1x16xf32> -> vector<32x16xf32>
    %c5 = arith.constant 5 : index
    %c0_56 = arith.constant 0 : index
    %c0_57 = arith.constant 0 : index
    %79 = vector.load %arg6[%c5, %c0_56, %c0_57] : memref<9x32x16xf32, #tpu.memory_space<vmem>>, vector<1x32x16xf32>
    %80 = vector.shape_cast %79 : vector<1x32x16xf32> to vector<32x16xf32>
    %81 = arith.mulf %78, %80 : vector<32x16xf32>
    %82 = arith.truncf %81 : vector<32x16xf32> to vector<32x16xbf16>
    %c5_58 = arith.constant 5 : index
    %c0_59 = arith.constant 0 : index
    %c0_60 = arith.constant 0 : index
    %83 = vector.load %arg5[%c5_58, %c0_59, %c0_60] : memref<18x16x8xbf16, #tpu.memory_space<vmem>>, vector<1x16x8xbf16>
    %84 = vector.shape_cast %83 : vector<1x16x8xbf16> to vector<16x8xbf16>
    %cst_61 = arith.constant dense<0.000000e+00> : vector<32x8xf32>
    %85 = tpu.matmul %82, %84, %cst_61 {dimension_numbers = #tpu.dot_dimension_numbers<[1], [0], [0], [1], [0, 0, 1, 1], [], []>} : vector<32x16xbf16>, vector<16x8xbf16>, vector<32x8xf32> -> vector<32x8xf32>
    %86 = arith.addf %75, %85 : vector<32x8xf32>
    %cst_62 = arith.constant 0.000000e+00 : f32
    %87 = vector.broadcast %cst_62 : f32 to vector<3x16xf32>
    %88 = vector.extract_strided_slice %22 {offsets = [3, 0], sizes = [29, 16], strides = [1, 1]} : vector<32x16xf32> to vector<29x16xf32>
    %89 = tpu.concatenate %88, %87 in 0 : vector<29x16xf32>, vector<3x16xf32> -> vector<32x16xf32>
    %c6 = arith.constant 6 : index
    %c0_63 = arith.constant 0 : index
    %c0_64 = arith.constant 0 : index
    %90 = vector.load %arg6[%c6, %c0_63, %c0_64] : memref<9x32x16xf32, #tpu.memory_space<vmem>>, vector<1x32x16xf32>
    %91 = vector.shape_cast %90 : vector<1x32x16xf32> to vector<32x16xf32>
    %92 = arith.mulf %89, %91 : vector<32x16xf32>
    %93 = arith.truncf %92 : vector<32x16xf32> to vector<32x16xbf16>
    %c6_65 = arith.constant 6 : index
    %c0_66 = arith.constant 0 : index
    %c0_67 = arith.constant 0 : index
    %94 = vector.load %arg5[%c6_65, %c0_66, %c0_67] : memref<18x16x8xbf16, #tpu.memory_space<vmem>>, vector<1x16x8xbf16>
    %95 = vector.shape_cast %94 : vector<1x16x8xbf16> to vector<16x8xbf16>
    %cst_68 = arith.constant dense<0.000000e+00> : vector<32x8xf32>
    %96 = tpu.matmul %93, %95, %cst_68 {dimension_numbers = #tpu.dot_dimension_numbers<[1], [0], [0], [1], [0, 0, 1, 1], [], []>} : vector<32x16xbf16>, vector<16x8xbf16>, vector<32x8xf32> -> vector<32x8xf32>
    %97 = arith.addf %86, %96 : vector<32x8xf32>
    %cst_69 = arith.constant 0.000000e+00 : f32
    %98 = vector.broadcast %cst_69 : f32 to vector<4x16xf32>
    %99 = vector.extract_strided_slice %22 {offsets = [4, 0], sizes = [28, 16], strides = [1, 1]} : vector<32x16xf32> to vector<28x16xf32>
    %100 = tpu.concatenate %99, %98 in 0 : vector<28x16xf32>, vector<4x16xf32> -> vector<32x16xf32>
    %c7 = arith.constant 7 : index
    %c0_70 = arith.constant 0 : index
    %c0_71 = arith.constant 0 : index
    %101 = vector.load %arg6[%c7, %c0_70, %c0_71] : memref<9x32x16xf32, #tpu.memory_space<vmem>>, vector<1x32x16xf32>
    %102 = vector.shape_cast %101 : vector<1x32x16xf32> to vector<32x16xf32>
    %103 = arith.mulf %100, %102 : vector<32x16xf32>
    %104 = arith.truncf %103 : vector<32x16xf32> to vector<32x16xbf16>
    %c7_72 = arith.constant 7 : index
    %c0_73 = arith.constant 0 : index
    %c0_74 = arith.constant 0 : index
    %105 = vector.load %arg5[%c7_72, %c0_73, %c0_74] : memref<18x16x8xbf16, #tpu.memory_space<vmem>>, vector<1x16x8xbf16>
    %106 = vector.shape_cast %105 : vector<1x16x8xbf16> to vector<16x8xbf16>
    %cst_75 = arith.constant dense<0.000000e+00> : vector<32x8xf32>
    %107 = tpu.matmul %104, %106, %cst_75 {dimension_numbers = #tpu.dot_dimension_numbers<[1], [0], [0], [1], [0, 0, 1, 1], [], []>} : vector<32x16xbf16>, vector<16x8xbf16>, vector<32x8xf32> -> vector<32x8xf32>
    %108 = arith.addf %97, %107 : vector<32x8xf32>
    %cst_76 = arith.constant 0.000000e+00 : f32
    %109 = vector.broadcast %cst_76 : f32 to vector<5x16xf32>
    %110 = vector.extract_strided_slice %22 {offsets = [5, 0], sizes = [27, 16], strides = [1, 1]} : vector<32x16xf32> to vector<27x16xf32>
    %111 = tpu.concatenate %110, %109 in 0 : vector<27x16xf32>, vector<5x16xf32> -> vector<32x16xf32>
    %c8 = arith.constant 8 : index
    %c0_77 = arith.constant 0 : index
    %c0_78 = arith.constant 0 : index
    %112 = vector.load %arg6[%c8, %c0_77, %c0_78] : memref<9x32x16xf32, #tpu.memory_space<vmem>>, vector<1x32x16xf32>
    %113 = vector.shape_cast %112 : vector<1x32x16xf32> to vector<32x16xf32>
    %114 = arith.mulf %111, %113 : vector<32x16xf32>
    %115 = arith.truncf %114 : vector<32x16xf32> to vector<32x16xbf16>
    %c8_79 = arith.constant 8 : index
    %c0_80 = arith.constant 0 : index
    %c0_81 = arith.constant 0 : index
    %116 = vector.load %arg5[%c8_79, %c0_80, %c0_81] : memref<18x16x8xbf16, #tpu.memory_space<vmem>>, vector<1x16x8xbf16>
    %117 = vector.shape_cast %116 : vector<1x16x8xbf16> to vector<16x8xbf16>
    %cst_82 = arith.constant dense<0.000000e+00> : vector<32x8xf32>
    %118 = tpu.matmul %115, %117, %cst_82 {dimension_numbers = #tpu.dot_dimension_numbers<[1], [0], [0], [1], [0, 0, 1, 1], [], []>} : vector<32x16xbf16>, vector<16x8xbf16>, vector<32x8xf32> -> vector<32x8xf32>
    %119 = arith.addf %108, %118 : vector<32x8xf32>
    %c0_83 = arith.constant 0 : index
    %c16 = arith.constant 16 : index
    %120 = vector.load %arg7[%c0_83, %c16] : memref<32x32xf32, #tpu.memory_space<vmem>>, vector<32x8xf32>
    tpu.vector_store %arg7[%c0_83, %c16], %119 {strides = array<i32>} : memref<32x32xf32, #tpu.memory_space<vmem>>, vector<32x8xf32>,
    %c0_84 = arith.constant 0 : index
    %c0_85 = arith.constant 0 : index
    %121 = vector.load %arg7[%c0_84, %c0_85] : memref<32x32xf32, #tpu.memory_space<vmem>>, vector<32x32xf32>
    %c1_86 = arith.constant 1 : index
    %c0_87 = arith.constant 0 : index
    %c0_88 = arith.constant 0 : index
    %122 = vector.load %arg1[%c1_86, %c0_87, %c0_88] : memref<2x1x32xf32, #tpu.memory_space<vmem>>, vector<1x1x32xf32>
    %123 = vector.shape_cast %122 : vector<1x1x32xf32> to vector<1x32xf32>
    %124 = vector.broadcast %123 : vector<1x32xf32> to vector<32x32xf32>
    %125 = arith.mulf %121, %124 : vector<32x32xf32>
    %c1_89 = arith.constant 1 : index
    %c0_90 = arith.constant 0 : index
    %c0_91 = arith.constant 0 : index
    %126 = vector.load %arg2[%c1_89, %c0_90, %c0_91] : memref<2x1x32xf32, #tpu.memory_space<vmem>>, vector<1x1x32xf32>
    %127 = vector.shape_cast %126 : vector<1x1x32xf32> to vector<1x32xf32>
    %128 = vector.broadcast %127 : vector<1x32xf32> to vector<32x32xf32>
    %129 = arith.addf %125, %128 : vector<32x32xf32>
    %cst_92 = arith.constant 0.000000e+00 : f32
    %130 = vector.broadcast %cst_92 : f32 to vector<32x32xf32>
    %131 = arith.maximumf %129, %130 : vector<32x32xf32>
    %132 = arith.truncf %131 : vector<32x32xf32> to vector<32x32xbf16>
    %c1_93 = arith.constant 1 : index
    %c0_94 = arith.constant 0 : index
    %c0_95 = arith.constant 0 : index
    %133 = vector.load %arg3[%c1_93, %c0_94, %c0_95] : memref<2x32x16xbf16, #tpu.memory_space<vmem>>, vector<1x32x16xbf16>
    %134 = vector.shape_cast %133 : vector<1x32x16xbf16> to vector<32x16xbf16>
    %cst_96 = arith.constant dense<0.000000e+00> : vector<32x16xf32>
    %135 = tpu.matmul %132, %134, %cst_96 {dimension_numbers = #tpu.dot_dimension_numbers<[1], [0], [0], [1], [0, 0, 1, 1], [], []>} : vector<32x32xbf16>, vector<32x16xbf16>, vector<32x16xf32> -> vector<32x16xf32>
    %c1_97 = arith.constant 1 : index
    %c0_98 = arith.constant 0 : index
    %c0_99 = arith.constant 0 : index
    %136 = vector.load %arg4[%c1_97, %c0_98, %c0_99] : memref<2x1x16xf32, #tpu.memory_space<vmem>>, vector<1x1x16xf32>
    %137 = vector.shape_cast %136 : vector<1x1x16xf32> to vector<1x16xf32>
    %138 = vector.broadcast %137 : vector<1x16xf32> to vector<32x16xf32>
    %139 = arith.addf %135, %138 : vector<32x16xf32>
    %cst_100 = arith.constant 0.000000e+00 : f32
    %140 = vector.broadcast %cst_100 : f32 to vector<32x16xf32>
    %141 = arith.maximumf %139, %140 : vector<32x16xf32>
    %cst_101 = arith.constant 0.000000e+00 : f32
    %142 = vector.broadcast %cst_101 : f32 to vector<32x8xf32>
    %cst_102 = arith.constant 0.000000e+00 : f32
    %143 = vector.broadcast %cst_102 : f32 to vector<5x16xf32>
    %144 = vector.extract_strided_slice %141 {offsets = [0, 0], sizes = [27, 16], strides = [1, 1]} : vector<32x16xf32> to vector<27x16xf32>
    %145 = tpu.concatenate %143, %144 in 0 : vector<5x16xf32>, vector<27x16xf32> -> vector<32x16xf32>
    %c0_103 = arith.constant 0 : index
    %c0_104 = arith.constant 0 : index
    %c0_105 = arith.constant 0 : index
    %146 = vector.load %arg6[%c0_103, %c0_104, %c0_105] : memref<9x32x16xf32, #tpu.memory_space<vmem>>, vector<1x32x16xf32>
    %147 = vector.shape_cast %146 : vector<1x32x16xf32> to vector<32x16xf32>
    %148 = arith.mulf %145, %147 : vector<32x16xf32>
    %149 = arith.truncf %148 : vector<32x16xf32> to vector<32x16xbf16>
    %c9 = arith.constant 9 : index
    %c0_106 = arith.constant 0 : index
    %c0_107 = arith.constant 0 : index
    %150 = vector.load %arg5[%c9, %c0_106, %c0_107] : memref<18x16x8xbf16, #tpu.memory_space<vmem>>, vector<1x16x8xbf16>
    %151 = vector.shape_cast %150 : vector<1x16x8xbf16> to vector<16x8xbf16>
    %cst_108 = arith.constant dense<0.000000e+00> : vector<32x8xf32>
    %152 = tpu.matmul %149, %151, %cst_108 {dimension_numbers = #tpu.dot_dimension_numbers<[1], [0], [0], [1], [0, 0, 1, 1], [], []>} : vector<32x16xbf16>, vector<16x8xbf16>, vector<32x8xf32> -> vector<32x8xf32>
    %153 = arith.addf %142, %152 : vector<32x8xf32>
    %cst_109 = arith.constant 0.000000e+00 : f32
    %154 = vector.broadcast %cst_109 : f32 to vector<4x16xf32>
    %155 = vector.extract_strided_slice %141 {offsets = [0, 0], sizes = [28, 16], strides = [1, 1]} : vector<32x16xf32> to vector<28x16xf32>
    %156 = tpu.concatenate %154, %155 in 0 : vector<4x16xf32>, vector<28x16xf32> -> vector<32x16xf32>
    %c1_110 = arith.constant 1 : index
    %c0_111 = arith.constant 0 : index
    %c0_112 = arith.constant 0 : index
    %157 = vector.load %arg6[%c1_110, %c0_111, %c0_112] : memref<9x32x16xf32, #tpu.memory_space<vmem>>, vector<1x32x16xf32>
    %158 = vector.shape_cast %157 : vector<1x32x16xf32> to vector<32x16xf32>
    %159 = arith.mulf %156, %158 : vector<32x16xf32>
    %160 = arith.truncf %159 : vector<32x16xf32> to vector<32x16xbf16>
    %c10 = arith.constant 10 : index
    %c0_113 = arith.constant 0 : index
    %c0_114 = arith.constant 0 : index
    %161 = vector.load %arg5[%c10, %c0_113, %c0_114] : memref<18x16x8xbf16, #tpu.memory_space<vmem>>, vector<1x16x8xbf16>
    %162 = vector.shape_cast %161 : vector<1x16x8xbf16> to vector<16x8xbf16>
    %cst_115 = arith.constant dense<0.000000e+00> : vector<32x8xf32>
    %163 = tpu.matmul %160, %162, %cst_115 {dimension_numbers = #tpu.dot_dimension_numbers<[1], [0], [0], [1], [0, 0, 1, 1], [], []>} : vector<32x16xbf16>, vector<16x8xbf16>, vector<32x8xf32> -> vector<32x8xf32>
    %164 = arith.addf %153, %163 : vector<32x8xf32>
    %cst_116 = arith.constant 0.000000e+00 : f32
    %165 = vector.broadcast %cst_116 : f32 to vector<3x16xf32>
    %166 = vector.extract_strided_slice %141 {offsets = [0, 0], sizes = [29, 16], strides = [1, 1]} : vector<32x16xf32> to vector<29x16xf32>
    %167 = tpu.concatenate %165, %166 in 0 : vector<3x16xf32>, vector<29x16xf32> -> vector<32x16xf32>
    %c2_117 = arith.constant 2 : index
    %c0_118 = arith.constant 0 : index
    %c0_119 = arith.constant 0 : index
    %168 = vector.load %arg6[%c2_117, %c0_118, %c0_119] : memref<9x32x16xf32, #tpu.memory_space<vmem>>, vector<1x32x16xf32>
    %169 = vector.shape_cast %168 : vector<1x32x16xf32> to vector<32x16xf32>
    %170 = arith.mulf %167, %169 : vector<32x16xf32>
    %171 = arith.truncf %170 : vector<32x16xf32> to vector<32x16xbf16>
    %c11 = arith.constant 11 : index
    %c0_120 = arith.constant 0 : index
    %c0_121 = arith.constant 0 : index
    %172 = vector.load %arg5[%c11, %c0_120, %c0_121] : memref<18x16x8xbf16, #tpu.memory_space<vmem>>, vector<1x16x8xbf16>
    %173 = vector.shape_cast %172 : vector<1x16x8xbf16> to vector<16x8xbf16>
    %cst_122 = arith.constant dense<0.000000e+00> : vector<32x8xf32>
    %174 = tpu.matmul %171, %173, %cst_122 {dimension_numbers = #tpu.dot_dimension_numbers<[1], [0], [0], [1], [0, 0, 1, 1], [], []>} : vector<32x16xbf16>, vector<16x8xbf16>, vector<32x8xf32> -> vector<32x8xf32>
    %175 = arith.addf %164, %174 : vector<32x8xf32>
    %cst_123 = arith.constant 0.000000e+00 : f32
    %176 = vector.broadcast %cst_123 : f32 to vector<1x16xf32>
    %177 = vector.extract_strided_slice %141 {offsets = [0, 0], sizes = [31, 16], strides = [1, 1]} : vector<32x16xf32> to vector<31x16xf32>
    %178 = tpu.concatenate %176, %177 in 0 : vector<1x16xf32>, vector<31x16xf32> -> vector<32x16xf32>
    %c3_124 = arith.constant 3 : index
    %c0_125 = arith.constant 0 : index
    %c0_126 = arith.constant 0 : index
    %179 = vector.load %arg6[%c3_124, %c0_125, %c0_126] : memref<9x32x16xf32, #tpu.memory_space<vmem>>, vector<1x32x16xf32>
    %180 = vector.shape_cast %179 : vector<1x32x16xf32> to vector<32x16xf32>
    %181 = arith.mulf %178, %180 : vector<32x16xf32>
    %182 = arith.truncf %181 : vector<32x16xf32> to vector<32x16xbf16>
    %c12 = arith.constant 12 : index
    %c0_127 = arith.constant 0 : index
    %c0_128 = arith.constant 0 : index
    %183 = vector.load %arg5[%c12, %c0_127, %c0_128] : memref<18x16x8xbf16, #tpu.memory_space<vmem>>, vector<1x16x8xbf16>
    %184 = vector.shape_cast %183 : vector<1x16x8xbf16> to vector<16x8xbf16>
    %cst_129 = arith.constant dense<0.000000e+00> : vector<32x8xf32>
    %185 = tpu.matmul %182, %184, %cst_129 {dimension_numbers = #tpu.dot_dimension_numbers<[1], [0], [0], [1], [0, 0, 1, 1], [], []>} : vector<32x16xbf16>, vector<16x8xbf16>, vector<32x8xf32> -> vector<32x8xf32>
    %186 = arith.addf %175, %185 : vector<32x8xf32>
    %c4_130 = arith.constant 4 : index
    %c0_131 = arith.constant 0 : index
    %c0_132 = arith.constant 0 : index
    %187 = vector.load %arg6[%c4_130, %c0_131, %c0_132] : memref<9x32x16xf32, #tpu.memory_space<vmem>>, vector<1x32x16xf32>
    %188 = vector.shape_cast %187 : vector<1x32x16xf32> to vector<32x16xf32>
    %189 = arith.mulf %141, %188 : vector<32x16xf32>
    %190 = arith.truncf %189 : vector<32x16xf32> to vector<32x16xbf16>
    %c13 = arith.constant 13 : index
    %c0_133 = arith.constant 0 : index
    %c0_134 = arith.constant 0 : index
    %191 = vector.load %arg5[%c13, %c0_133, %c0_134] : memref<18x16x8xbf16, #tpu.memory_space<vmem>>, vector<1x16x8xbf16>
    %192 = vector.shape_cast %191 : vector<1x16x8xbf16> to vector<16x8xbf16>
    %cst_135 = arith.constant dense<0.000000e+00> : vector<32x8xf32>
    %193 = tpu.matmul %190, %192, %cst_135 {dimension_numbers = #tpu.dot_dimension_numbers<[1], [0], [0], [1], [0, 0, 1, 1], [], []>} : vector<32x16xbf16>, vector<16x8xbf16>, vector<32x8xf32> -> vector<32x8xf32>
    %194 = arith.addf %186, %193 : vector<32x8xf32>
    %cst_136 = arith.constant 0.000000e+00 : f32
    %195 = vector.broadcast %cst_136 : f32 to vector<1x16xf32>
    %196 = vector.extract_strided_slice %141 {offsets = [1, 0], sizes = [31, 16], strides = [1, 1]} : vector<32x16xf32> to vector<31x16xf32>
    %197 = tpu.concatenate %196, %195 in 0 : vector<31x16xf32>, vector<1x16xf32> -> vector<32x16xf32>
    %c5_137 = arith.constant 5 : index
    %c0_138 = arith.constant 0 : index
    %c0_139 = arith.constant 0 : index
    %198 = vector.load %arg6[%c5_137, %c0_138, %c0_139] : memref<9x32x16xf32, #tpu.memory_space<vmem>>, vector<1x32x16xf32>
    %199 = vector.shape_cast %198 : vector<1x32x16xf32> to vector<32x16xf32>
    %200 = arith.mulf %197, %199 : vector<32x16xf32>
    %201 = arith.truncf %200 : vector<32x16xf32> to vector<32x16xbf16>
    %c14 = arith.constant 14 : index
    %c0_140 = arith.constant 0 : index
    %c0_141 = arith.constant 0 : index
    %202 = vector.load %arg5[%c14, %c0_140, %c0_141] : memref<18x16x8xbf16, #tpu.memory_space<vmem>>, vector<1x16x8xbf16>
    %203 = vector.shape_cast %202 : vector<1x16x8xbf16> to vector<16x8xbf16>
    %cst_142 = arith.constant dense<0.000000e+00> : vector<32x8xf32>
    %204 = tpu.matmul %201, %203, %cst_142 {dimension_numbers = #tpu.dot_dimension_numbers<[1], [0], [0], [1], [0, 0, 1, 1], [], []>} : vector<32x16xbf16>, vector<16x8xbf16>, vector<32x8xf32> -> vector<32x8xf32>
    %205 = arith.addf %194, %204 : vector<32x8xf32>
    %cst_143 = arith.constant 0.000000e+00 : f32
    %206 = vector.broadcast %cst_143 : f32 to vector<3x16xf32>
    %207 = vector.extract_strided_slice %141 {offsets = [3, 0], sizes = [29, 16], strides = [1, 1]} : vector<32x16xf32> to vector<29x16xf32>
    %208 = tpu.concatenate %207, %206 in 0 : vector<29x16xf32>, vector<3x16xf32> -> vector<32x16xf32>
    %c6_144 = arith.constant 6 : index
    %c0_145 = arith.constant 0 : index
    %c0_146 = arith.constant 0 : index
    %209 = vector.load %arg6[%c6_144, %c0_145, %c0_146] : memref<9x32x16xf32, #tpu.memory_space<vmem>>, vector<1x32x16xf32>
    %210 = vector.shape_cast %209 : vector<1x32x16xf32> to vector<32x16xf32>
    %211 = arith.mulf %208, %210 : vector<32x16xf32>
    %212 = arith.truncf %211 : vector<32x16xf32> to vector<32x16xbf16>
    %c15 = arith.constant 15 : index
    %c0_147 = arith.constant 0 : index
    %c0_148 = arith.constant 0 : index
    %213 = vector.load %arg5[%c15, %c0_147, %c0_148] : memref<18x16x8xbf16, #tpu.memory_space<vmem>>, vector<1x16x8xbf16>
    %214 = vector.shape_cast %213 : vector<1x16x8xbf16> to vector<16x8xbf16>
    %cst_149 = arith.constant dense<0.000000e+00> : vector<32x8xf32>
    %215 = tpu.matmul %212, %214, %cst_149 {dimension_numbers = #tpu.dot_dimension_numbers<[1], [0], [0], [1], [0, 0, 1, 1], [], []>} : vector<32x16xbf16>, vector<16x8xbf16>, vector<32x8xf32> -> vector<32x8xf32>
    %216 = arith.addf %205, %215 : vector<32x8xf32>
    %cst_150 = arith.constant 0.000000e+00 : f32
    %217 = vector.broadcast %cst_150 : f32 to vector<4x16xf32>
    %218 = vector.extract_strided_slice %141 {offsets = [4, 0], sizes = [28, 16], strides = [1, 1]} : vector<32x16xf32> to vector<28x16xf32>
    %219 = tpu.concatenate %218, %217 in 0 : vector<28x16xf32>, vector<4x16xf32> -> vector<32x16xf32>
    %c7_151 = arith.constant 7 : index
    %c0_152 = arith.constant 0 : index
    %c0_153 = arith.constant 0 : index
    %220 = vector.load %arg6[%c7_151, %c0_152, %c0_153] : memref<9x32x16xf32, #tpu.memory_space<vmem>>, vector<1x32x16xf32>
    %221 = vector.shape_cast %220 : vector<1x32x16xf32> to vector<32x16xf32>
    %222 = arith.mulf %219, %221 : vector<32x16xf32>
    %223 = arith.truncf %222 : vector<32x16xf32> to vector<32x16xbf16>
    %c16_154 = arith.constant 16 : index
    %c0_155 = arith.constant 0 : index
    %c0_156 = arith.constant 0 : index
    %224 = vector.load %arg5[%c16_154, %c0_155, %c0_156] : memref<18x16x8xbf16, #tpu.memory_space<vmem>>, vector<1x16x8xbf16>
    %225 = vector.shape_cast %224 : vector<1x16x8xbf16> to vector<16x8xbf16>
    %cst_157 = arith.constant dense<0.000000e+00> : vector<32x8xf32>
    %226 = tpu.matmul %223, %225, %cst_157 {dimension_numbers = #tpu.dot_dimension_numbers<[1], [0], [0], [1], [0, 0, 1, 1], [], []>} : vector<32x16xbf16>, vector<16x8xbf16>, vector<32x8xf32> -> vector<32x8xf32>
    %227 = arith.addf %216, %226 : vector<32x8xf32>
    %cst_158 = arith.constant 0.000000e+00 : f32
    %228 = vector.broadcast %cst_158 : f32 to vector<5x16xf32>
    %229 = vector.extract_strided_slice %141 {offsets = [5, 0], sizes = [27, 16], strides = [1, 1]} : vector<32x16xf32> to vector<27x16xf32>
    %230 = tpu.concatenate %229, %228 in 0 : vector<27x16xf32>, vector<5x16xf32> -> vector<32x16xf32>
    %c8_159 = arith.constant 8 : index
    %c0_160 = arith.constant 0 : index
    %c0_161 = arith.constant 0 : index
    %231 = vector.load %arg6[%c8_159, %c0_160, %c0_161] : memref<9x32x16xf32, #tpu.memory_space<vmem>>, vector<1x32x16xf32>
    %232 = vector.shape_cast %231 : vector<1x32x16xf32> to vector<32x16xf32>
    %233 = arith.mulf %230, %232 : vector<32x16xf32>
    %234 = arith.truncf %233 : vector<32x16xf32> to vector<32x16xbf16>
    %c17 = arith.constant 17 : index
    %c0_162 = arith.constant 0 : index
    %c0_163 = arith.constant 0 : index
    %235 = vector.load %arg5[%c17, %c0_162, %c0_163] : memref<18x16x8xbf16, #tpu.memory_space<vmem>>, vector<1x16x8xbf16>
    %236 = vector.shape_cast %235 : vector<1x16x8xbf16> to vector<16x8xbf16>
    %cst_164 = arith.constant dense<0.000000e+00> : vector<32x8xf32>
    %237 = tpu.matmul %234, %236, %cst_164 {dimension_numbers = #tpu.dot_dimension_numbers<[1], [0], [0], [1], [0, 0, 1, 1], [], []>} : vector<32x16xbf16>, vector<16x8xbf16>, vector<32x8xf32> -> vector<32x8xf32>
    %238 = arith.addf %227, %237 : vector<32x8xf32>
    %c0_165 = arith.constant 0 : index
    %c24 = arith.constant 24 : index
    %239 = vector.load %arg7[%c0_165, %c24] : memref<32x32xf32, #tpu.memory_space<vmem>>, vector<32x8xf32>
    tpu.vector_store %arg7[%c0_165, %c24], %238 {strides = array<i32>} : memref<32x32xf32, #tpu.memory_space<vmem>>, vector<32x8xf32>,
    return
  }
}

module attributes {stable_mosaic.version = 11 : i64} {
  func.func @_transition_kernel(%arg0: memref<32x32xf32, #tpu.memory_space<vmem>>, %arg1: memref<1x32xf32, #tpu.memory_space<vmem>>, %arg2: memref<1x32xf32, #tpu.memory_space<vmem>>, %arg3: memref<32x16xbf16, #tpu.memory_space<vmem>>, %arg4: memref<32x16xf32, #tpu.memory_space<vmem>>) attributes {dimension_semantics = [], scalar_prefetch = 0 : i64, scratch_operands = 0 : i64, tpu.core_type = #tpu.core_type<tc>} {
    %c0 = arith.constant 0 : index
    %c0_0 = arith.constant 0 : index
    %0 = vector.load %arg0[%c0, %c0_0] : memref<32x32xf32, #tpu.memory_space<vmem>>, vector<32x32xf32>
    %c0_1 = arith.constant 0 : index
    %c0_2 = arith.constant 0 : index
    %1 = vector.load %arg1[%c0_1, %c0_2] : memref<1x32xf32, #tpu.memory_space<vmem>>, vector<1x32xf32>
    %2 = vector.broadcast %1 : vector<1x32xf32> to vector<32x32xf32>
    %3 = arith.mulf %0, %2 : vector<32x32xf32>
    %c0_3 = arith.constant 0 : index
    %c0_4 = arith.constant 0 : index
    %4 = vector.load %arg2[%c0_3, %c0_4] : memref<1x32xf32, #tpu.memory_space<vmem>>, vector<1x32xf32>
    %5 = vector.broadcast %4 : vector<1x32xf32> to vector<32x32xf32>
    %6 = arith.addf %3, %5 : vector<32x32xf32>
    %cst = arith.constant 0.000000e+00 : f32
    %7 = vector.broadcast %cst : f32 to vector<32x32xf32>
    %8 = arith.maximumf %6, %7 : vector<32x32xf32>
    %cst_5 = arith.constant 0.000000e+00 : f32
    %9 = vector.broadcast %cst_5 : f32 to vector<1x32xf32>
    %10 = vector.extract_strided_slice %8 {offsets = [1, 0], sizes = [31, 32], strides = [1, 1]} : vector<32x32xf32> to vector<31x32xf32>
    %11 = tpu.concatenate %10, %9 in 0 : vector<31x32xf32>, vector<1x32xf32> -> vector<32x32xf32>
    %12 = arith.addf %8, %11 : vector<32x32xf32>
    %cst_6 = arith.constant 0.000000e+00 : f32
    %13 = vector.broadcast %cst_6 : f32 to vector<4x32xf32>
    %14 = vector.extract_strided_slice %8 {offsets = [4, 0], sizes = [28, 32], strides = [1, 1]} : vector<32x32xf32> to vector<28x32xf32>
    %15 = tpu.concatenate %14, %13 in 0 : vector<28x32xf32>, vector<4x32xf32> -> vector<32x32xf32>
    %16 = arith.addf %12, %15 : vector<32x32xf32>
    %cst_7 = arith.constant 0.000000e+00 : f32
    %17 = vector.broadcast %cst_7 : f32 to vector<5x32xf32>
    %18 = vector.extract_strided_slice %8 {offsets = [5, 0], sizes = [27, 32], strides = [1, 1]} : vector<32x32xf32> to vector<27x32xf32>
    %19 = tpu.concatenate %18, %17 in 0 : vector<27x32xf32>, vector<5x32xf32> -> vector<32x32xf32>
    %20 = arith.addf %16, %19 : vector<32x32xf32>
    %cst_8 = arith.constant 2.500000e-01 : f32
    %21 = vector.broadcast %cst_8 : f32 to vector<32x32xf32>
    %22 = arith.mulf %21, %20 : vector<32x32xf32>
    %23 = arith.truncf %22 : vector<32x32xf32> to vector<32x32xbf16>
    %c0_9 = arith.constant 0 : index
    %c0_10 = arith.constant 0 : index
    %24 = vector.load %arg3[%c0_9, %c0_10] : memref<32x16xbf16, #tpu.memory_space<vmem>>, vector<32x16xbf16>
    %cst_11 = arith.constant dense<0.000000e+00> : vector<32x16xf32>
    %25 = tpu.matmul %23, %24, %cst_11 {dimension_numbers = #tpu.dot_dimension_numbers<[1], [0], [0], [1], [0, 0, 1, 1], [], []>} : vector<32x32xbf16>, vector<32x16xbf16>, vector<32x16xf32> -> vector<32x16xf32>
    %c0_12 = arith.constant 0 : index
    %c0_13 = arith.constant 0 : index
    %26 = vector.load %arg4[%c0_12, %c0_13] : memref<32x16xf32, #tpu.memory_space<vmem>>, vector<32x16xf32>
    tpu.vector_store %arg4[%c0_12, %c0_13], %25 {strides = array<i32>} : memref<32x16xf32, #tpu.memory_space<vmem>>, vector<32x16xf32>,
    return
  }
}

module attributes {stable_mosaic.version = 11 : i64} {
  func.func @_dense_block_kernel(%arg0: memref<8x32xf32, #tpu.memory_space<vmem>>, %arg1: memref<2x1x32xf32, #tpu.memory_space<vmem>>, %arg2: memref<2x1x32xf32, #tpu.memory_space<vmem>>, %arg3: memref<2x32x16xbf16, #tpu.memory_space<vmem>>, %arg4: memref<2x1x16xf32, #tpu.memory_space<vmem>>, %arg5: memref<18x16x8xbf16, #tpu.memory_space<vmem>>, %arg6: memref<9x8x16xf32, #tpu.memory_space<vmem>>, %arg7: memref<8x32xf32, #tpu.memory_space<vmem>>) attributes {dimension_semantics = [], scalar_prefetch = 0 : i64, scratch_operands = 0 : i64, tpu.core_type = #tpu.core_type<tc>} {
    %c0 = arith.constant 0 : index
    %c0_0 = arith.constant 0 : index
    %0 = vector.load %arg0[%c0, %c0_0] : memref<8x32xf32, #tpu.memory_space<vmem>>, vector<8x32xf32>
    %c0_1 = arith.constant 0 : index
    %c0_2 = arith.constant 0 : index
    %1 = vector.load %arg7[%c0_1, %c0_2] : memref<8x32xf32, #tpu.memory_space<vmem>>, vector<8x32xf32>
    tpu.vector_store %arg7[%c0_1, %c0_2], %0 {strides = array<i32>} : memref<8x32xf32, #tpu.memory_space<vmem>>, vector<8x32xf32>,
    %c0_3 = arith.constant 0 : index
    %c0_4 = arith.constant 0 : index
    %2 = vector.load %arg7[%c0_3, %c0_4] : memref<8x32xf32, #tpu.memory_space<vmem>>, vector<8x32xf32>
    %c0_5 = arith.constant 0 : index
    %c0_6 = arith.constant 0 : index
    %c0_7 = arith.constant 0 : index
    %3 = vector.load %arg1[%c0_5, %c0_6, %c0_7] : memref<2x1x32xf32, #tpu.memory_space<vmem>>, vector<1x1x32xf32>
    %4 = vector.shape_cast %3 : vector<1x1x32xf32> to vector<1x32xf32>
    %5 = vector.broadcast %4 : vector<1x32xf32> to vector<8x32xf32>
    %6 = arith.mulf %2, %5 : vector<8x32xf32>
    %c0_8 = arith.constant 0 : index
    %c0_9 = arith.constant 0 : index
    %c0_10 = arith.constant 0 : index
    %7 = vector.load %arg2[%c0_8, %c0_9, %c0_10] : memref<2x1x32xf32, #tpu.memory_space<vmem>>, vector<1x1x32xf32>
    %8 = vector.shape_cast %7 : vector<1x1x32xf32> to vector<1x32xf32>
    %9 = vector.broadcast %8 : vector<1x32xf32> to vector<8x32xf32>
    %10 = arith.addf %6, %9 : vector<8x32xf32>
    %cst = arith.constant 0.000000e+00 : f32
    %11 = vector.broadcast %cst : f32 to vector<8x32xf32>
    %12 = arith.maximumf %10, %11 : vector<8x32xf32>
    %13 = arith.truncf %12 : vector<8x32xf32> to vector<8x32xbf16>
    %c0_11 = arith.constant 0 : index
    %c0_12 = arith.constant 0 : index
    %c0_13 = arith.constant 0 : index
    %14 = vector.load %arg3[%c0_11, %c0_12, %c0_13] : memref<2x32x16xbf16, #tpu.memory_space<vmem>>, vector<1x32x16xbf16>
    %15 = vector.shape_cast %14 : vector<1x32x16xbf16> to vector<32x16xbf16>
    %cst_14 = arith.constant dense<0.000000e+00> : vector<8x16xf32>
    %16 = tpu.matmul %13, %15, %cst_14 {dimension_numbers = #tpu.dot_dimension_numbers<[1], [0], [0], [1], [0, 0, 1, 1], [], []>} : vector<8x32xbf16>, vector<32x16xbf16>, vector<8x16xf32> -> vector<8x16xf32>
    %c0_15 = arith.constant 0 : index
    %c0_16 = arith.constant 0 : index
    %c0_17 = arith.constant 0 : index
    %17 = vector.load %arg4[%c0_15, %c0_16, %c0_17] : memref<2x1x16xf32, #tpu.memory_space<vmem>>, vector<1x1x16xf32>
    %18 = vector.shape_cast %17 : vector<1x1x16xf32> to vector<1x16xf32>
    %19 = vector.broadcast %18 : vector<1x16xf32> to vector<8x16xf32>
    %20 = arith.addf %16, %19 : vector<8x16xf32>
    %cst_18 = arith.constant 0.000000e+00 : f32
    %21 = vector.broadcast %cst_18 : f32 to vector<8x16xf32>
    %22 = arith.maximumf %20, %21 : vector<8x16xf32>
    %cst_19 = arith.constant 0.000000e+00 : f32
    %23 = vector.broadcast %cst_19 : f32 to vector<8x8xf32>
    %cst_20 = arith.constant 0.000000e+00 : f32
    %24 = vector.broadcast %cst_20 : f32 to vector<3x16xf32>
    %25 = vector.extract_strided_slice %22 {offsets = [0, 0], sizes = [5, 16], strides = [1, 1]} : vector<8x16xf32> to vector<5x16xf32>
    %26 = tpu.concatenate %24, %25 in 0 : vector<3x16xf32>, vector<5x16xf32> -> vector<8x16xf32>
    %c0_21 = arith.constant 0 : index
    %c0_22 = arith.constant 0 : index
    %c0_23 = arith.constant 0 : index
    %27 = vector.load %arg6[%c0_21, %c0_22, %c0_23] : memref<9x8x16xf32, #tpu.memory_space<vmem>>, vector<1x8x16xf32>
    %28 = vector.shape_cast %27 : vector<1x8x16xf32> to vector<8x16xf32>
    %29 = arith.mulf %26, %28 : vector<8x16xf32>
    %30 = arith.truncf %29 : vector<8x16xf32> to vector<8x16xbf16>
    %c0_24 = arith.constant 0 : index
    %c0_25 = arith.constant 0 : index
    %c0_26 = arith.constant 0 : index
    %31 = vector.load %arg5[%c0_24, %c0_25, %c0_26] : memref<18x16x8xbf16, #tpu.memory_space<vmem>>, vector<1x16x8xbf16>
    %32 = vector.shape_cast %31 : vector<1x16x8xbf16> to vector<16x8xbf16>
    %cst_27 = arith.constant dense<0.000000e+00> : vector<8x8xf32>
    %33 = tpu.matmul %30, %32, %cst_27 {dimension_numbers = #tpu.dot_dimension_numbers<[1], [0], [0], [1], [0, 0, 1, 1], [], []>} : vector<8x16xbf16>, vector<16x8xbf16>, vector<8x8xf32> -> vector<8x8xf32>
    %34 = arith.addf %23, %33 : vector<8x8xf32>
    %cst_28 = arith.constant 0.000000e+00 : f32
    %35 = vector.broadcast %cst_28 : f32 to vector<2x16xf32>
    %36 = vector.extract_strided_slice %22 {offsets = [0, 0], sizes = [6, 16], strides = [1, 1]} : vector<8x16xf32> to vector<6x16xf32>
    %37 = tpu.concatenate %35, %36 in 0 : vector<2x16xf32>, vector<6x16xf32> -> vector<8x16xf32>
    %c1 = arith.constant 1 : index
    %c0_29 = arith.constant 0 : index
    %c0_30 = arith.constant 0 : index
    %38 = vector.load %arg6[%c1, %c0_29, %c0_30] : memref<9x8x16xf32, #tpu.memory_space<vmem>>, vector<1x8x16xf32>
    %39 = vector.shape_cast %38 : vector<1x8x16xf32> to vector<8x16xf32>
    %40 = arith.mulf %37, %39 : vector<8x16xf32>
    %41 = arith.truncf %40 : vector<8x16xf32> to vector<8x16xbf16>
    %c1_31 = arith.constant 1 : index
    %c0_32 = arith.constant 0 : index
    %c0_33 = arith.constant 0 : index
    %42 = vector.load %arg5[%c1_31, %c0_32, %c0_33] : memref<18x16x8xbf16, #tpu.memory_space<vmem>>, vector<1x16x8xbf16>
    %43 = vector.shape_cast %42 : vector<1x16x8xbf16> to vector<16x8xbf16>
    %cst_34 = arith.constant dense<0.000000e+00> : vector<8x8xf32>
    %44 = tpu.matmul %41, %43, %cst_34 {dimension_numbers = #tpu.dot_dimension_numbers<[1], [0], [0], [1], [0, 0, 1, 1], [], []>} : vector<8x16xbf16>, vector<16x8xbf16>, vector<8x8xf32> -> vector<8x8xf32>
    %45 = arith.addf %34, %44 : vector<8x8xf32>
    %cst_35 = arith.constant 0.000000e+00 : f32
    %46 = vector.broadcast %cst_35 : f32 to vector<1x16xf32>
    %47 = vector.extract_strided_slice %22 {offsets = [0, 0], sizes = [7, 16], strides = [1, 1]} : vector<8x16xf32> to vector<7x16xf32>
    %48 = tpu.concatenate %46, %47 in 0 : vector<1x16xf32>, vector<7x16xf32> -> vector<8x16xf32>
    %c2 = arith.constant 2 : index
    %c0_36 = arith.constant 0 : index
    %c0_37 = arith.constant 0 : index
    %49 = vector.load %arg6[%c2, %c0_36, %c0_37] : memref<9x8x16xf32, #tpu.memory_space<vmem>>, vector<1x8x16xf32>
    %50 = vector.shape_cast %49 : vector<1x8x16xf32> to vector<8x16xf32>
    %51 = arith.mulf %48, %50 : vector<8x16xf32>
    %52 = arith.truncf %51 : vector<8x16xf32> to vector<8x16xbf16>
    %c2_38 = arith.constant 2 : index
    %c0_39 = arith.constant 0 : index
    %c0_40 = arith.constant 0 : index
    %53 = vector.load %arg5[%c2_38, %c0_39, %c0_40] : memref<18x16x8xbf16, #tpu.memory_space<vmem>>, vector<1x16x8xbf16>
    %54 = vector.shape_cast %53 : vector<1x16x8xbf16> to vector<16x8xbf16>
    %cst_41 = arith.constant dense<0.000000e+00> : vector<8x8xf32>
    %55 = tpu.matmul %52, %54, %cst_41 {dimension_numbers = #tpu.dot_dimension_numbers<[1], [0], [0], [1], [0, 0, 1, 1], [], []>} : vector<8x16xbf16>, vector<16x8xbf16>, vector<8x8xf32> -> vector<8x8xf32>
    %56 = arith.addf %45, %55 : vector<8x8xf32>
    %cst_42 = arith.constant 0.000000e+00 : f32
    %57 = vector.broadcast %cst_42 : f32 to vector<1x16xf32>
    %58 = vector.extract_strided_slice %22 {offsets = [0, 0], sizes = [7, 16], strides = [1, 1]} : vector<8x16xf32> to vector<7x16xf32>
    %59 = tpu.concatenate %57, %58 in 0 : vector<1x16xf32>, vector<7x16xf32> -> vector<8x16xf32>
    %c3 = arith.constant 3 : index
    %c0_43 = arith.constant 0 : index
    %c0_44 = arith.constant 0 : index
    %60 = vector.load %arg6[%c3, %c0_43, %c0_44] : memref<9x8x16xf32, #tpu.memory_space<vmem>>, vector<1x8x16xf32>
    %61 = vector.shape_cast %60 : vector<1x8x16xf32> to vector<8x16xf32>
    %62 = arith.mulf %59, %61 : vector<8x16xf32>
    %63 = arith.truncf %62 : vector<8x16xf32> to vector<8x16xbf16>
    %c3_45 = arith.constant 3 : index
    %c0_46 = arith.constant 0 : index
    %c0_47 = arith.constant 0 : index
    %64 = vector.load %arg5[%c3_45, %c0_46, %c0_47] : memref<18x16x8xbf16, #tpu.memory_space<vmem>>, vector<1x16x8xbf16>
    %65 = vector.shape_cast %64 : vector<1x16x8xbf16> to vector<16x8xbf16>
    %cst_48 = arith.constant dense<0.000000e+00> : vector<8x8xf32>
    %66 = tpu.matmul %63, %65, %cst_48 {dimension_numbers = #tpu.dot_dimension_numbers<[1], [0], [0], [1], [0, 0, 1, 1], [], []>} : vector<8x16xbf16>, vector<16x8xbf16>, vector<8x8xf32> -> vector<8x8xf32>
    %67 = arith.addf %56, %66 : vector<8x8xf32>
    %c4 = arith.constant 4 : index
    %c0_49 = arith.constant 0 : index
    %c0_50 = arith.constant 0 : index
    %68 = vector.load %arg6[%c4, %c0_49, %c0_50] : memref<9x8x16xf32, #tpu.memory_space<vmem>>, vector<1x8x16xf32>
    %69 = vector.shape_cast %68 : vector<1x8x16xf32> to vector<8x16xf32>
    %70 = arith.mulf %22, %69 : vector<8x16xf32>
    %71 = arith.truncf %70 : vector<8x16xf32> to vector<8x16xbf16>
    %c4_51 = arith.constant 4 : index
    %c0_52 = arith.constant 0 : index
    %c0_53 = arith.constant 0 : index
    %72 = vector.load %arg5[%c4_51, %c0_52, %c0_53] : memref<18x16x8xbf16, #tpu.memory_space<vmem>>, vector<1x16x8xbf16>
    %73 = vector.shape_cast %72 : vector<1x16x8xbf16> to vector<16x8xbf16>
    %cst_54 = arith.constant dense<0.000000e+00> : vector<8x8xf32>
    %74 = tpu.matmul %71, %73, %cst_54 {dimension_numbers = #tpu.dot_dimension_numbers<[1], [0], [0], [1], [0, 0, 1, 1], [], []>} : vector<8x16xbf16>, vector<16x8xbf16>, vector<8x8xf32> -> vector<8x8xf32>
    %75 = arith.addf %67, %74 : vector<8x8xf32>
    %cst_55 = arith.constant 0.000000e+00 : f32
    %76 = vector.broadcast %cst_55 : f32 to vector<1x16xf32>
    %77 = vector.extract_strided_slice %22 {offsets = [1, 0], sizes = [7, 16], strides = [1, 1]} : vector<8x16xf32> to vector<7x16xf32>
    %78 = tpu.concatenate %77, %76 in 0 : vector<7x16xf32>, vector<1x16xf32> -> vector<8x16xf32>
    %c5 = arith.constant 5 : index
    %c0_56 = arith.constant 0 : index
    %c0_57 = arith.constant 0 : index
    %79 = vector.load %arg6[%c5, %c0_56, %c0_57] : memref<9x8x16xf32, #tpu.memory_space<vmem>>, vector<1x8x16xf32>
    %80 = vector.shape_cast %79 : vector<1x8x16xf32> to vector<8x16xf32>
    %81 = arith.mulf %78, %80 : vector<8x16xf32>
    %82 = arith.truncf %81 : vector<8x16xf32> to vector<8x16xbf16>
    %c5_58 = arith.constant 5 : index
    %c0_59 = arith.constant 0 : index
    %c0_60 = arith.constant 0 : index
    %83 = vector.load %arg5[%c5_58, %c0_59, %c0_60] : memref<18x16x8xbf16, #tpu.memory_space<vmem>>, vector<1x16x8xbf16>
    %84 = vector.shape_cast %83 : vector<1x16x8xbf16> to vector<16x8xbf16>
    %cst_61 = arith.constant dense<0.000000e+00> : vector<8x8xf32>
    %85 = tpu.matmul %82, %84, %cst_61 {dimension_numbers = #tpu.dot_dimension_numbers<[1], [0], [0], [1], [0, 0, 1, 1], [], []>} : vector<8x16xbf16>, vector<16x8xbf16>, vector<8x8xf32> -> vector<8x8xf32>
    %86 = arith.addf %75, %85 : vector<8x8xf32>
    %cst_62 = arith.constant 0.000000e+00 : f32
    %87 = vector.broadcast %cst_62 : f32 to vector<1x16xf32>
    %88 = vector.extract_strided_slice %22 {offsets = [1, 0], sizes = [7, 16], strides = [1, 1]} : vector<8x16xf32> to vector<7x16xf32>
    %89 = tpu.concatenate %88, %87 in 0 : vector<7x16xf32>, vector<1x16xf32> -> vector<8x16xf32>
    %c6 = arith.constant 6 : index
    %c0_63 = arith.constant 0 : index
    %c0_64 = arith.constant 0 : index
    %90 = vector.load %arg6[%c6, %c0_63, %c0_64] : memref<9x8x16xf32, #tpu.memory_space<vmem>>, vector<1x8x16xf32>
    %91 = vector.shape_cast %90 : vector<1x8x16xf32> to vector<8x16xf32>
    %92 = arith.mulf %89, %91 : vector<8x16xf32>
    %93 = arith.truncf %92 : vector<8x16xf32> to vector<8x16xbf16>
    %c6_65 = arith.constant 6 : index
    %c0_66 = arith.constant 0 : index
    %c0_67 = arith.constant 0 : index
    %94 = vector.load %arg5[%c6_65, %c0_66, %c0_67] : memref<18x16x8xbf16, #tpu.memory_space<vmem>>, vector<1x16x8xbf16>
    %95 = vector.shape_cast %94 : vector<1x16x8xbf16> to vector<16x8xbf16>
    %cst_68 = arith.constant dense<0.000000e+00> : vector<8x8xf32>
    %96 = tpu.matmul %93, %95, %cst_68 {dimension_numbers = #tpu.dot_dimension_numbers<[1], [0], [0], [1], [0, 0, 1, 1], [], []>} : vector<8x16xbf16>, vector<16x8xbf16>, vector<8x8xf32> -> vector<8x8xf32>
    %97 = arith.addf %86, %96 : vector<8x8xf32>
    %cst_69 = arith.constant 0.000000e+00 : f32
    %98 = vector.broadcast %cst_69 : f32 to vector<2x16xf32>
    %99 = vector.extract_strided_slice %22 {offsets = [2, 0], sizes = [6, 16], strides = [1, 1]} : vector<8x16xf32> to vector<6x16xf32>
    %100 = tpu.concatenate %99, %98 in 0 : vector<6x16xf32>, vector<2x16xf32> -> vector<8x16xf32>
    %c7 = arith.constant 7 : index
    %c0_70 = arith.constant 0 : index
    %c0_71 = arith.constant 0 : index
    %101 = vector.load %arg6[%c7, %c0_70, %c0_71] : memref<9x8x16xf32, #tpu.memory_space<vmem>>, vector<1x8x16xf32>
    %102 = vector.shape_cast %101 : vector<1x8x16xf32> to vector<8x16xf32>
    %103 = arith.mulf %100, %102 : vector<8x16xf32>
    %104 = arith.truncf %103 : vector<8x16xf32> to vector<8x16xbf16>
    %c7_72 = arith.constant 7 : index
    %c0_73 = arith.constant 0 : index
    %c0_74 = arith.constant 0 : index
    %105 = vector.load %arg5[%c7_72, %c0_73, %c0_74] : memref<18x16x8xbf16, #tpu.memory_space<vmem>>, vector<1x16x8xbf16>
    %106 = vector.shape_cast %105 : vector<1x16x8xbf16> to vector<16x8xbf16>
    %cst_75 = arith.constant dense<0.000000e+00> : vector<8x8xf32>
    %107 = tpu.matmul %104, %106, %cst_75 {dimension_numbers = #tpu.dot_dimension_numbers<[1], [0], [0], [1], [0, 0, 1, 1], [], []>} : vector<8x16xbf16>, vector<16x8xbf16>, vector<8x8xf32> -> vector<8x8xf32>
    %108 = arith.addf %97, %107 : vector<8x8xf32>
    %cst_76 = arith.constant 0.000000e+00 : f32
    %109 = vector.broadcast %cst_76 : f32 to vector<3x16xf32>
    %110 = vector.extract_strided_slice %22 {offsets = [3, 0], sizes = [5, 16], strides = [1, 1]} : vector<8x16xf32> to vector<5x16xf32>
    %111 = tpu.concatenate %110, %109 in 0 : vector<5x16xf32>, vector<3x16xf32> -> vector<8x16xf32>
    %c8 = arith.constant 8 : index
    %c0_77 = arith.constant 0 : index
    %c0_78 = arith.constant 0 : index
    %112 = vector.load %arg6[%c8, %c0_77, %c0_78] : memref<9x8x16xf32, #tpu.memory_space<vmem>>, vector<1x8x16xf32>
    %113 = vector.shape_cast %112 : vector<1x8x16xf32> to vector<8x16xf32>
    %114 = arith.mulf %111, %113 : vector<8x16xf32>
    %115 = arith.truncf %114 : vector<8x16xf32> to vector<8x16xbf16>
    %c8_79 = arith.constant 8 : index
    %c0_80 = arith.constant 0 : index
    %c0_81 = arith.constant 0 : index
    %116 = vector.load %arg5[%c8_79, %c0_80, %c0_81] : memref<18x16x8xbf16, #tpu.memory_space<vmem>>, vector<1x16x8xbf16>
    %117 = vector.shape_cast %116 : vector<1x16x8xbf16> to vector<16x8xbf16>
    %cst_82 = arith.constant dense<0.000000e+00> : vector<8x8xf32>
    %118 = tpu.matmul %115, %117, %cst_82 {dimension_numbers = #tpu.dot_dimension_numbers<[1], [0], [0], [1], [0, 0, 1, 1], [], []>} : vector<8x16xbf16>, vector<16x8xbf16>, vector<8x8xf32> -> vector<8x8xf32>
    %119 = arith.addf %108, %118 : vector<8x8xf32>
    %c0_83 = arith.constant 0 : index
    %c16 = arith.constant 16 : index
    %120 = vector.load %arg7[%c0_83, %c16] : memref<8x32xf32, #tpu.memory_space<vmem>>, vector<8x8xf32>
    tpu.vector_store %arg7[%c0_83, %c16], %119 {strides = array<i32>} : memref<8x32xf32, #tpu.memory_space<vmem>>, vector<8x8xf32>,
    %c0_84 = arith.constant 0 : index
    %c0_85 = arith.constant 0 : index
    %121 = vector.load %arg7[%c0_84, %c0_85] : memref<8x32xf32, #tpu.memory_space<vmem>>, vector<8x32xf32>
    %c1_86 = arith.constant 1 : index
    %c0_87 = arith.constant 0 : index
    %c0_88 = arith.constant 0 : index
    %122 = vector.load %arg1[%c1_86, %c0_87, %c0_88] : memref<2x1x32xf32, #tpu.memory_space<vmem>>, vector<1x1x32xf32>
    %123 = vector.shape_cast %122 : vector<1x1x32xf32> to vector<1x32xf32>
    %124 = vector.broadcast %123 : vector<1x32xf32> to vector<8x32xf32>
    %125 = arith.mulf %121, %124 : vector<8x32xf32>
    %c1_89 = arith.constant 1 : index
    %c0_90 = arith.constant 0 : index
    %c0_91 = arith.constant 0 : index
    %126 = vector.load %arg2[%c1_89, %c0_90, %c0_91] : memref<2x1x32xf32, #tpu.memory_space<vmem>>, vector<1x1x32xf32>
    %127 = vector.shape_cast %126 : vector<1x1x32xf32> to vector<1x32xf32>
    %128 = vector.broadcast %127 : vector<1x32xf32> to vector<8x32xf32>
    %129 = arith.addf %125, %128 : vector<8x32xf32>
    %cst_92 = arith.constant 0.000000e+00 : f32
    %130 = vector.broadcast %cst_92 : f32 to vector<8x32xf32>
    %131 = arith.maximumf %129, %130 : vector<8x32xf32>
    %132 = arith.truncf %131 : vector<8x32xf32> to vector<8x32xbf16>
    %c1_93 = arith.constant 1 : index
    %c0_94 = arith.constant 0 : index
    %c0_95 = arith.constant 0 : index
    %133 = vector.load %arg3[%c1_93, %c0_94, %c0_95] : memref<2x32x16xbf16, #tpu.memory_space<vmem>>, vector<1x32x16xbf16>
    %134 = vector.shape_cast %133 : vector<1x32x16xbf16> to vector<32x16xbf16>
    %cst_96 = arith.constant dense<0.000000e+00> : vector<8x16xf32>
    %135 = tpu.matmul %132, %134, %cst_96 {dimension_numbers = #tpu.dot_dimension_numbers<[1], [0], [0], [1], [0, 0, 1, 1], [], []>} : vector<8x32xbf16>, vector<32x16xbf16>, vector<8x16xf32> -> vector<8x16xf32>
    %c1_97 = arith.constant 1 : index
    %c0_98 = arith.constant 0 : index
    %c0_99 = arith.constant 0 : index
    %136 = vector.load %arg4[%c1_97, %c0_98, %c0_99] : memref<2x1x16xf32, #tpu.memory_space<vmem>>, vector<1x1x16xf32>
    %137 = vector.shape_cast %136 : vector<1x1x16xf32> to vector<1x16xf32>
    %138 = vector.broadcast %137 : vector<1x16xf32> to vector<8x16xf32>
    %139 = arith.addf %135, %138 : vector<8x16xf32>
    %cst_100 = arith.constant 0.000000e+00 : f32
    %140 = vector.broadcast %cst_100 : f32 to vector<8x16xf32>
    %141 = arith.maximumf %139, %140 : vector<8x16xf32>
    %cst_101 = arith.constant 0.000000e+00 : f32
    %142 = vector.broadcast %cst_101 : f32 to vector<8x8xf32>
    %cst_102 = arith.constant 0.000000e+00 : f32
    %143 = vector.broadcast %cst_102 : f32 to vector<3x16xf32>
    %144 = vector.extract_strided_slice %141 {offsets = [0, 0], sizes = [5, 16], strides = [1, 1]} : vector<8x16xf32> to vector<5x16xf32>
    %145 = tpu.concatenate %143, %144 in 0 : vector<3x16xf32>, vector<5x16xf32> -> vector<8x16xf32>
    %c0_103 = arith.constant 0 : index
    %c0_104 = arith.constant 0 : index
    %c0_105 = arith.constant 0 : index
    %146 = vector.load %arg6[%c0_103, %c0_104, %c0_105] : memref<9x8x16xf32, #tpu.memory_space<vmem>>, vector<1x8x16xf32>
    %147 = vector.shape_cast %146 : vector<1x8x16xf32> to vector<8x16xf32>
    %148 = arith.mulf %145, %147 : vector<8x16xf32>
    %149 = arith.truncf %148 : vector<8x16xf32> to vector<8x16xbf16>
    %c9 = arith.constant 9 : index
    %c0_106 = arith.constant 0 : index
    %c0_107 = arith.constant 0 : index
    %150 = vector.load %arg5[%c9, %c0_106, %c0_107] : memref<18x16x8xbf16, #tpu.memory_space<vmem>>, vector<1x16x8xbf16>
    %151 = vector.shape_cast %150 : vector<1x16x8xbf16> to vector<16x8xbf16>
    %cst_108 = arith.constant dense<0.000000e+00> : vector<8x8xf32>
    %152 = tpu.matmul %149, %151, %cst_108 {dimension_numbers = #tpu.dot_dimension_numbers<[1], [0], [0], [1], [0, 0, 1, 1], [], []>} : vector<8x16xbf16>, vector<16x8xbf16>, vector<8x8xf32> -> vector<8x8xf32>
    %153 = arith.addf %142, %152 : vector<8x8xf32>
    %cst_109 = arith.constant 0.000000e+00 : f32
    %154 = vector.broadcast %cst_109 : f32 to vector<2x16xf32>
    %155 = vector.extract_strided_slice %141 {offsets = [0, 0], sizes = [6, 16], strides = [1, 1]} : vector<8x16xf32> to vector<6x16xf32>
    %156 = tpu.concatenate %154, %155 in 0 : vector<2x16xf32>, vector<6x16xf32> -> vector<8x16xf32>
    %c1_110 = arith.constant 1 : index
    %c0_111 = arith.constant 0 : index
    %c0_112 = arith.constant 0 : index
    %157 = vector.load %arg6[%c1_110, %c0_111, %c0_112] : memref<9x8x16xf32, #tpu.memory_space<vmem>>, vector<1x8x16xf32>
    %158 = vector.shape_cast %157 : vector<1x8x16xf32> to vector<8x16xf32>
    %159 = arith.mulf %156, %158 : vector<8x16xf32>
    %160 = arith.truncf %159 : vector<8x16xf32> to vector<8x16xbf16>
    %c10 = arith.constant 10 : index
    %c0_113 = arith.constant 0 : index
    %c0_114 = arith.constant 0 : index
    %161 = vector.load %arg5[%c10, %c0_113, %c0_114] : memref<18x16x8xbf16, #tpu.memory_space<vmem>>, vector<1x16x8xbf16>
    %162 = vector.shape_cast %161 : vector<1x16x8xbf16> to vector<16x8xbf16>
    %cst_115 = arith.constant dense<0.000000e+00> : vector<8x8xf32>
    %163 = tpu.matmul %160, %162, %cst_115 {dimension_numbers = #tpu.dot_dimension_numbers<[1], [0], [0], [1], [0, 0, 1, 1], [], []>} : vector<8x16xbf16>, vector<16x8xbf16>, vector<8x8xf32> -> vector<8x8xf32>
    %164 = arith.addf %153, %163 : vector<8x8xf32>
    %cst_116 = arith.constant 0.000000e+00 : f32
    %165 = vector.broadcast %cst_116 : f32 to vector<1x16xf32>
    %166 = vector.extract_strided_slice %141 {offsets = [0, 0], sizes = [7, 16], strides = [1, 1]} : vector<8x16xf32> to vector<7x16xf32>
    %167 = tpu.concatenate %165, %166 in 0 : vector<1x16xf32>, vector<7x16xf32> -> vector<8x16xf32>
    %c2_117 = arith.constant 2 : index
    %c0_118 = arith.constant 0 : index
    %c0_119 = arith.constant 0 : index
    %168 = vector.load %arg6[%c2_117, %c0_118, %c0_119] : memref<9x8x16xf32, #tpu.memory_space<vmem>>, vector<1x8x16xf32>
    %169 = vector.shape_cast %168 : vector<1x8x16xf32> to vector<8x16xf32>
    %170 = arith.mulf %167, %169 : vector<8x16xf32>
    %171 = arith.truncf %170 : vector<8x16xf32> to vector<8x16xbf16>
    %c11 = arith.constant 11 : index
    %c0_120 = arith.constant 0 : index
    %c0_121 = arith.constant 0 : index
    %172 = vector.load %arg5[%c11, %c0_120, %c0_121] : memref<18x16x8xbf16, #tpu.memory_space<vmem>>, vector<1x16x8xbf16>
    %173 = vector.shape_cast %172 : vector<1x16x8xbf16> to vector<16x8xbf16>
    %cst_122 = arith.constant dense<0.000000e+00> : vector<8x8xf32>
    %174 = tpu.matmul %171, %173, %cst_122 {dimension_numbers = #tpu.dot_dimension_numbers<[1], [0], [0], [1], [0, 0, 1, 1], [], []>} : vector<8x16xbf16>, vector<16x8xbf16>, vector<8x8xf32> -> vector<8x8xf32>
    %175 = arith.addf %164, %174 : vector<8x8xf32>
    %cst_123 = arith.constant 0.000000e+00 : f32
    %176 = vector.broadcast %cst_123 : f32 to vector<1x16xf32>
    %177 = vector.extract_strided_slice %141 {offsets = [0, 0], sizes = [7, 16], strides = [1, 1]} : vector<8x16xf32> to vector<7x16xf32>
    %178 = tpu.concatenate %176, %177 in 0 : vector<1x16xf32>, vector<7x16xf32> -> vector<8x16xf32>
    %c3_124 = arith.constant 3 : index
    %c0_125 = arith.constant 0 : index
    %c0_126 = arith.constant 0 : index
    %179 = vector.load %arg6[%c3_124, %c0_125, %c0_126] : memref<9x8x16xf32, #tpu.memory_space<vmem>>, vector<1x8x16xf32>
    %180 = vector.shape_cast %179 : vector<1x8x16xf32> to vector<8x16xf32>
    %181 = arith.mulf %178, %180 : vector<8x16xf32>
    %182 = arith.truncf %181 : vector<8x16xf32> to vector<8x16xbf16>
    %c12 = arith.constant 12 : index
    %c0_127 = arith.constant 0 : index
    %c0_128 = arith.constant 0 : index
    %183 = vector.load %arg5[%c12, %c0_127, %c0_128] : memref<18x16x8xbf16, #tpu.memory_space<vmem>>, vector<1x16x8xbf16>
    %184 = vector.shape_cast %183 : vector<1x16x8xbf16> to vector<16x8xbf16>
    %cst_129 = arith.constant dense<0.000000e+00> : vector<8x8xf32>
    %185 = tpu.matmul %182, %184, %cst_129 {dimension_numbers = #tpu.dot_dimension_numbers<[1], [0], [0], [1], [0, 0, 1, 1], [], []>} : vector<8x16xbf16>, vector<16x8xbf16>, vector<8x8xf32> -> vector<8x8xf32>
    %186 = arith.addf %175, %185 : vector<8x8xf32>
    %c4_130 = arith.constant 4 : index
    %c0_131 = arith.constant 0 : index
    %c0_132 = arith.constant 0 : index
    %187 = vector.load %arg6[%c4_130, %c0_131, %c0_132] : memref<9x8x16xf32, #tpu.memory_space<vmem>>, vector<1x8x16xf32>
    %188 = vector.shape_cast %187 : vector<1x8x16xf32> to vector<8x16xf32>
    %189 = arith.mulf %141, %188 : vector<8x16xf32>
    %190 = arith.truncf %189 : vector<8x16xf32> to vector<8x16xbf16>
    %c13 = arith.constant 13 : index
    %c0_133 = arith.constant 0 : index
    %c0_134 = arith.constant 0 : index
    %191 = vector.load %arg5[%c13, %c0_133, %c0_134] : memref<18x16x8xbf16, #tpu.memory_space<vmem>>, vector<1x16x8xbf16>
    %192 = vector.shape_cast %191 : vector<1x16x8xbf16> to vector<16x8xbf16>
    %cst_135 = arith.constant dense<0.000000e+00> : vector<8x8xf32>
    %193 = tpu.matmul %190, %192, %cst_135 {dimension_numbers = #tpu.dot_dimension_numbers<[1], [0], [0], [1], [0, 0, 1, 1], [], []>} : vector<8x16xbf16>, vector<16x8xbf16>, vector<8x8xf32> -> vector<8x8xf32>
    %194 = arith.addf %186, %193 : vector<8x8xf32>
    %cst_136 = arith.constant 0.000000e+00 : f32
    %195 = vector.broadcast %cst_136 : f32 to vector<1x16xf32>
    %196 = vector.extract_strided_slice %141 {offsets = [1, 0], sizes = [7, 16], strides = [1, 1]} : vector<8x16xf32> to vector<7x16xf32>
    %197 = tpu.concatenate %196, %195 in 0 : vector<7x16xf32>, vector<1x16xf32> -> vector<8x16xf32>
    %c5_137 = arith.constant 5 : index
    %c0_138 = arith.constant 0 : index
    %c0_139 = arith.constant 0 : index
    %198 = vector.load %arg6[%c5_137, %c0_138, %c0_139] : memref<9x8x16xf32, #tpu.memory_space<vmem>>, vector<1x8x16xf32>
    %199 = vector.shape_cast %198 : vector<1x8x16xf32> to vector<8x16xf32>
    %200 = arith.mulf %197, %199 : vector<8x16xf32>
    %201 = arith.truncf %200 : vector<8x16xf32> to vector<8x16xbf16>
    %c14 = arith.constant 14 : index
    %c0_140 = arith.constant 0 : index
    %c0_141 = arith.constant 0 : index
    %202 = vector.load %arg5[%c14, %c0_140, %c0_141] : memref<18x16x8xbf16, #tpu.memory_space<vmem>>, vector<1x16x8xbf16>
    %203 = vector.shape_cast %202 : vector<1x16x8xbf16> to vector<16x8xbf16>
    %cst_142 = arith.constant dense<0.000000e+00> : vector<8x8xf32>
    %204 = tpu.matmul %201, %203, %cst_142 {dimension_numbers = #tpu.dot_dimension_numbers<[1], [0], [0], [1], [0, 0, 1, 1], [], []>} : vector<8x16xbf16>, vector<16x8xbf16>, vector<8x8xf32> -> vector<8x8xf32>
    %205 = arith.addf %194, %204 : vector<8x8xf32>
    %cst_143 = arith.constant 0.000000e+00 : f32
    %206 = vector.broadcast %cst_143 : f32 to vector<1x16xf32>
    %207 = vector.extract_strided_slice %141 {offsets = [1, 0], sizes = [7, 16], strides = [1, 1]} : vector<8x16xf32> to vector<7x16xf32>
    %208 = tpu.concatenate %207, %206 in 0 : vector<7x16xf32>, vector<1x16xf32> -> vector<8x16xf32>
    %c6_144 = arith.constant 6 : index
    %c0_145 = arith.constant 0 : index
    %c0_146 = arith.constant 0 : index
    %209 = vector.load %arg6[%c6_144, %c0_145, %c0_146] : memref<9x8x16xf32, #tpu.memory_space<vmem>>, vector<1x8x16xf32>
    %210 = vector.shape_cast %209 : vector<1x8x16xf32> to vector<8x16xf32>
    %211 = arith.mulf %208, %210 : vector<8x16xf32>
    %212 = arith.truncf %211 : vector<8x16xf32> to vector<8x16xbf16>
    %c15 = arith.constant 15 : index
    %c0_147 = arith.constant 0 : index
    %c0_148 = arith.constant 0 : index
    %213 = vector.load %arg5[%c15, %c0_147, %c0_148] : memref<18x16x8xbf16, #tpu.memory_space<vmem>>, vector<1x16x8xbf16>
    %214 = vector.shape_cast %213 : vector<1x16x8xbf16> to vector<16x8xbf16>
    %cst_149 = arith.constant dense<0.000000e+00> : vector<8x8xf32>
    %215 = tpu.matmul %212, %214, %cst_149 {dimension_numbers = #tpu.dot_dimension_numbers<[1], [0], [0], [1], [0, 0, 1, 1], [], []>} : vector<8x16xbf16>, vector<16x8xbf16>, vector<8x8xf32> -> vector<8x8xf32>
    %216 = arith.addf %205, %215 : vector<8x8xf32>
    %cst_150 = arith.constant 0.000000e+00 : f32
    %217 = vector.broadcast %cst_150 : f32 to vector<2x16xf32>
    %218 = vector.extract_strided_slice %141 {offsets = [2, 0], sizes = [6, 16], strides = [1, 1]} : vector<8x16xf32> to vector<6x16xf32>
    %219 = tpu.concatenate %218, %217 in 0 : vector<6x16xf32>, vector<2x16xf32> -> vector<8x16xf32>
    %c7_151 = arith.constant 7 : index
    %c0_152 = arith.constant 0 : index
    %c0_153 = arith.constant 0 : index
    %220 = vector.load %arg6[%c7_151, %c0_152, %c0_153] : memref<9x8x16xf32, #tpu.memory_space<vmem>>, vector<1x8x16xf32>
    %221 = vector.shape_cast %220 : vector<1x8x16xf32> to vector<8x16xf32>
    %222 = arith.mulf %219, %221 : vector<8x16xf32>
    %223 = arith.truncf %222 : vector<8x16xf32> to vector<8x16xbf16>
    %c16_154 = arith.constant 16 : index
    %c0_155 = arith.constant 0 : index
    %c0_156 = arith.constant 0 : index
    %224 = vector.load %arg5[%c16_154, %c0_155, %c0_156] : memref<18x16x8xbf16, #tpu.memory_space<vmem>>, vector<1x16x8xbf16>
    %225 = vector.shape_cast %224 : vector<1x16x8xbf16> to vector<16x8xbf16>
    %cst_157 = arith.constant dense<0.000000e+00> : vector<8x8xf32>
    %226 = tpu.matmul %223, %225, %cst_157 {dimension_numbers = #tpu.dot_dimension_numbers<[1], [0], [0], [1], [0, 0, 1, 1], [], []>} : vector<8x16xbf16>, vector<16x8xbf16>, vector<8x8xf32> -> vector<8x8xf32>
    %227 = arith.addf %216, %226 : vector<8x8xf32>
    %cst_158 = arith.constant 0.000000e+00 : f32
    %228 = vector.broadcast %cst_158 : f32 to vector<3x16xf32>
    %229 = vector.extract_strided_slice %141 {offsets = [3, 0], sizes = [5, 16], strides = [1, 1]} : vector<8x16xf32> to vector<5x16xf32>
    %230 = tpu.concatenate %229, %228 in 0 : vector<5x16xf32>, vector<3x16xf32> -> vector<8x16xf32>
    %c8_159 = arith.constant 8 : index
    %c0_160 = arith.constant 0 : index
    %c0_161 = arith.constant 0 : index
    %231 = vector.load %arg6[%c8_159, %c0_160, %c0_161] : memref<9x8x16xf32, #tpu.memory_space<vmem>>, vector<1x8x16xf32>
    %232 = vector.shape_cast %231 : vector<1x8x16xf32> to vector<8x16xf32>
    %233 = arith.mulf %230, %232 : vector<8x16xf32>
    %234 = arith.truncf %233 : vector<8x16xf32> to vector<8x16xbf16>
    %c17 = arith.constant 17 : index
    %c0_162 = arith.constant 0 : index
    %c0_163 = arith.constant 0 : index
    %235 = vector.load %arg5[%c17, %c0_162, %c0_163] : memref<18x16x8xbf16, #tpu.memory_space<vmem>>, vector<1x16x8xbf16>
    %236 = vector.shape_cast %235 : vector<1x16x8xbf16> to vector<16x8xbf16>
    %cst_164 = arith.constant dense<0.000000e+00> : vector<8x8xf32>
    %237 = tpu.matmul %234, %236, %cst_164 {dimension_numbers = #tpu.dot_dimension_numbers<[1], [0], [0], [1], [0, 0, 1, 1], [], []>} : vector<8x16xbf16>, vector<16x8xbf16>, vector<8x8xf32> -> vector<8x8xf32>
    %238 = arith.addf %227, %237 : vector<8x8xf32>
    %c0_165 = arith.constant 0 : index
    %c24 = arith.constant 24 : index
    %239 = vector.load %arg7[%c0_165, %c24] : memref<8x32xf32, #tpu.memory_space<vmem>>, vector<8x8xf32>
    tpu.vector_store %arg7[%c0_165, %c24], %238 {strides = array<i32>} : memref<8x32xf32, #tpu.memory_space<vmem>>, vector<8x8xf32>,
    return
  }
}

module attributes {stable_mosaic.version = 11 : i64} {
  func.func @_head_kernel(%arg0: memref<8x32xf32, #tpu.memory_space<vmem>>, %arg1: memref<1x32xf32, #tpu.memory_space<vmem>>, %arg2: memref<1x32xf32, #tpu.memory_space<vmem>>, %arg3: memref<32x10xbf16, #tpu.memory_space<vmem>>, %arg4: memref<1x10xf32, #tpu.memory_space<vmem>>, %arg5: memref<2x10xf32, #tpu.memory_space<vmem>>) attributes {dimension_semantics = [], scalar_prefetch = 0 : i64, scratch_operands = 0 : i64, tpu.core_type = #tpu.core_type<tc>} {
    %c0 = arith.constant 0 : index
    %c0_0 = arith.constant 0 : index
    %0 = vector.load %arg0[%c0, %c0_0] : memref<8x32xf32, #tpu.memory_space<vmem>>, vector<8x32xf32>
    %c0_1 = arith.constant 0 : index
    %c0_2 = arith.constant 0 : index
    %1 = vector.load %arg1[%c0_1, %c0_2] : memref<1x32xf32, #tpu.memory_space<vmem>>, vector<1x32xf32>
    %2 = vector.broadcast %1 : vector<1x32xf32> to vector<8x32xf32>
    %3 = arith.mulf %0, %2 : vector<8x32xf32>
    %c0_3 = arith.constant 0 : index
    %c0_4 = arith.constant 0 : index
    %4 = vector.load %arg2[%c0_3, %c0_4] : memref<1x32xf32, #tpu.memory_space<vmem>>, vector<1x32xf32>
    %5 = vector.broadcast %4 : vector<1x32xf32> to vector<8x32xf32>
    %6 = arith.addf %3, %5 : vector<8x32xf32>
    %cst = arith.constant 0.000000e+00 : f32
    %7 = vector.broadcast %cst : f32 to vector<8x32xf32>
    %8 = arith.maximumf %6, %7 : vector<8x32xf32>
    %9 = vector.extract_strided_slice %8 {offsets = [0, 0], sizes = [4, 32], strides = [1, 1]} : vector<8x32xf32> to vector<4x32xf32>
    %cst_5 = arith.constant dense<0.000000e+00> : vector<32xf32>
    %10 = vector.multi_reduction <add>, %9, %cst_5 [0] : vector<4x32xf32> to vector<32xf32>
    %11 = vector.shape_cast %10 : vector<32xf32> to vector<1x32xf32>
    %cst_6 = arith.constant 4.000000e+00 : f32
    %12 = vector.broadcast %cst_6 : f32 to vector<1x32xf32>
    %13 = arith.divf %11, %12 : vector<1x32xf32>
    %14 = arith.truncf %13 : vector<1x32xf32> to vector<1x32xbf16>
    %c0_7 = arith.constant 0 : index
    %c0_8 = arith.constant 0 : index
    %15 = vector.load %arg3[%c0_7, %c0_8] : memref<32x10xbf16, #tpu.memory_space<vmem>>, vector<32x10xbf16>
    %cst_9 = arith.constant dense<0.000000e+00> : vector<1x10xf32>
    %16 = tpu.matmul %14, %15, %cst_9 {dimension_numbers = #tpu.dot_dimension_numbers<[1], [0], [0], [1], [0, 0, 1, 1], [], []>} : vector<1x32xbf16>, vector<32x10xbf16>, vector<1x10xf32> -> vector<1x10xf32>
    %c0_10 = arith.constant 0 : index
    %c0_11 = arith.constant 0 : index
    %17 = vector.load %arg4[%c0_10, %c0_11] : memref<1x10xf32, #tpu.memory_space<vmem>>, vector<1x10xf32>
    %18 = arith.addf %16, %17 : vector<1x10xf32>
    %c0_12 = arith.constant 0 : index
    %c0_13 = arith.constant 0 : index
    %19 = vector.load %arg5[%c0_12, %c0_13] : memref<2x10xf32, #tpu.memory_space<vmem>>, vector<1x10xf32>
    tpu.vector_store %arg5[%c0_12, %c0_13], %18 {strides = array<i32>} : memref<2x10xf32, #tpu.memory_space<vmem>>, vector<1x10xf32>,
    %20 = vector.extract_strided_slice %8 {offsets = [4, 0], sizes = [4, 32], strides = [1, 1]} : vector<8x32xf32> to vector<4x32xf32>
    %cst_14 = arith.constant dense<0.000000e+00> : vector<32xf32>
    %21 = vector.multi_reduction <add>, %20, %cst_14 [0] : vector<4x32xf32> to vector<32xf32>
    %22 = vector.shape_cast %21 : vector<32xf32> to vector<1x32xf32>
    %cst_15 = arith.constant 4.000000e+00 : f32
    %23 = vector.broadcast %cst_15 : f32 to vector<1x32xf32>
    %24 = arith.divf %22, %23 : vector<1x32xf32>
    %25 = arith.truncf %24 : vector<1x32xf32> to vector<1x32xbf16>
    %c0_16 = arith.constant 0 : index
    %c0_17 = arith.constant 0 : index
    %26 = vector.load %arg3[%c0_16, %c0_17] : memref<32x10xbf16, #tpu.memory_space<vmem>>, vector<32x10xbf16>
    %cst_18 = arith.constant dense<0.000000e+00> : vector<1x10xf32>
    %27 = tpu.matmul %25, %26, %cst_18 {dimension_numbers = #tpu.dot_dimension_numbers<[1], [0], [0], [1], [0, 0, 1, 1], [], []>} : vector<1x32xbf16>, vector<32x10xbf16>, vector<1x10xf32> -> vector<1x10xf32>
    %c0_19 = arith.constant 0 : index
    %c0_20 = arith.constant 0 : index
    %28 = vector.load %arg4[%c0_19, %c0_20] : memref<1x10xf32, #tpu.memory_space<vmem>>, vector<1x10xf32>
    %29 = arith.addf %27, %28 : vector<1x10xf32>
    %c1 = arith.constant 1 : index
    %c0_21 = arith.constant 0 : index
    %30 = vector.load %arg5[%c1, %c0_21] : memref<2x10xf32, #tpu.memory_space<vmem>>, vector<1x10xf32>
    tpu.vector_store %arg5[%c1, %c0_21], %29 {strides = array<i32>} : memref<2x10xf32, #tpu.memory_space<vmem>>, vector<1x10xf32>,
    return
  }
}

</mosaic_0001>

<llo_original>
// kernel: a_call__.7
$region0: #{a_call__.7}
  #allocation0 [shape = 'u32[]', space=smem, size = 0x4, offset = 0x4, fixed_abs, tag = 'smem constant byte address 0x4 - core index']
  #allocation1 [shape = 'u32[144,128]{1,0:T(1,128)}', space=vmem, size = 0x12000, scoped, tag = 'internal scratch']
  %s0 = inlined_call_operand.vmem [shape: f32[32,32], index: 0, kind: input, shape index: {}]
  %s1 = inlined_call_operand.vmem [shape: f32[1,32], index: 1, kind: input, shape index: {}]
  %s2 = inlined_call_operand.vmem [shape: f32[1,32], index: 2, kind: input, shape index: {}]
  %s3 = inlined_call_operand.vmem [shape: bf16[32,16], index: 3, kind: input, shape index: {}]
  %s4 = inlined_call_operand.vmem [shape: f32[32,16], index: 4, kind: output, shape index: {}]
  %s5 = sld [smem:[#allocation0]]
  $region26: #{a_call__.7} parent=0
    _
  %s7 = ssub.s32 1, %s5
  %s8 = scalar_select 0, %s7, %s5
  // Predicated region
  $region2: #{a_call__.7} parent=0 // pred_check
    _
  $region3: #{a_call__.7} parent=0 // pred_check_branch
    %10 = sbr.rel (0) target = $region5
  $region4: #{a_call__.7} parent=0 // pred_region
    _
  $region5: #{a_call__.7} parent=0 // pred_fallthru
    _
  // Predicated region
  $region6: #{a_call__.7} parent=0 // pred_check
    _
  $region7: #{a_call__.7} parent=0 // pred_check_branch
    %12 = sbr.rel (0) target = $region9
  $region8: #{a_call__.7} parent=0 // pred_region
    _
  $region9: #{a_call__.7} parent=0 // pred_fallthru
    _
  // Predicated region
  $region10: #{a_call__.7} parent=0 // pred_check
    _
  $region11: #{a_call__.7} parent=0 // pred_check_branch
    %14 = sbr.rel (0) target = $region13
  $region12: #{a_call__.7} parent=0 // pred_region
    _
  $region13: #{a_call__.7} parent=0 // pred_fallthru
    _
  // Predicated region
  $region14: #{a_call__.7} parent=0 // pred_check
    _
  $region15: #{a_call__.7} parent=0 // pred_check_branch
    %16 = sbr.rel (0) target = $region17
  $region16: #{a_call__.7} parent=0 // pred_region
    _
  $region17: #{a_call__.7} parent=0 // pred_fallthru
    _
  %v18 = vld [vmem:[%s0] sm:$0xff]
  %v19 = vld [vmem:[%s0 + $0x8] sm:$0xff]
  %v20 = vld [vmem:[%s0 + $0x10] sm:$0xff]
  %v21 = vld [vmem:[%s0 + $0x18] sm:$0xff]
  %v22 = vld [vmem:[%s1] sm:$0x1]
  %v24 = vlaneseq
  %v25 = vshrl.u32 %v24, 7
  %v26 = vsub.s32 0, %v25
  %v27 = vrot.slane %v22, %v26
  %v29 = vmul.f32 %v18, %v27
  %v30 = vmul.f32 %v19, %v27
  %v31 = vmul.f32 %v20, %v27
  %v32 = vmul.f32 %v21, %v27
  %v33 = vld [vmem:[%s2] sm:$0x1]
  %v35 = vlaneseq
  %v36 = vshrl.u32 %v35, 7
  %v37 = vsub.s32 0, %v36
  %v38 = vrot.slane %v33, %v37
  %v40 = vadd.f32 %v29, %v38
  %v41 = vadd.f32 %v30, %v38
  %v42 = vadd.f32 %v31, %v38
  %v43 = vadd.f32 %v32, %v38
  %v44 = vmax.f32 %v40, 0.0
  %v45 = vmax.f32 %v41, 0.0
  %v46 = vmax.f32 %v42, 0.0
  %v47 = vmax.f32 %v43, 0.0
  %vm52 = vcmask 1046528
  %v53 = vrot.slane %v44, 1
  %v54 = vrot.slane %v45, 1
  %v55 = vsel %vm52, %v53, %v54
  %v56 = vrot.slane %v46, 1
  %v57 = vsel %vm52, %v54, %v56
  %v58 = vrot.slane %v47, 1
  %v59 = vsel %vm52, %v56, %v58
  %v64 = vsel %vm52, %v58, 0.0
  %v65 = vadd.f32 %v44, %v55
  %v66 = vadd.f32 %v45, %v57
  %v67 = vadd.f32 %v46, %v59
  %v68 = vadd.f32 %v47, %v64
  %vm69 = vcmask 1043456
  %v70 = vrot.slane %v44, 4
  %v71 = vrot.slane %v45, 4
  %v72 = vsel %vm69, %v70, %v71
  %v73 = vrot.slane %v46, 4
  %v74 = vsel %vm69, %v71, %v73
  %v75 = vrot.slane %v47, 4
  %v76 = vsel %vm69, %v73, %v75
  %v81 = vsel %vm69, %v75, 0.0
  %v82 = vadd.f32 %v65, %v72
  %v83 = vadd.f32 %v66, %v74
  %v84 = vadd.f32 %v67, %v76
  %v85 = vadd.f32 %v68, %v81
  %vm86 = vcmask 1042432
  %v87 = vrot.slane %v44, 5
  %v88 = vrot.slane %v45, 5
  %v89 = vsel %vm86, %v87, %v88
  %v90 = vrot.slane %v46, 5
  %v91 = vsel %vm86, %v88, %v90
  %v92 = vrot.slane %v47, 5
  %v93 = vsel %vm86, %v90, %v92
  %v98 = vsel %vm86, %v92, 0.0
  %v99 = vadd.f32 %v82, %v89
  %v100 = vadd.f32 %v83, %v91
  %v101 = vadd.f32 %v84, %v93
  %v102 = vadd.f32 %v85, %v98
  %v103 = vmul.f32 %v99, 0.25
  %v104 = vmul.f32 %v100, 0.25
  %v105 = vmul.f32 %v101, 0.25
  %v106 = vmul.f32 %v102, 0.25
  %v107 = vpack.c.bf16 %v104, %v103
  %v108 = vpack.c.bf16 %v106, %v105
  %v109 = vld [vmem:[%s3] sm:$0xf]
  %v110 = vld [vmem:[%s3 + $0x4] sm:$0xf]
  %v111 = vld [vmem:[%s3 + $0x8] sm:$0xf]
  %v112 = vld [vmem:[%s3 + $0xc] sm:$0xf]
  %v117 = vunpack.c.l.b16 %v109
  %v118 = vunpack.c.l.b16 %v110
  %v119 = vunpack.c.l.b16 %v111
  %v120 = vunpack.c.l.b16 %v112
  %v121 = vpack.c.b16 %v118, %v117
  %v122 = vpack.c.b16 %v120, %v119
  %vm125 = vcmask 261120
  %v127 = vsel %vm125, %v107, 0
  %v130 = vsel %vm125, %v108, 0
  %132 = vmatprep.subr.bf16.mxu0 0
  %133 = vmatpush1.bf16.msra.mxu0 0
  %134 = vmatprep.subr.bf16.mxu0 0
  %135 = vmatpush1.bf16.msra.mxu0 0
  %136 = vmatprep.subr.bf16.mxu0 0
  %137 = vmatpush1.bf16.msra.mxu0 0
  %138 = vmatprep.subr.bf16.mxu0 0
  %139 = vmatpush1.bf16.msra.mxu0 0
  %140 = vmatprep.subr.bf16.mxu0 0
  %141 = vmatpush1.bf16.msra.mxu0 0
  %142 = vmatprep.subr.bf16.mxu0 0
  %143 = vmatpush1.bf16.msra.mxu0 0
  %144 = vmatprep.subr.bf16.mxu0 0
  %145 = vmatpush1.bf16.msra.mxu0 %v122
  %146 = vmatprep.subr.bf16.mxu0 0
  %147 = vmatpush1.bf16.msra.mxu0 %v121
  %148 = vmatprep.subr.bf16.mxu0 0
  %149 = vmatpush2.bf16.msra.mxu0 0
  %150 = vmatprep.subr.bf16.mxu0 0
  %151 = vmatpush2.bf16.msra.mxu0 0
  %152 = vmatprep.subr.bf16.mxu0 0
  %153 = vmatpush2.bf16.msra.mxu0 0
  %154 = vmatprep.subr.bf16.mxu0 0
  %155 = vmatpush2.bf16.msra.mxu0 0
  %156 = vmatprep.subr.bf16.mxu0 0
  %157 = vmatpush2.bf16.msra.mxu0 0
  %158 = vmatprep.subr.bf16.mxu0 0
  %159 = vmatpush2.bf16.msra.mxu0 0
  %160 = vmatprep.subr.bf16.mxu0 0
  %161 = vmatpush2.bf16.msra.mxu0 0
  %162 = vmatprep.subr.bf16.mxu0 0
  %163 = vmatpush2.bf16.msra.mxu0 0
  %164 = vmatprep.mubr.bf16.mxu0 0
  %165 = vmatmul.mubr.bf16.gmra.mxu0 %v127
  %v166 = vpop.f32.mrf.mxu0
  %v167 = vadd.f32 0.0, %v166
  %v168 = vpop.f32.mrf.mxu0
  %v169 = vpop.f32.mrf.mxu0
  %v170 = vadd.f32 0.0, %v169
  %v171 = vpop.f32.mrf.mxu0
  %172 = vmatprep.mubr.bf16.mxu0 0
  %173 = vmatmul.mubr.bf16.gmra.mxu0 %v130
  %v174 = vpop.f32.mrf.mxu0
  %v175 = vadd.f32 0.0, %v174
  %v176 = vpop.f32.mrf.mxu0
  %v177 = vpop.f32.mrf.mxu0
  %v178 = vadd.f32 0.0, %v177
  %v179 = vpop.f32.mrf.mxu0
  %180 = vdwg.mxu0
  %vm181 = vcmask 130048
  %182 = vst.msk [vmem:[%s4] sm:$0xff] %vm181, %v167
  %183 = vst.msk [vmem:[%s4 + $0x8] sm:$0xff] %vm181, %v170
  %184 = vst.msk [vmem:[%s4 + $0x10] sm:$0xff] %vm181, %v175
  %185 = vst.msk [vmem:[%s4 + $0x18] sm:$0xff] %vm181, %v178
  // Predicated region
  $region18: #{a_call__.7} parent=0 // pred_check
    _
  $region19: #{a_call__.7} parent=0 // pred_check_branch
    %187 = sbr.rel (0) target = $region21
  $region20: #{a_call__.7} parent=0 // pred_region
    _
  $region21: #{a_call__.7} parent=0 // pred_fallthru
    _
  // Predicated region
  $region22: #{a_call__.7} parent=0 // pred_check
    _
  $region23: #{a_call__.7} parent=0 // pred_check_branch
    %189 = sbr.rel (0) target = $region25
  $region24: #{a_call__.7} parent=0 // pred_region
    _
  $region25: #{a_call__.7} parent=0 // pred_fallthru
    _

// kernel: a_call__.5
$region0: #{a_call__.5}
  #allocation0 [shape = 'u32[]', space=smem, size = 0x4, offset = 0x4, fixed_abs, tag = 'smem constant byte address 0x4 - core index']
  #allocation1 [shape = 'u32[144,128]{1,0:T(1,128)}', space=vmem, size = 0x12000, scoped, tag = 'internal scratch']
  %s0 = inlined_call_operand.vmem [shape: bf16[128,147], index: 0, kind: input, shape index: {}]
  %s1 = inlined_call_operand.vmem [shape: bf16[147,16], index: 1, kind: input, shape index: {}]
  %s2 = inlined_call_operand.vmem [shape: f32[1,16], index: 2, kind: input, shape index: {}]
  %s3 = inlined_call_operand.vmem [shape: f32[9,128,16], index: 3, kind: input, shape index: {}]
  %s4 = inlined_call_operand.vmem [shape: f32[128,16], index: 4, kind: output, shape index: {}]
  %s5 = sld [smem:[#allocation0]]
  $region26: #{a_call__.5} parent=0
    _
  %s7 = ssub.s32 1, %s5
  %s8 = scalar_select 0, %s7, %s5
  // Predicated region
  $region2: #{a_call__.5} parent=0 // pred_check
    _
  $region3: #{a_call__.5} parent=0 // pred_check_branch
    %10 = sbr.rel (0) target = $region5
  $region4: #{a_call__.5} parent=0 // pred_region
    _
  $region5: #{a_call__.5} parent=0 // pred_fallthru
    _
  // Predicated region
  $region6: #{a_call__.5} parent=0 // pred_check
    _
  $region7: #{a_call__.5} parent=0 // pred_check_branch
    %12 = sbr.rel (0) target = $region9
  $region8: #{a_call__.5} parent=0 // pred_region
    _
  $region9: #{a_call__.5} parent=0 // pred_fallthru
    _
  // Predicated region
  $region10: #{a_call__.5} parent=0 // pred_check
    _
  $region11: #{a_call__.5} parent=0 // pred_check_branch
    %14 = sbr.rel (0) target = $region13
  $region12: #{a_call__.5} parent=0 // pred_region
    _
  $region13: #{a_call__.5} parent=0 // pred_fallthru
    _
  // Predicated region
  $region14: #{a_call__.5} parent=0 // pred_check
    _
  $region15: #{a_call__.5} parent=0 // pred_check_branch
    %16 = sbr.rel (0) target = $region17
  $region16: #{a_call__.5} parent=0 // pred_region
    _
  $region17: #{a_call__.5} parent=0 // pred_fallthru
    _
  %v18 = vld [vmem:[%s0] sm:$0xff]
  %v19 = vld [vmem:[%s0 + $0x8] sm:$0xff]
  %v20 = vld [vmem:[%s0 + $0x10] sm:$0xff]
  %v21 = vld [vmem:[%s0 + $0x18] sm:$0xff]
  %v22 = vld [vmem:[%s0 + $0x20] sm:$0xff]
  %v23 = vld [vmem:[%s0 + $0x28] sm:$0xff]
  %v24 = vld [vmem:[%s0 + $0x30] sm:$0xff]
  %v25 = vld [vmem:[%s0 + $0x38] sm:$0xff]
  %v26 = vld [vmem:[%s0 + $0x40] sm:$0xff]
  %v27 = vld [vmem:[%s0 + $0x48] sm:$0xff]
  %v28 = vld [vmem:[%s0 + $0x50] sm:$0xff]
  %v29 = vld [vmem:[%s0 + $0x58] sm:$0xff]
  %v30 = vld [vmem:[%s0 + $0x60] sm:$0xff]
  %v31 = vld [vmem:[%s0 + $0x68] sm:$0xff]
  %v32 = vld [vmem:[%s0 + $0x70] sm:$0xff]
  %v33 = vld [vmem:[%s0 + $0x78] sm:$0xff]
  %v34 = vld [vmem:[%s1] sm:$0xf]
  %v35 = vld [vmem:[%s1 + $0x4] sm:$0xf]
  %v36 = vld [vmem:[%s1 + $0x8] sm:$0xf]
  %v37 = vld [vmem:[%s1 + $0xc] sm:$0xf]
  %v38 = vld [vmem:[%s1 + $0x10] sm:$0xf]
  %v39 = vld [vmem:[%s1 + $0x14] sm:$0xf]
  %v40 = vld [vmem:[%s1 + $0x18] sm:$0xf]
  %v41 = vld [vmem:[%s1 + $0x1c] sm:$0xf]
  %v42 = vld [vmem:[%s1 + $0x20] sm:$0xf]
  %v43 = vld [vmem:[%s1 + $0x24] sm:$0xf]
  %v44 = vld [vmem:[%s1 + $0x28] sm:$0xf]
  %v45 = vld [vmem:[%s1 + $0x2c] sm:$0xf]
  %v46 = vld [vmem:[%s1 + $0x30] sm:$0xf]
  %v47 = vld [vmem:[%s1 + $0x34] sm:$0xf]
  %v48 = vld [vmem:[%s1 + $0x38] sm:$0xf]
  %v49 = vld [vmem:[%s1 + $0x3c] sm:$0xf]
  %v50 = vld [vmem:[%s1 + $0x40] sm:$0xf]
  %v51 = vld [vmem:[%s1 + $0x44] sm:$0xf]
  %v52 = vld [vmem:[%s1 + $0x48] sm:$0x3]
  %v53 = vld [vmem:[%s2] sm:$0x1]
  %v55 = vlaneseq
  %v56 = vshrl.u32 %v55, 7
  %v57 = vsub.s32 0, %v56
  %v58 = vrot.slane %v53, %v57
  %v76 = vunpack.c.l.b16 %v18
  %v77 = vunpack.c.h.b16 %v18
  %v78 = vunpack.c.l.b16 %v19
  %v79 = vunpack.c.h.b16 %v19
  %v80 = vunpack.c.l.b16 %v20
  %v81 = vunpack.c.h.b16 %v20
  %v82 = vunpack.c.l.b16 %v21
  %v83 = vunpack.c.h.b16 %v21
  %v84 = vunpack.c.l.b16 %v22
  %v85 = vunpack.c.h.b16 %v22
  %v86 = vunpack.c.l.b16 %v23
  %v87 = vunpack.c.h.b16 %v23
  %v88 = vunpack.c.l.b16 %v24
  %v89 = vunpack.c.h.b16 %v24
  %v90 = vunpack.c.l.b16 %v25
  %v91 = vunpack.c.h.b16 %v25
  %v92 = vunpack.c.l.b16 %v26
  %v93 = vunpack.c.h.b16 %v26
  %v94 = vunpack.c.l.b16 %v27
  %v95 = vunpack.c.h.b16 %v27
  %v96 = vunpack.c.l.b16 %v28
  %v97 = vunpack.c.h.b16 %v28
  %v98 = vunpack.c.l.b16 %v29
  %v99 = vunpack.c.h.b16 %v29
  %v100 = vunpack.c.l.b16 %v30
  %v101 = vunpack.c.h.b16 %v30
  %v102 = vunpack.c.l.b16 %v31
  %v103 = vunpack.c.h.b16 %v31
  %v104 = vunpack.c.l.b16 %v32
  %v105 = vunpack.c.h.b16 %v32
  %v106 = vunpack.c.l.b16 %v33
  %v107 = vunpack.c.h.b16 %v33
  %v108 = vpack.c.b16 %v78, %v76
  %v109 = vpack.c.b16 %v79, %v77
  %v110 = vpack.c.b16 %v82, %v80
  %v111 = vpack.c.b16 %v83, %v81
  %v112 = vpack.c.b16 %v86, %v84
  %v113 = vpack.c.b16 %v87, %v85
  %v114 = vpack.c.b16 %v90, %v88
  %v115 = vpack.c.b16 %v91, %v89
  %v116 = vpack.c.b16 %v94, %v92
  %v117 = vpack.c.b16 %v95, %v93
  %v118 = vpack.c.b16 %v98, %v96
  %v119 = vpack.c.b16 %v99, %v97
  %v120 = vpack.c.b16 %v102, %v100
  %v121 = vpack.c.b16 %v103, %v101
  %v122 = vpack.c.b16 %v106, %v104
  %v123 = vpack.c.b16 %v107, %v105
  %v151 = vunpack.c.l.b16 %v34
  %v152 = vunpack.c.l.b16 %v35
  %v153 = vunpack.c.l.b16 %v36
  %v154 = vunpack.c.l.b16 %v37
  %v155 = vunpack.c.l.b16 %v38
  %v156 = vunpack.c.l.b16 %v39
  %v157 = vunpack.c.l.b16 %v40
  %v158 = vunpack.c.l.b16 %v41
  %v159 = vunpack.c.l.b16 %v42
  %v160 = vunpack.c.l.b16 %v43
  %v161 = vunpack.c.l.b16 %v44
  %v162 = vunpack.c.l.b16 %v45
  %v163 = vunpack.c.l.b16 %v46
  %v164 = vunpack.c.l.b16 %v47
  %v165 = vunpack.c.l.b16 %v48
  %v166 = vunpack.c.l.b16 %v49
  %v167 = vunpack.c.l.b16 %v50
  %v168 = vunpack.c.l.b16 %v51
  %v169 = vunpack.c.l.b16 %v52
  %v170 = vpack.c.b16 %v152, %v151
  %v171 = vpack.c.b16 %v154, %v153
  %v172 = vpack.c.b16 %v156, %v155
  %v173 = vpack.c.b16 %v158, %v157
  %v174 = vpack.c.b16 %v160, %v159
  %v175 = vpack.c.b16 %v162, %v161
  %v176 = vpack.c.b16 %v164, %v163
  %v177 = vpack.c.b16 %v166, %v165
  %v178 = vpack.c.b16 %v168, %v167
  %v179 = vpack.c.b16 %v169, %v169
  %vm189 = vcmask 154624
  %v191 = vsel %vm189, %v109, 0
  %v194 = vsel %vm189, %v111, 0
  %v197 = vsel %vm189, %v113, 0
  %v200 = vsel %vm189, %v115, 0
  %v203 = vsel %vm189, %v117, 0
  %v206 = vsel %vm189, %v119, 0
  %v209 = vsel %vm189, %v121, 0
  %v212 = vsel %vm189, %v123, 0
  %vm214 = vcmask 1040384
  %vm215 = vcmask 1041408
  %v216 = vsel %vm214, 4294967295, 65535
  %v217 = vsel %vm215, %v216, 0
  %v219 = vand.u32 %v179, %v217
  %221 = vmatprep.subr.bf16.mxu0 0
  %222 = vmatpush1.bf16.msra.mxu0 %v177
  %223 = vmatprep.subr.bf16.mxu0 0
  %224 = vmatpush1.bf16.msra.mxu0 %v176
  %225 = vmatprep.subr.bf16.mxu0 0
  %226 = vmatpush1.bf16.msra.mxu0 %v175
  %227 = vmatprep.subr.bf16.mxu0 0
  %228 = vmatpush1.bf16.msra.mxu0 %v174
  %229 = vmatprep.subr.bf16.mxu0 0
  %230 = vmatpush1.bf16.msra.mxu0 %v173
  %231 = vmatprep.subr.bf16.mxu0 0
  %232 = vmatpush1.bf16.msra.mxu0 %v172
  %233 = vmatprep.subr.bf16.mxu0 0
  %234 = vmatpush1.bf16.msra.mxu0 %v171
  %235 = vmatprep.subr.bf16.mxu0 0
  %236 = vmatpush1.bf16.msra.mxu0 %v170
  %237 = vmatprep.subr.bf16.mxu0 0
  %238 = vmatpush2.bf16.msra.mxu0 0
  %239 = vmatprep.subr.bf16.mxu0 0
  %240 = vmatpush2.bf16.msra.mxu0 0
  %241 = vmatprep.subr.bf16.mxu0 0
  %242 = vmatpush2.bf16.msra.mxu0 0
  %243 = vmatprep.subr.bf16.mxu0 0
  %244 = vmatpush2.bf16.msra.mxu0 0
  %245 = vmatprep.subr.bf16.mxu0 0
  %246 = vmatpush2.bf16.msra.mxu0 0
  %247 = vmatprep.subr.bf16.mxu0 0
  %248 = vmatpush2.bf16.msra.mxu0 0
  %249 = vmatprep.subr.bf16.mxu0 0
  %250 = vmatpush2.bf16.msra.mxu0 %v219
  %251 = vmatprep.subr.bf16.mxu0 0
  %252 = vmatpush2.bf16.msra.mxu0 %v178
  %253 = vmatprep.mubr.bf16.mxu0 %v191
  %254 = vmatmul.mubr.bf16.gmra.mxu0 %v108
  %v255 = vpop.f32.mrf.mxu0
  %v256 = vadd.f32 %v58, %v255
  %v257 = vpop.f32.mrf.mxu0
  %v258 = vpop.f32.mrf.mxu0
  %v259 = vadd.f32 %v58, %v258
  %v260 = vpop.f32.mrf.mxu0
  %261 = vmatprep.mubr.bf16.mxu0 %v194
  %262 = vmatmul.mubr.bf16.gmra.mxu0 %v110
  %v263 = vpop.f32.mrf.mxu0
  %v264 = vadd.f32 %v58, %v263
  %v265 = vpop.f32.mrf.mxu0
  %v266 = vpop.f32.mrf.mxu0
  %v267 = vadd.f32 %v58, %v266
  %v268 = vpop.f32.mrf.mxu0
  %269 = vmatprep.mubr.bf16.mxu0 %v197
  %270 = vmatmul.mubr.bf16.gmra.mxu0 %v112
  %v271 = vpop.f32.mrf.mxu0
  %v272 = vadd.f32 %v58, %v271
  %v273 = vpop.f32.mrf.mxu0
  %v274 = vpop.f32.mrf.mxu0
  %v275 = vadd.f32 %v58, %v274
  %v276 = vpop.f32.mrf.mxu0
  %277 = vmatprep.mubr.bf16.mxu0 %v200
  %278 = vmatmul.mubr.bf16.gmra.mxu0 %v114
  %v279 = vpop.f32.mrf.mxu0
  %v280 = vadd.f32 %v58, %v279
  %v281 = vpop.f32.mrf.mxu0
  %v282 = vpop.f32.mrf.mxu0
  %v283 = vadd.f32 %v58, %v282
  %v284 = vpop.f32.mrf.mxu0
  %285 = vmatprep.mubr.bf16.mxu0 %v203
  %286 = vmatmul.mubr.bf16.gmra.mxu0 %v116
  %v287 = vpop.f32.mrf.mxu0
  %v288 = vadd.f32 %v58, %v287
  %v289 = vpop.f32.mrf.mxu0
  %v290 = vpop.f32.mrf.mxu0
  %v291 = vadd.f32 %v58, %v290
  %v292 = vpop.f32.mrf.mxu0
  %293 = vmatprep.mubr.bf16.mxu0 %v206
  %294 = vmatmul.mubr.bf16.gmra.mxu0 %v118
  %v295 = vpop.f32.mrf.mxu0
  %v296 = vadd.f32 %v58, %v295
  %v297 = vpop.f32.mrf.mxu0
  %v298 = vpop.f32.mrf.mxu0
  %v299 = vadd.f32 %v58, %v298
  %v300 = vpop.f32.mrf.mxu0
  %301 = vmatprep.mubr.bf16.mxu0 %v209
  %302 = vmatmul.mubr.bf16.gmra.mxu0 %v120
  %v303 = vpop.f32.mrf.mxu0
  %v304 = vadd.f32 %v58, %v303
  %v305 = vpop.f32.mrf.mxu0
  %v306 = vpop.f32.mrf.mxu0
  %v307 = vadd.f32 %v58, %v306
  %v308 = vpop.f32.mrf.mxu0
  %309 = vmatprep.mubr.bf16.mxu0 %v212
  %310 = vmatmul.mubr.bf16.gmra.mxu0 %v122
  %v311 = vpop.f32.mrf.mxu0
  %v312 = vadd.f32 %v58, %v311
  %v313 = vpop.f32.mrf.mxu0
  %v314 = vpop.f32.mrf.mxu0
  %v315 = vadd.f32 %v58, %v314
  %v316 = vpop.f32.mrf.mxu0
  %317 = vdwg.mxu0
  %v318 = vmax.f32 %v256, 0.0
  %v319 = vmax.f32 %v259, 0.0
  %v320 = vmax.f32 %v264, 0.0
  %v321 = vmax.f32 %v267, 0.0
  %v322 = vmax.f32 %v272, 0.0
  %v323 = vmax.f32 %v275, 0.0
  %v324 = vmax.f32 %v280, 0.0
  %v325 = vmax.f32 %v283, 0.0
  %v326 = vmax.f32 %v288, 0.0
  %v327 = vmax.f32 %v291, 0.0
  %v328 = vmax.f32 %v296, 0.0
  %v329 = vmax.f32 %v299, 0.0
  %v330 = vmax.f32 %v304, 0.0
  %v331 = vmax.f32 %v307, 0.0
  %v332 = vmax.f32 %v312, 0.0
  %v333 = vmax.f32 %v315, 0.0
  %v349 = vrot.slane %v318, 7
  %v350 = vrot.slane %v319, 7
  %v351 = vsel %vm214, %v349, %v350
  %v352 = vrot.slane %v320, 7
  %v353 = vsel %vm214, %v350, %v352
  %v354 = vrot.slane %v321, 7
  %v355 = vsel %vm214, %v352, %v354
  %v356 = vrot.slane %v322, 7
  %v357 = vsel %vm214, %v354, %v356
  %v358 = vrot.slane %v323, 7
  %v359 = vsel %vm214, %v356, %v358
  %v360 = vrot.slane %v324, 7
  %v361 = vsel %vm214, %v358, %v360
  %v362 = vrot.slane %v325, 7
  %v363 = vsel %vm214, %v360, %v362
  %v364 = vrot.slane %v326, 7
  %v365 = vsel %vm214, %v362, %v364
  %v366 = vrot.slane %v327, 7
  %v367 = vsel %vm214, %v364, %v366
  %v368 = vrot.slane %v328, 7
  %v369 = vsel %vm214, %v366, %v368
  %v370 = vrot.slane %v329, 7
  %v371 = vsel %vm214, %v368, %v370
  %v372 = vrot.slane %v330, 7
  %v373 = vsel %vm214, %v370, %v372
  %v374 = vrot.slane %v331, 7
  %v375 = vsel %vm214, %v372, %v374
  %v376 = vrot.slane %v332, 7
  %v377 = vsel %vm214, %v374, %v376
  %v393 = vsel %vm214, 0.0, %v349
  %v394 = vld [vmem:[%s3] sm:$0xff]
  %v395 = vld [vmem:[%s3 + $0x8] sm:$0xff]
  %v396 = vld [vmem:[%s3 + $0x10] sm:$0xff]
  %v397 = vld [vmem:[%s3 + $0x18] sm:$0xff]
  %v398 = vld [vmem:[%s3 + $0x20] sm:$0xff]
  %v399 = vld [vmem:[%s3 + $0x28] sm:$0xff]
  %v400 = vld [vmem:[%s3 + $0x30] sm:$0xff]
  %v401 = vld [vmem:[%s3 + $0x38] sm:$0xff]
  %v402 = vld [vmem:[%s3 + $0x40] sm:$0xff]
  %v403 = vld [vmem:[%s3 + $0x48] sm:$0xff]
  %v404 = vld [vmem:[%s3 + $0x50] sm:$0xff]
  %v405 = vld [vmem:[%s3 + $0x58] sm:$0xff]
  %v406 = vld [vmem:[%s3 + $0x60] sm:$0xff]
  %v407 = vld [vmem:[%s3 + $0x68] sm:$0xff]
  %v408 = vld [vmem:[%s3 + $0x70] sm:$0xff]
  %v409 = vld [vmem:[%s3 + $0x78] sm:$0xff]
  %v410 = vmul.f32 %v394, 0.0
  %v411 = vmul.f32 %v393, %v395
  %v412 = vmul.f32 %v351, %v396
  %v413 = vmul.f32 %v353, %v397
  %v414 = vmul.f32 %v355, %v398
  %v415 = vmul.f32 %v357, %v399
  %v416 = vmul.f32 %v359, %v400
  %v417 = vmul.f32 %v361, %v401
  %v418 = vmul.f32 %v363, %v402
  %v419 = vmul.f32 %v365, %v403
  %v420 = vmul.f32 %v367, %v404
  %v421 = vmul.f32 %v369, %v405
  %v422 = vmul.f32 %v371, %v406
  %v423 = vmul.f32 %v373, %v407
  %v424 = vmul.f32 %v375, %v408
  %v425 = vmul.f32 %v377, %v409
  %v426 = vmax.f32 %v318, %v410
  %v427 = vmax.f32 %v319, %v411
  %v428 = vmax.f32 %v320, %v412
  %v429 = vmax.f32 %v321, %v413
  %v430 = vmax.f32 %v322, %v414
  %v431 = vmax.f32 %v323, %v415
  %v432 = vmax.f32 %v324, %v416
  %v433 = vmax.f32 %v325, %v417
  %v434 = vmax.f32 %v326, %v418
  %v435 = vmax.f32 %v327, %v419
  %v436 = vmax.f32 %v328, %v420
  %v437 = vmax.f32 %v329, %v421
  %v438 = vmax.f32 %v330, %v422
  %v439 = vmax.f32 %v331, %v423
  %v440 = vmax.f32 %v332, %v424
  %v441 = vmax.f32 %v333, %v425
  %s442 = scalar_lea.vmem %s3, 128
  %v443 = vld [vmem:[%s442] sm:$0xff]
  %v444 = vld [vmem:[%s442 + $0x8] sm:$0xff]
  %v445 = vld [vmem:[%s442 + $0x10] sm:$0xff]
  %v446 = vld [vmem:[%s442 + $0x18] sm:$0xff]
  %v447 = vld [vmem:[%s442 + $0x20] sm:$0xff]
  %v448 = vld [vmem:[%s442 + $0x28] sm:$0xff]
  %v449 = vld [vmem:[%s442 + $0x30] sm:$0xff]
  %v450 = vld [vmem:[%s442 + $0x38] sm:$0xff]
  %v451 = vld [vmem:[%s442 + $0x40] sm:$0xff]
  %v452 = vld [vmem:[%s442 + $0x48] sm:$0xff]
  %v453 = vld [vmem:[%s442 + $0x50] sm:$0xff]
  %v454 = vld [vmem:[%s442 + $0x58] sm:$0xff]
  %v455 = vld [vmem:[%s442 + $0x60] sm:$0xff]
  %v456 = vld [vmem:[%s442 + $0x68] sm:$0xff]
  %v457 = vld [vmem:[%s442 + $0x70] sm:$0xff]
  %v458 = vld [vmem:[%s442 + $0x78] sm:$0xff]
  %v459 = vmul.f32 %v443, 0.0
  %v460 = vmul.f32 %v318, %v444
  %v461 = vmul.f32 %v319, %v445
  %v462 = vmul.f32 %v320, %v446
  %v463 = vmul.f32 %v321, %v447
  %v464 = vmul.f32 %v322, %v448
  %v465 = vmul.f32 %v323, %v449
  %v466 = vmul.f32 %v324, %v450
  %v467 = vmul.f32 %v325, %v451
  %v468 = vmul.f32 %v326, %v452
  %v469 = vmul.f32 %v327, %v453
  %v470 = vmul.f32 %v328, %v454
  %v471 = vmul.f32 %v329, %v455
  %v472 = vmul.f32 %v330, %v456
  %v473 = vmul.f32 %v331, %v457
  %v474 = vmul.f32 %v332, %v458
  %v475 = vmax.f32 %v426, %v459
  %v476 = vmax.f32 %v427, %v460
  %v477 = vmax.f32 %v428, %v461
  %v478 = vmax.f32 %v429, %v462
  %v479 = vmax.f32 %v430, %v463
  %v480 = vmax.f32 %v431, %v464
  %v481 = vmax.f32 %v432, %v465
  %v482 = vmax.f32 %v433, %v466
  %v483 = vmax.f32 %v434, %v467
  %v484 = vmax.f32 %v435, %v468
  %v485 = vmax.f32 %v436, %v469
  %v486 = vmax.f32 %v437, %v470
  %v487 = vmax.f32 %v438, %v471
  %v488 = vmax.f32 %v439, %v472
  %v489 = vmax.f32 %v440, %v473
  %v490 = vmax.f32 %v441, %v474
  %vm492 = vcmask 1046528
  %v493 = vrot.slane %v318, 1
  %v494 = vrot.slane %v319, 1
  %v495 = vsel %vm492, %v493, %v494
  %v496 = vrot.slane %v320, 1
  %v497 = vsel %vm492, %v494, %v496
  %v498 = vrot.slane %v321, 1
  %v499 = vsel %vm492, %v496, %v498
  %v500 = vrot.slane %v322, 1
  %v501 = vsel %vm492, %v498, %v500
  %v502 = vrot.slane %v323, 1
  %v503 = vsel %vm492, %v500, %v502
  %v504 = vrot.slane %v324, 1
  %v505 = vsel %vm492, %v502, %v504
  %v506 = vrot.slane %v325, 1
  %v507 = vsel %vm492, %v504, %v506
  %v508 = vrot.slane %v326, 1
  %v509 = vsel %vm492, %v506, %v508
  %v510 = vrot.slane %v327, 1
  %v511 = vsel %vm492, %v508, %v510
  %v512 = vrot.slane %v328, 1
  %v513 = vsel %vm492, %v510, %v512
  %v514 = vrot.slane %v329, 1
  %v515 = vsel %vm492, %v512, %v514
  %v516 = vrot.slane %v330, 1
  %v517 = vsel %vm492, %v514, %v516
  %v518 = vrot.slane %v331, 1
  %v519 = vsel %vm492, %v516, %v518
  %v520 = vrot.slane %v332, 1
  %v521 = vsel %vm492, %v518, %v520
  %v522 = vrot.slane %v333, 1
  %v523 = vsel %vm492, %v520, %v522
  %v540 = vsel %vm492, 0.0, %v493
  %s541 = scalar_lea.vmem %s3, 256
  %v542 = vld [vmem:[%s541] sm:$0xff]
  %v543 = vld [vmem:[%s541 + $0x8] sm:$0xff]
  %v544 = vld [vmem:[%s541 + $0x10] sm:$0xff]
  %v545 = vld [vmem:[%s541 + $0x18] sm:$0xff]
  %v546 = vld [vmem:[%s541 + $0x20] sm:$0xff]
  %v547 = vld [vmem:[%s541 + $0x28] sm:$0xff]
  %v548 = vld [vmem:[%s541 + $0x30] sm:$0xff]
  %v549 = vld [vmem:[%s541 + $0x38] sm:$0xff]
  %v550 = vld [vmem:[%s541 + $0x40] sm:$0xff]
  %v551 = vld [vmem:[%s541 + $0x48] sm:$0xff]
  %v552 = vld [vmem:[%s541 + $0x50] sm:$0xff]
  %v553 = vld [vmem:[%s541 + $0x58] sm:$0xff]
  %v554 = vld [vmem:[%s541 + $0x60] sm:$0xff]
  %v555 = vld [vmem:[%s541 + $0x68] sm:$0xff]
  %v556 = vld [vmem:[%s541 + $0x70] sm:$0xff]
  %v557 = vld [vmem:[%s541 + $0x78] sm:$0xff]
  %v558 = vmul.f32 %v540, %v542
  %v559 = vmul.f32 %v495, %v543
  %v560 = vmul.f32 %v497, %v544
  %v561 = vmul.f32 %v499, %v545
  %v562 = vmul.f32 %v501, %v546
  %v563 = vmul.f32 %v503, %v547
  %v564 = vmul.f32 %v505, %v548
  %v565 = vmul.f32 %v507, %v549
  %v566 = vmul.f32 %v509, %v550
  %v567 = vmul.f32 %v511, %v551
  %v568 = vmul.f32 %v513, %v552
  %v569 = vmul.f32 %v515, %v553
  %v570 = vmul.f32 %v517, %v554
  %v571 = vmul.f32 %v519, %v555
  %v572 = vmul.f32 %v521, %v556
  %v573 = vmul.f32 %v523, %v557
  %v574 = vmax.f32 %v475, %v558
  %v575 = vmax.f32 %v476, %v559
  %v576 = vmax.f32 %v477, %v560
  %v577 = vmax.f32 %v478, %v561
  %v578 = vmax.f32 %v479, %v562
  %v579 = vmax.f32 %v480, %v563
  %v580 = vmax.f32 %v481, %v564
  %v581 = vmax.f32 %v482, %v565
  %v582 = vmax.f32 %v483, %v566
  %v583 = vmax.f32 %v484, %v567
  %v584 = vmax.f32 %v485, %v568
  %v585 = vmax.f32 %v486, %v569
  %v586 = vmax.f32 %v487, %v570
  %v587 = vmax.f32 %v488, %v571
  %v588 = vmax.f32 %v489, %v572
  %v589 = vmax.f32 %v490, %v573
  %v590 = vrot.slane %v333, 7
  %v591 = vsel %vm214, %v376, %v590
  %s593 = scalar_lea.vmem %s3, 384
  %v594 = vld [vmem:[%s593] sm:$0xff]
  %v595 = vld [vmem:[%s593 + $0x8] sm:$0xff]
  %v596 = vld [vmem:[%s593 + $0x10] sm:$0xff]
  %v597 = vld [vmem:[%s593 + $0x18] sm:$0xff]
  %v598 = vld [vmem:[%s593 + $0x20] sm:$0xff]
  %v599 = vld [vmem:[%s593 + $0x28] sm:$0xff]
  %v600 = vld [vmem:[%s593 + $0x30] sm:$0xff]
  %v601 = vld [vmem:[%s593 + $0x38] sm:$0xff]
  %v602 = vld [vmem:[%s593 + $0x40] sm:$0xff]
  %v603 = vld [vmem:[%s593 + $0x48] sm:$0xff]
  %v604 = vld [vmem:[%s593 + $0x50] sm:$0xff]
  %v605 = vld [vmem:[%s593 + $0x58] sm:$0xff]
  %v606 = vld [vmem:[%s593 + $0x60] sm:$0xff]
  %v607 = vld [vmem:[%s593 + $0x68] sm:$0xff]
  %v608 = vld [vmem:[%s593 + $0x70] sm:$0xff]
  %v609 = vld [vmem:[%s593 + $0x78] sm:$0xff]
  %v610 = vmul.f32 %v393, %v594
  %v611 = vmul.f32 %v351, %v595
  %v612 = vmul.f32 %v353, %v596
  %v613 = vmul.f32 %v355, %v597
  %v614 = vmul.f32 %v357, %v598
  %v615 = vmul.f32 %v359, %v599
  %v616 = vmul.f32 %v361, %v600
  %v617 = vmul.f32 %v363, %v601
  %v618 = vmul.f32 %v365, %v602
  %v619 = vmul.f32 %v367, %v603
  %v620 = vmul.f32 %v369, %v604
  %v621 = vmul.f32 %v371, %v605
  %v622 = vmul.f32 %v373, %v606
  %v623 = vmul.f32 %v375, %v607
  %v624 = vmul.f32 %v377, %v608
  %v625 = vmul.f32 %v591, %v609
  %v626 = vmax.f32 %v574, %v610
  %v627 = vmax.f32 %v575, %v611
  %v628 = vmax.f32 %v576, %v612
  %v629 = vmax.f32 %v577, %v613
  %v630 = vmax.f32 %v578, %v614
  %v631 = vmax.f32 %v579, %v615
  %v632 = vmax.f32 %v580, %v616
  %v633 = vmax.f32 %v581, %v617
  %v634 = vmax.f32 %v582, %v618
  %v635 = vmax.f32 %v583, %v619
  %v636 = vmax.f32 %v584, %v620
  %v637 = vmax.f32 %v585, %v621
  %v638 = vmax.f32 %v586, %v622
  %v639 = vmax.f32 %v587, %v623
  %v640 = vmax.f32 %v588, %v624
  %v641 = vmax.f32 %v589, %v625
  %v643 = vsel %vm492, %v522, 0.0
  %s644 = scalar_lea.vmem %s3, 640
  %v645 = vld [vmem:[%s644] sm:$0xff]
  %v646 = vld [vmem:[%s644 + $0x8] sm:$0xff]
  %v647 = vld [vmem:[%s644 + $0x10] sm:$0xff]
  %v648 = vld [vmem:[%s644 + $0x18] sm:$0xff]
  %v649 = vld [vmem:[%s644 + $0x20] sm:$0xff]
  %v650 = vld [vmem:[%s644 + $0x28] sm:$0xff]
  %v651 = vld [vmem:[%s644 + $0x30] sm:$0xff]
  %v652 = vld [vmem:[%s644 + $0x38] sm:$0xff]
  %v653 = vld [vmem:[%s644 + $0x40] sm:$0xff]
  %v654 = vld [vmem:[%s644 + $0x48] sm:$0xff]
  %v655 = vld [vmem:[%s644 + $0x50] sm:$0xff]
  %v656 = vld [vmem:[%s644 + $0x58] sm:$0xff]
  %v657 = vld [vmem:[%s644 + $0x60] sm:$0xff]
  %v658 = vld [vmem:[%s644 + $0x68] sm:$0xff]
  %v659 = vld [vmem:[%s644 + $0x70] sm:$0xff]
  %v660 = vld [vmem:[%s644 + $0x78] sm:$0xff]
  %v661 = vmul.f32 %v495, %v645
  %v662 = vmul.f32 %v497, %v646
  %v663 = vmul.f32 %v499, %v647
  %v664 = vmul.f32 %v501, %v648
  %v665 = vmul.f32 %v503, %v649
  %v666 = vmul.f32 %v505, %v650
  %v667 = vmul.f32 %v507, %v651
  %v668 = vmul.f32 %v509, %v652
  %v669 = vmul.f32 %v511, %v653
  %v670 = vmul.f32 %v513, %v654
  %v671 = vmul.f32 %v515, %v655
  %v672 = vmul.f32 %v517, %v656
  %v673 = vmul.f32 %v519, %v657
  %v674 = vmul.f32 %v521, %v658
  %v675 = vmul.f32 %v523, %v659
  %v676 = vmul.f32 %v643, %v660
  %v677 = vmax.f32 %v626, %v661
  %v678 = vmax.f32 %v627, %v662
  %v679 = vmax.f32 %v628, %v663
  %v680 = vmax.f32 %v629, %v664
  %v681 = vmax.f32 %v630, %v665
  %v682 = vmax.f32 %v631, %v666
  %v683 = vmax.f32 %v632, %v667
  %v684 = vmax.f32 %v633, %v668
  %v685 = vmax.f32 %v634, %v669
  %v686 = vmax.f32 %v635, %v670
  %v687 = vmax.f32 %v636, %v671
  %v688 = vmax.f32 %v637, %v672
  %v689 = vmax.f32 %v638, %v673
  %v690 = vmax.f32 %v639, %v674
  %v691 = vmax.f32 %v640, %v675
  %v692 = vmax.f32 %v641, %v676
  %v694 = vsel %vm214, %v590, 0.0
  %s695 = scalar_lea.vmem %s3, 768
  %v696 = vld [vmem:[%s695] sm:$0xff]
  %v697 = vld [vmem:[%s695 + $0x8] sm:$0xff]
  %v698 = vld [vmem:[%s695 + $0x10] sm:$0xff]
  %v699 = vld [vmem:[%s695 + $0x18] sm:$0xff]
  %v700 = vld [vmem:[%s695 + $0x20] sm:$0xff]
  %v701 = vld [vmem:[%s695 + $0x28] sm:$0xff]
  %v702 = vld [vmem:[%s695 + $0x30] sm:$0xff]
  %v703 = vld [vmem:[%s695 + $0x38] sm:$0xff]
  %v704 = vld [vmem:[%s695 + $0x40] sm:$0xff]
  %v705 = vld [vmem:[%s695 + $0x48] sm:$0xff]
  %v706 = vld [vmem:[%s695 + $0x50] sm:$0xff]
  %v707 = vld [vmem:[%s695 + $0x58] sm:$0xff]
  %v708 = vld [vmem:[%s695 + $0x60] sm:$0xff]
  %v709 = vld [vmem:[%s695 + $0x68] sm:$0xff]
  %v710 = vld [vmem:[%s695 + $0x70] sm:$0xff]
  %v711 = vld [vmem:[%s695 + $0x78] sm:$0xff]
  %v712 = vmul.f32 %v351, %v696
  %v713 = vmul.f32 %v353, %v697
  %v714 = vmul.f32 %v355, %v698
  %v715 = vmul.f32 %v357, %v699
  %v716 = vmul.f32 %v359, %v700
  %v717 = vmul.f32 %v361, %v701
  %v718 = vmul.f32 %v363, %v702
  %v719 = vmul.f32 %v365, %v703
  %v720 = vmul.f32 %v367, %v704
  %v721 = vmul.f32 %v369, %v705
  %v722 = vmul.f32 %v371, %v706
  %v723 = vmul.f32 %v373, %v707
  %v724 = vmul.f32 %v375, %v708
  %v725 = vmul.f32 %v377, %v709
  %v726 = vmul.f32 %v591, %v710
  %v727 = vmul.f32 %v694, %v711
  %v728 = vmax.f32 %v677, %v712
  %v729 = vmax.f32 %v678, %v713
  %v730 = vmax.f32 %v679, %v714
  %v731 = vmax.f32 %v680, %v715
  %v732 = vmax.f32 %v681, %v716
  %v733 = vmax.f32 %v682, %v717
  %v734 = vmax.f32 %v683, %v718
  %v735 = vmax.f32 %v684, %v719
  %v736 = vmax.f32 %v685, %v720
  %v737 = vmax.f32 %v686, %v721
  %v738 = vmax.f32 %v687, %v722
  %v739 = vmax.f32 %v688, %v723
  %v740 = vmax.f32 %v689, %v724
  %v741 = vmax.f32 %v690, %v725
  %v742 = vmax.f32 %v691, %v726
  %v743 = vmax.f32 %v692, %v727
  %s744 = scalar_lea.vmem %s3, 896
  %v745 = vld [vmem:[%s744] sm:$0xff]
  %v746 = vld [vmem:[%s744 + $0x8] sm:$0xff]
  %v747 = vld [vmem:[%s744 + $0x10] sm:$0xff]
  %v748 = vld [vmem:[%s744 + $0x18] sm:$0xff]
  %v749 = vld [vmem:[%s744 + $0x20] sm:$0xff]
  %v750 = vld [vmem:[%s744 + $0x28] sm:$0xff]
  %v751 = vld [vmem:[%s744 + $0x30] sm:$0xff]
  %v752 = vld [vmem:[%s744 + $0x38] sm:$0xff]
  %v753 = vld [vmem:[%s744 + $0x40] sm:$0xff]
  %v754 = vld [vmem:[%s744 + $0x48] sm:$0xff]
  %v755 = vld [vmem:[%s744 + $0x50] sm:$0xff]
  %v756 = vld [vmem:[%s744 + $0x58] sm:$0xff]
  %v757 = vld [vmem:[%s744 + $0x60] sm:$0xff]
  %v758 = vld [vmem:[%s744 + $0x68] sm:$0xff]
  %v759 = vld [vmem:[%s744 + $0x70] sm:$0xff]
  %v760 = vld [vmem:[%s744 + $0x78] sm:$0xff]
  %v761 = vmul.f32 %v319, %v745
  %v762 = vmul.f32 %v320, %v746
  %v763 = vmul.f32 %v321, %v747
  %v764 = vmul.f32 %v322, %v748
  %v765 = vmul.f32 %v323, %v749
  %v766 = vmul.f32 %v324, %v750
  %v767 = vmul.f32 %v325, %v751
  %v768 = vmul.f32 %v326, %v752
  %v769 = vmul.f32 %v327, %v753
  %v770 = vmul.f32 %v328, %v754
  %v771 = vmul.f32 %v329, %v755
  %v772 = vmul.f32 %v330, %v756
  %v773 = vmul.f32 %v331, %v757
  %v774 = vmul.f32 %v332, %v758
  %v775 = vmul.f32 %v333, %v759
  %v776 = vmul.f32 %v760, 0.0
  %v777 = vmax.f32 %v728, %v761
  %v778 = vmax.f32 %v729, %v762
  %v779 = vmax.f32 %v730, %v763
  %v780 = vmax.f32 %v731, %v764
  %v781 = vmax.f32 %v732, %v765
  %v782 = vmax.f32 %v733, %v766
  %v783 = vmax.f32 %v734, %v767
  %v784 = vmax.f32 %v735, %v768
  %v785 = vmax.f32 %v736, %v769
  %v786 = vmax.f32 %v737, %v770
  %v787 = vmax.f32 %v738, %v771
  %v788 = vmax.f32 %v739, %v772
  %v789 = vmax.f32 %v740, %v773
  %v790 = vmax.f32 %v741, %v774
  %v791 = vmax.f32 %v742, %v775
  %v792 = vmax.f32 %v743, %v776
  %s793 = scalar_lea.vmem %s3, 1024
  %v794 = vld [vmem:[%s793] sm:$0xff]
  %v795 = vld [vmem:[%s793 + $0x8] sm:$0xff]
  %v796 = vld [vmem:[%s793 + $0x10] sm:$0xff]
  %v797 = vld [vmem:[%s793 + $0x18] sm:$0xff]
  %v798 = vld [vmem:[%s793 + $0x20] sm:$0xff]
  %v799 = vld [vmem:[%s793 + $0x28] sm:$0xff]
  %v800 = vld [vmem:[%s793 + $0x30] sm:$0xff]
  %v801 = vld [vmem:[%s793 + $0x38] sm:$0xff]
  %v802 = vld [vmem:[%s793 + $0x40] sm:$0xff]
  %v803 = vld [vmem:[%s793 + $0x48] sm:$0xff]
  %v804 = vld [vmem:[%s793 + $0x50] sm:$0xff]
  %v805 = vld [vmem:[%s793 + $0x58] sm:$0xff]
  %v806 = vld [vmem:[%s793 + $0x60] sm:$0xff]
  %v807 = vld [vmem:[%s793 + $0x68] sm:$0xff]
  %v808 = vld [vmem:[%s793 + $0x70] sm:$0xff]
  %v809 = vld [vmem:[%s793 + $0x78] sm:$0xff]
  %v810 = vmul.f32 %v497, %v794
  %v811 = vmul.f32 %v499, %v795
  %v812 = vmul.f32 %v501, %v796
  %v813 = vmul.f32 %v503, %v797
  %v814 = vmul.f32 %v505, %v798
  %v815 = vmul.f32 %v507, %v799
  %v816 = vmul.f32 %v509, %v800
  %v817 = vmul.f32 %v511, %v801
  %v818 = vmul.f32 %v513, %v802
  %v819 = vmul.f32 %v515, %v803
  %v820 = vmul.f32 %v517, %v804
  %v821 = vmul.f32 %v519, %v805
  %v822 = vmul.f32 %v521, %v806
  %v823 = vmul.f32 %v523, %v807
  %v824 = vmul.f32 %v643, %v808
  %v825 = vmul.f32 %v809, 0.0
  %v826 = vmax.f32 %v777, %v810
  %v827 = vmax.f32 %v778, %v811
  %v828 = vmax.f32 %v779, %v812
  %v829 = vmax.f32 %v780, %v813
  %v830 = vmax.f32 %v781, %v814
  %v831 = vmax.f32 %v782, %v815
  %v832 = vmax.f32 %v783, %v816
  %v833 = vmax.f32 %v784, %v817
  %v834 = vmax.f32 %v785, %v818
  %v835 = vmax.f32 %v786, %v819
  %v836 = vmax.f32 %v787, %v820
  %v837 = vmax.f32 %v788, %v821
  %v838 = vmax.f32 %v789, %v822
  %v839 = vmax.f32 %v790, %v823
  %v840 = vmax.f32 %v791, %v824
  %v841 = vmax.f32 %v792, %v825
  %vm842 = vcmask 130048
  %843 = vst.msk [vmem:[%s4] sm:$0xff] %vm842, %v826
  %844 = vst.msk [vmem:[%s4 + $0x8] sm:$0xff] %vm842, %v827
  %845 = vst.msk [vmem:[%s4 + $0x10] sm:$0xff] %vm842, %v828
  %846 = vst.msk [vmem:[%s4 + $0x18] sm:$0xff] %vm842, %v829
  %847 = vst.msk [vmem:[%s4 + $0x20] sm:$0xff] %vm842, %v830
  %848 = vst.msk [vmem:[%s4 + $0x28] sm:$0xff] %vm842, %v831
  %849 = vst.msk [vmem:[%s4 + $0x30] sm:$0xff] %vm842, %v832
  %850 = vst.msk [vmem:[%s4 + $0x38] sm:$0xff] %vm842, %v833
  %851 = vst.msk [vmem:[%s4 + $0x40] sm:$0xff] %vm842, %v834
  %852 = vst.msk [vmem:[%s4 + $0x48] sm:$0xff] %vm842, %v835
  %853 = vst.msk [vmem:[%s4 + $0x50] sm:$0xff] %vm842, %v836
  %854 = vst.msk [vmem:[%s4 + $0x58] sm:$0xff] %vm842, %v837
  %855 = vst.msk [vmem:[%s4 + $0x60] sm:$0xff] %vm842, %v838
  %856 = vst.msk [vmem:[%s4 + $0x68] sm:$0xff] %vm842, %v839
  %857 = vst.msk [vmem:[%s4 + $0x70] sm:$0xff] %vm842, %v840
  %858 = vst.msk [vmem:[%s4 + $0x78] sm:$0xff] %vm842, %v841
  // Predicated region
  $region18: #{a_call__.5} parent=0 // pred_check
    _
  $region19: #{a_call__.5} parent=0 // pred_check_branch
    %860 = sbr.rel (0) target = $region21
  $region20: #{a_call__.5} parent=0 // pred_region
    _
  $region21: #{a_call__.5} parent=0 // pred_fallthru
    _
  // Predicated region
  $region22: #{a_call__.5} parent=0 // pred_check
    _
  $region23: #{a_call__.5} parent=0 // pred_check_branch
    %862 = sbr.rel (0) target = $region25
  $region24: #{a_call__.5} parent=0 // pred_region
    _
  $region25: #{a_call__.5} parent=0 // pred_fallthru
    _

// kernel: a_call__.9
$region0: #{a_call__.9}
  #allocation0 [shape = 'u32[]', space=smem, size = 0x4, offset = 0x4, fixed_abs, tag = 'smem constant byte address 0x4 - core index']
  #allocation1 [shape = 'u32[144,128]{1,0:T(1,128)}', space=vmem, size = 0x12000, scoped, tag = 'internal scratch']
  %s0 = inlined_call_operand.vmem [shape: f32[8,32], index: 0, kind: input, shape index: {}]
  %s1 = inlined_call_operand.vmem [shape: f32[1,32], index: 1, kind: input, shape index: {}]
  %s2 = inlined_call_operand.vmem [shape: f32[1,32], index: 2, kind: input, shape index: {}]
  %s3 = inlined_call_operand.vmem [shape: bf16[32,10], index: 3, kind: input, shape index: {}]
  %s4 = inlined_call_operand.vmem [shape: f32[1,10], index: 4, kind: input, shape index: {}]
  %s5 = inlined_call_operand.hbm [shape: f32[2,10], index: 5, kind: output, shape index: {}]
  %s6 = sld [smem:[#allocation0]]
  $region30: #{a_call__.9} parent=0
    _
  %s8 = ssub.s32 1, %s6
  %s9 = scalar_select 0, %s8, %s6
  $region1: #{a_call__.9} parent=0
    #allocation2 [shape = 'u8[1024]{0}', space=vmem, size = 0x400, scoped, tag = 'output window, operand 0, single buffered']
    #allocation3 [shape = 's32[1]{0}', space=sflag, size = 0x4, scoped, tag = 'scoped memory for a_call__.9']
    %10 = vsyncpa [#allocation3], 0
    // Predicated region
    $region2: #{a_call__.9} parent=1 // pred_check
      _
    $region3: #{a_call__.9} parent=1 // pred_check_branch
      %12 = sbr.rel (0) target = $region5
    $region4: #{a_call__.9} parent=1 // pred_region
      _
    $region5: #{a_call__.9} parent=1 // pred_fallthru
      _
    // Predicated region
    $region6: #{a_call__.9} parent=1 // pred_check
      _
    $region7: #{a_call__.9} parent=1 // pred_check_branch
      %14 = sbr.rel (0) target = $region9
    $region8: #{a_call__.9} parent=1 // pred_region
      _
    $region9: #{a_call__.9} parent=1 // pred_fallthru
      _
    // Predicated region
    $region10: #{a_call__.9} parent=1 // pred_check
      _
    $region11: #{a_call__.9} parent=1 // pred_check_branch
      %16 = sbr.rel (0) target = $region13
    $region12: #{a_call__.9} parent=1 // pred_region
      _
    $region13: #{a_call__.9} parent=1 // pred_fallthru
      _
    // Predicated region
    $region14: #{a_call__.9} parent=1 // pred_check
      _
    $region15: #{a_call__.9} parent=1 // pred_check_branch
      %18 = sbr.rel (0) target = $region17
    $region16: #{a_call__.9} parent=1 // pred_region
      _
    $region17: #{a_call__.9} parent=1 // pred_fallthru
      _
    // Predicated region
    $region18: #{a_call__.9} parent=1 // pred_check
      _
    $region19: #{a_call__.9} parent=1 // pred_check_branch
      %20 = sbr.rel (0) target = $region21
    $region20: #{a_call__.9} parent=1 // pred_region
      _
    $region21: #{a_call__.9} parent=1 // pred_fallthru
      _
    %v22 = vld [vmem:[%s0] sm:$0xff]
    %v23 = vld [vmem:[%s1] sm:$0x1]
    %v25 = vlaneseq
    %v26 = vshrl.u32 %v25, 7
    %v27 = vsub.s32 0, %v26
    %v28 = vrot.slane %v23, %v27
    %v30 = vmul.f32 %v22, %v28
    %v31 = vld [vmem:[%s2] sm:$0x1]
    %v33 = vlaneseq
    %v34 = vshrl.u32 %v33, 7
    %v35 = vsub.s32 0, %v34
    %v36 = vrot.slane %v31, %v35
    %v38 = vadd.f32 %v30, %v36
    %v39 = vmax.f32 %v38, 0.0
    %vm40 = vcmask 257024
    %v41 = vsel %vm40, %v39, 0.0
    %v42 = vrot.slane %v41, 4
    %v43 = vadd.f32 %v41, %v42
    %v44 = vrot.slane %v43, 2
    %v45 = vadd.f32 %v43, %v44
    %v46 = vrot.slane %v45, 1
    %v47 = vadd.f32 %v45, %v46
    %v48 = vrcp.pop 4.0
    %v49 = vmul.f32 %v47, %v48
    %v50 = vpack.c.bf16 %v49, %v49
    %v51 = vld [vmem:[%s3] sm:$0xf]
    %v52 = vld [vmem:[%s3 + $0x4] sm:$0xf]
    %v53 = vld [vmem:[%s3 + $0x8] sm:$0xf]
    %v54 = vld [vmem:[%s3 + $0xc] sm:$0xf]
    %v55 = vld [vmem:[%s4] sm:$0x1]
    %v60 = vunpack.c.l.b16 %v51
    %v61 = vunpack.c.l.b16 %v52
    %v62 = vunpack.c.l.b16 %v53
    %v63 = vunpack.c.l.b16 %v54
    %v64 = vpack.c.b16 %v61, %v60
    %v65 = vpack.c.b16 %v63, %v62
    %vm68 = vcmask 261120
    %v70 = vsel %vm68, %v50, 0
    %72 = vmatprep.subr.bf16.mxu0 0
    %73 = vmatpush1.bf16.msra.mxu0 0
    %74 = vmatprep.subr.bf16.mxu0 0
    %75 = vmatpush1.bf16.msra.mxu0 0
    %76 = vmatprep.subr.bf16.mxu0 0
    %77 = vmatpush1.bf16.msra.mxu0 0
    %78 = vmatprep.subr.bf16.mxu0 0
    %79 = vmatpush1.bf16.msra.mxu0 0
    %80 = vmatprep.subr.bf16.mxu0 0
    %81 = vmatpush1.bf16.msra.mxu0 0
    %82 = vmatprep.subr.bf16.mxu0 0
    %83 = vmatpush1.bf16.msra.mxu0 0
    %84 = vmatprep.subr.bf16.mxu0 0
    %85 = vmatpush1.bf16.msra.mxu0 %v65
    %86 = vmatprep.subr.bf16.mxu0 0
    %87 = vmatpush1.bf16.msra.mxu0 %v64
    %88 = vmatprep.subr.bf16.mxu0 0
    %89 = vmatpush2.bf16.msra.mxu0 0
    %90 = vmatprep.subr.bf16.mxu0 0
    %91 = vmatpush2.bf16.msra.mxu0 0
    %92 = vmatprep.subr.bf16.mxu0 0
    %93 = vmatpush2.bf16.msra.mxu0 0
    %94 = vmatprep.subr.bf16.mxu0 0
    %95 = vmatpush2.bf16.msra.mxu0 0
    %96 = vmatprep.subr.bf16.mxu0 0
    %97 = vmatpush2.bf16.msra.mxu0 0
    %98 = vmatprep.subr.bf16.mxu0 0
    %99 = vmatpush2.bf16.msra.mxu0 0
    %100 = vmatprep.subr.bf16.mxu0 0
    %101 = vmatpush2.bf16.msra.mxu0 0
    %102 = vmatprep.subr.bf16.mxu0 0
    %103 = vmatpush2.bf16.msra.mxu0 0
    %104 = vmatprep.mubr.bf16.mxu0 0
    %105 = vmatmul.mubr.bf16.gmra.mxu0 %v70
    %v106 = vpop.f32.mrf.mxu0
    %v107 = vadd.f32 %v55, %v106
    %v108 = vpop.f32.mrf.mxu0
    %v109 = vpop.f32.mrf.mxu0
    %v110 = vpop.f32.mrf.mxu0
    %111 = vdwg.mxu0
    %vm112 = vcmask 73728
    %113 = vst.msk [vmem:[#allocation2] sm:$0x1] %vm112, %v107
    %v115 = vrot.slane %v39, 4
    %v117 = vsel %vm40, %v115, 0.0
    %v118 = vrot.slane %v117, 4
    %v119 = vadd.f32 %v117, %v118
    %v120 = vrot.slane %v119, 2
    %v121 = vadd.f32 %v119, %v120
    %v122 = vrot.slane %v121, 1
    %v123 = vadd.f32 %v121, %v122
    %v124 = vmul.f32 %v123, %v48
    %v125 = vpack.c.bf16 %v124, %v124
    %v126 = vld [vmem:[%s3] sm:$0xf]
    %v127 = vld [vmem:[%s3 + $0x4] sm:$0xf]
    %v128 = vld [vmem:[%s3 + $0x8] sm:$0xf]
    %v129 = vld [vmem:[%s3 + $0xc] sm:$0xf]
    %v130 = vld [vmem:[%s4] sm:$0x1]
    %v135 = vunpack.c.l.b16 %v126
    %v136 = vunpack.c.l.b16 %v127
    %v137 = vunpack.c.l.b16 %v128
    %v138 = vunpack.c.l.b16 %v129
    %v139 = vpack.c.b16 %v136, %v135
    %v140 = vpack.c.b16 %v138, %v137
    %v144 = vsel %vm68, %v125, 0
    %146 = vmatprep.subr.bf16.mxu0 0
    %147 = vmatpush1.bf16.msra.mxu0 0
    %148 = vmatprep.subr.bf16.mxu0 0
    %149 = vmatpush1.bf16.msra.mxu0 0
    %150 = vmatprep.subr.bf16.mxu0 0
    %151 = vmatpush1.bf16.msra.mxu0 0
    %152 = vmatprep.subr.bf16.mxu0 0
    %153 = vmatpush1.bf16.msra.mxu0 0
    %154 = vmatprep.subr.bf16.mxu0 0
    %155 = vmatpush1.bf16.msra.mxu0 0
    %156 = vmatprep.subr.bf16.mxu0 0
    %157 = vmatpush1.bf16.msra.mxu0 0
    %158 = vmatprep.subr.bf16.mxu0 0
    %159 = vmatpush1.bf16.msra.mxu0 %v140
    %160 = vmatprep.subr.bf16.mxu0 0
    %161 = vmatpush1.bf16.msra.mxu0 %v139
    %162 = vmatprep.subr.bf16.mxu0 0
    %163 = vmatpush2.bf16.msra.mxu0 0
    %164 = vmatprep.subr.bf16.mxu0 0
    %165 = vmatpush2.bf16.msra.mxu0 0
    %166 = vmatprep.subr.bf16.mxu0 0
    %167 = vmatpush2.bf16.msra.mxu0 0
    %168 = vmatprep.subr.bf16.mxu0 0
    %169 = vmatpush2.bf16.msra.mxu0 0
    %170 = vmatprep.subr.bf16.mxu0 0
    %171 = vmatpush2.bf16.msra.mxu0 0
    %172 = vmatprep.subr.bf16.mxu0 0
    %173 = vmatpush2.bf16.msra.mxu0 0
    %174 = vmatprep.subr.bf16.mxu0 0
    %175 = vmatpush2.bf16.msra.mxu0 0
    %176 = vmatprep.subr.bf16.mxu0 0
    %177 = vmatpush2.bf16.msra.mxu0 0
    %178 = vmatprep.mubr.bf16.mxu0 0
    %179 = vmatmul.mubr.bf16.gmra.mxu0 %v144
    %v180 = vpop.f32.mrf.mxu0
    %v181 = vadd.f32 %v130, %v180
    %v182 = vpop.f32.mrf.mxu0
    %v183 = vpop.f32.mrf.mxu0
    %v184 = vpop.f32.mrf.mxu0
    %185 = vdwg.mxu0
    %186 = vst.msk [vmem:[#allocation2 + $0x1] sm:$0x1] %vm112, %v181
    // Predicated region
    $region22: #{a_call__.9} parent=1 // pred_check
      _
    $region23: #{a_call__.9} parent=1 // pred_check_branch
      %188 = sbr.rel (0) target = $region25
    $region24: #{a_call__.9} parent=1 // pred_region
      %s190 = ssub.s32 32, 32
      %191 = vsyncadd [#allocation3], %s190
      %s193 = sshll.u32 [#allocation2], 4
      %s194 = int_to_ptr.vmem [resolvable:$true] %s193
      %196 = dma.vmem_to_hbm [thread:$0]  %s194, 32, %s5, [#allocation3]
    $region25: #{a_call__.9} parent=1 // pred_fallthru
      _
    // Predicated region
    $region26: #{a_call__.9} parent=1 // pred_check
      _
    $region27: #{a_call__.9} parent=1 // pred_check_branch
      %198 = sbr.rel (0) target = $region29
    $region28: #{a_call__.9} parent=1 // pred_region
      %199 = dma.done [#allocation3], 32
    $region29: #{a_call__.9} parent=1 // pred_fallthru
      _
    %200 = vsyncpa [#allocation3], 1

// kernel: a_call__.8
$region0: #{a_call__.8}
  #allocation0 [shape = 'u32[]', space=smem, size = 0x4, offset = 0x4, fixed_abs, tag = 'smem constant byte address 0x4 - core index']
  #allocation1 [shape = 'u32[144,128]{1,0:T(1,128)}', space=vmem, size = 0x12000, scoped, tag = 'internal scratch']
  %s0 = inlined_call_operand.vmem [shape: f32[8,32], index: 0, kind: input, shape index: {}]
  %s1 = inlined_call_operand.vmem [shape: f32[2,1,32], index: 1, kind: input, shape index: {}]
  %s2 = inlined_call_operand.vmem [shape: f32[2,1,32], index: 2, kind: input, shape index: {}]
  %s3 = inlined_call_operand.vmem [shape: bf16[2,32,16], index: 3, kind: input, shape index: {}]
  %s4 = inlined_call_operand.vmem [shape: f32[2,1,16], index: 4, kind: input, shape index: {}]
  %s5 = inlined_call_operand.vmem [shape: bf16[18,16,8], index: 5, kind: input, shape index: {}]
  %s6 = inlined_call_operand.vmem [shape: f32[9,8,16], index: 6, kind: input, shape index: {}]
  %s7 = inlined_call_operand.vmem [shape: f32[8,32], index: 7, kind: output, shape index: {}]
  %s8 = sld [smem:[#allocation0]]
  $region38: #{a_call__.8} parent=0
    _
  %s10 = ssub.s32 1, %s8
  %s11 = scalar_select 0, %s10, %s8
  // Predicated region
  $region2: #{a_call__.8} parent=0 // pred_check
    _
  $region3: #{a_call__.8} parent=0 // pred_check_branch
    %13 = sbr.rel (0) target = $region5
  $region4: #{a_call__.8} parent=0 // pred_region
    _
  $region5: #{a_call__.8} parent=0 // pred_fallthru
    _
  // Predicated region
  $region6: #{a_call__.8} parent=0 // pred_check
    _
  $region7: #{a_call__.8} parent=0 // pred_check_branch
    %15 = sbr.rel (0) target = $region9
  $region8: #{a_call__.8} parent=0 // pred_region
    _
  $region9: #{a_call__.8} parent=0 // pred_fallthru
    _
  // Predicated region
  $region10: #{a_call__.8} parent=0 // pred_check
    _
  $region11: #{a_call__.8} parent=0 // pred_check_branch
    %17 = sbr.rel (0) target = $region13
  $region12: #{a_call__.8} parent=0 // pred_region
    _
  $region13: #{a_call__.8} parent=0 // pred_fallthru
    _
  // Predicated region
  $region14: #{a_call__.8} parent=0 // pred_check
    _
  $region15: #{a_call__.8} parent=0 // pred_check_branch
    %19 = sbr.rel (0) target = $region17
  $region16: #{a_call__.8} parent=0 // pred_region
    _
  $region17: #{a_call__.8} parent=0 // pred_fallthru
    _
  // Predicated region
  $region18: #{a_call__.8} parent=0 // pred_check
    _
  $region19: #{a_call__.8} parent=0 // pred_check_branch
    %21 = sbr.rel (0) target = $region21
  $region20: #{a_call__.8} parent=0 // pred_region
    _
  $region21: #{a_call__.8} parent=0 // pred_fallthru
    _
  // Predicated region
  $region22: #{a_call__.8} parent=0 // pred_check
    _
  $region23: #{a_call__.8} parent=0 // pred_check_branch
    %23 = sbr.rel (0) target = $region25
  $region24: #{a_call__.8} parent=0 // pred_region
    _
  $region25: #{a_call__.8} parent=0 // pred_fallthru
    _
  // Predicated region
  $region26: #{a_call__.8} parent=0 // pred_check
    _
  $region27: #{a_call__.8} parent=0 // pred_check_branch
    %25 = sbr.rel (0) target = $region29
  $region28: #{a_call__.8} parent=0 // pred_region
    _
  $region29: #{a_call__.8} parent=0 // pred_fallthru
    _
  %v27 = vld [vmem:[%s0] sm:$0xff]
  %vm28 = vcmask 261120
  %29 = vst.msk [vmem:[%s7] sm:$0xff] %vm28, %v27
  %v30 = vld [vmem:[%s7] sm:$0xff]
  %v31 = vld [vmem:[%s1] sm:$0x1]
  %v33 = vlaneseq
  %v34 = vshrl.u32 %v33, 7
  %v35 = vsub.s32 0, %v34
  %v36 = vrot.slane %v31, %v35
  %v38 = vmul.f32 %v30, %v36
  %v39 = vld [vmem:[%s2] sm:$0x1]
  %v41 = vlaneseq
  %v42 = vshrl.u32 %v41, 7
  %v43 = vsub.s32 0, %v42
  %v44 = vrot.slane %v39, %v43
  %v46 = vadd.f32 %v38, %v44
  %v47 = vmax.f32 %v46, 0.0
  %v48 = vpack.c.bf16 %v47, %v47
  %v49 = vld [vmem:[%s3] sm:$0xf]
  %v50 = vld [vmem:[%s3 + $0x4] sm:$0xf]
  %v51 = vld [vmem:[%s3 + $0x8] sm:$0xf]
  %v52 = vld [vmem:[%s3 + $0xc] sm:$0xf]
  %v53 = vld [vmem:[%s4] sm:$0x1]
  %v55 = vlaneseq
  %v56 = vshrl.u32 %v55, 7
  %v57 = vsub.s32 0, %v56
  %v58 = vrot.slane %v53, %v57
  %v64 = vunpack.c.l.b16 %v49
  %v65 = vunpack.c.l.b16 %v50
  %v66 = vunpack.c.l.b16 %v51
  %v67 = vunpack.c.l.b16 %v52
  %v68 = vpack.c.b16 %v65, %v64
  %v69 = vpack.c.b16 %v67, %v66
  %v73 = vsel %vm28, %v48, 0
  %75 = vmatprep.subr.bf16.mxu0 0
  %76 = vmatpush1.bf16.msra.mxu0 0
  %77 = vmatprep.subr.bf16.mxu0 0
  %78 = vmatpush1.bf16.msra.mxu0 0
  %79 = vmatprep.subr.bf16.mxu0 0
  %80 = vmatpush1.bf16.msra.mxu0 0
  %81 = vmatprep.subr.bf16.mxu0 0
  %82 = vmatpush1.bf16.msra.mxu0 0
  %83 = vmatprep.subr.bf16.mxu0 0
  %84 = vmatpush1.bf16.msra.mxu0 0
  %85 = vmatprep.subr.bf16.mxu0 0
  %86 = vmatpush1.bf16.msra.mxu0 0
  %87 = vmatprep.subr.bf16.mxu0 0
  %88 = vmatpush1.bf16.msra.mxu0 %v69
  %89 = vmatprep.subr.bf16.mxu0 0
  %90 = vmatpush1.bf16.msra.mxu0 %v68
  %91 = vmatprep.subr.bf16.mxu0 0
  %92 = vmatpush2.bf16.msra.mxu0 0
  %93 = vmatprep.subr.bf16.mxu0 0
  %94 = vmatpush2.bf16.msra.mxu0 0
  %95 = vmatprep.subr.bf16.mxu0 0
  %96 = vmatpush2.bf16.msra.mxu0 0
  %97 = vmatprep.subr.bf16.mxu0 0
  %98 = vmatpush2.bf16.msra.mxu0 0
  %99 = vmatprep.subr.bf16.mxu0 0
  %100 = vmatpush2.bf16.msra.mxu0 0
  %101 = vmatprep.subr.bf16.mxu0 0
  %102 = vmatpush2.bf16.msra.mxu0 0
  %103 = vmatprep.subr.bf16.mxu0 0
  %104 = vmatpush2.bf16.msra.mxu0 0
  %105 = vmatprep.subr.bf16.mxu0 0
  %106 = vmatpush2.bf16.msra.mxu0 0
  %107 = vmatprep.mubr.bf16.mxu0 0
  %108 = vmatmul.mubr.bf16.gmra.mxu0 %v73
  %v109 = vpop.f32.mrf.mxu0
  %v110 = vadd.f32 %v58, %v109
  %v111 = vpop.f32.mrf.mxu0
  %v112 = vpop.f32.mrf.mxu0
  %v113 = vpop.f32.mrf.mxu0
  %114 = vdwg.mxu0
  %v115 = vmax.f32 %v110, 0.0
  %v117 = vrot.slane %v115, 5
  %vm119 = vcmask 1042432
  %v120 = vsel %vm119, 0.0, %v117
  %v121 = vld [vmem:[%s6] sm:$0xff]
  %v122 = vmul.f32 %v120, %v121
  %v123 = vpack.c.bf16 %v122, %v122
  %v124 = vld [vmem:[%s5] sm:$0xf]
  %v125 = vld [vmem:[%s5 + $0x4] sm:$0xf]
  %v126 = vrot.slane %v115, 6
  %vm128 = vcmask 1041408
  %v129 = vsel %vm128, 0.0, %v126
  %s130 = scalar_lea.vmem %s6, 8
  %v131 = vld [vmem:[%s130] sm:$0xff]
  %v132 = vmul.f32 %v129, %v131
  %v133 = vpack.c.bf16 %v132, %v132
  %s134 = scalar_lea.vmem %s5, 8
  %v135 = vld [vmem:[%s134] sm:$0xf]
  %v136 = vld [vmem:[%s134 + $0x4] sm:$0xf]
  %v139 = vunpack.c.l.b16 %v135
  %v140 = vunpack.c.l.b16 %v136
  %v141 = vpack.c.b16 %v140, %v139
  %vm143 = vcmask 130048
  %v145 = vsel %vm143, %v133, 0
  %147 = vmatprep.subr.bf16.mxu0 0
  %148 = vmatpush1.bf16.msra.mxu0 0
  %149 = vmatprep.subr.bf16.mxu0 0
  %150 = vmatpush1.bf16.msra.mxu0 0
  %151 = vmatprep.subr.bf16.mxu0 0
  %152 = vmatpush1.bf16.msra.mxu0 0
  %153 = vmatprep.subr.bf16.mxu0 0
  %154 = vmatpush1.bf16.msra.mxu0 0
  %155 = vmatprep.subr.bf16.mxu0 0
  %156 = vmatpush1.bf16.msra.mxu0 0
  %157 = vmatprep.subr.bf16.mxu0 0
  %158 = vmatpush1.bf16.msra.mxu0 0
  %159 = vmatprep.subr.bf16.mxu0 0
  %160 = vmatpush1.bf16.msra.mxu0 0
  %161 = vmatprep.subr.bf16.mxu0 0
  %162 = vmatpush1.bf16.msra.mxu0 %v141
  %163 = vmatprep.subr.bf16.mxu0 0
  %164 = vmatpush2.bf16.msra.mxu0 0
  %165 = vmatprep.subr.bf16.mxu0 0
  %166 = vmatpush2.bf16.msra.mxu0 0
  %167 = vmatprep.subr.bf16.mxu0 0
  %168 = vmatpush2.bf16.msra.mxu0 0
  %169 = vmatprep.subr.bf16.mxu0 0
  %170 = vmatpush2.bf16.msra.mxu0 0
  %171 = vmatprep.subr.bf16.mxu0 0
  %172 = vmatpush2.bf16.msra.mxu0 0
  %173 = vmatprep.subr.bf16.mxu0 0
  %174 = vmatpush2.bf16.msra.mxu0 0
  %175 = vmatprep.subr.bf16.mxu0 0
  %176 = vmatpush2.bf16.msra.mxu0 0
  %177 = vmatprep.subr.bf16.mxu0 0
  %178 = vmatpush2.bf16.msra.mxu0 0
  %179 = vmatprep.mubr.bf16.mxu0 0
  %180 = vmatmul.mubr.bf16.gmra.mxu0 %v145
  %v181 = vpop.f32.mrf.mxu0
  %v182 = vadd.f32 0.0, %v181
  %v183 = vpop.f32.mrf.mxu0
  %v184 = vpop.f32.mrf.mxu0
  %v185 = vpop.f32.mrf.mxu0
  %186 = vdwg.mxu0
  %v189 = vunpack.c.l.b16 %v124
  %v190 = vunpack.c.l.b16 %v125
  %v191 = vpack.c.b16 %v190, %v189
  %v194 = vsel %vm143, %v123, 0
  %196 = vmatprep.subr.bf16.mxu0 0
  %197 = vmatpush1.bf16.msra.mxu0 0
  %198 = vmatprep.subr.bf16.mxu0 0
  %199 = vmatpush1.bf16.msra.mxu0 0
  %200 = vmatprep.subr.bf16.mxu0 0
  %201 = vmatpush1.bf16.msra.mxu0 0
  %202 = vmatprep.subr.bf16.mxu0 0
  %203 = vmatpush1.bf16.msra.mxu0 0
  %204 = vmatprep.subr.bf16.mxu0 0
  %205 = vmatpush1.bf16.msra.mxu0 0
  %206 = vmatprep.subr.bf16.mxu0 0
  %207 = vmatpush1.bf16.msra.mxu0 0
  %208 = vmatprep.subr.bf16.mxu0 0
  %209 = vmatpush1.bf16.msra.mxu0 0
  %210 = vmatprep.subr.bf16.mxu0 0
  %211 = vmatpush1.bf16.msra.mxu0 %v191
  %212 = vmatprep.subr.bf16.mxu0 0
  %213 = vmatpush2.bf16.msra.mxu0 0
  %214 = vmatprep.subr.bf16.mxu0 0
  %215 = vmatpush2.bf16.msra.mxu0 0
  %216 = vmatprep.subr.bf16.mxu0 0
  %217 = vmatpush2.bf16.msra.mxu0 0
  %218 = vmatprep.subr.bf16.mxu0 0
  %219 = vmatpush2.bf16.msra.mxu0 0
  %220 = vmatprep.subr.bf16.mxu0 0
  %221 = vmatpush2.bf16.msra.mxu0 0
  %222 = vmatprep.subr.bf16.mxu0 0
  %223 = vmatpush2.bf16.msra.mxu0 0
  %224 = vmatprep.subr.bf16.mxu0 0
  %225 = vmatpush2.bf16.msra.mxu0 0
  %226 = vmatprep.subr.bf16.mxu0 0
  %227 = vmatpush2.bf16.msra.mxu0 0
  %228 = vmatprep.mubr.bf16.mxu0 0
  %229 = vmatmul.mubr.bf16.gmra.mxu0 %v194
  %v230 = vpop.f32.mrf.mxu0
  %v231 = vadd.f32 %v182, %v230
  %v232 = vpop.f32.mrf.mxu0
  %v233 = vpop.f32.mrf.mxu0
  %v234 = vpop.f32.mrf.mxu0
  %235 = vdwg.mxu0
  %v236 = vrot.slane %v115, 7
  %vm238 = vcmask 1040384
  %v239 = vsel %vm238, 0.0, %v236
  %s240 = scalar_lea.vmem %s6, 16
  %v241 = vld [vmem:[%s240] sm:$0xff]
  %v242 = vmul.f32 %v239, %v241
  %v243 = vpack.c.bf16 %v242, %v242
  %s244 = scalar_lea.vmem %s5, 16
  %v245 = vld [vmem:[%s244] sm:$0xf]
  %v246 = vld [vmem:[%s244 + $0x4] sm:$0xf]
  %v249 = vunpack.c.l.b16 %v245
  %v250 = vunpack.c.l.b16 %v246
  %v251 = vpack.c.b16 %v250, %v249
  %v254 = vsel %vm143, %v243, 0
  %256 = vmatprep.subr.bf16.mxu0 0
  %257 = vmatpush1.bf16.msra.mxu0 0
  %258 = vmatprep.subr.bf16.mxu0 0
  %259 = vmatpush1.bf16.msra.mxu0 0
  %260 = vmatprep.subr.bf16.mxu0 0
  %261 = vmatpush1.bf16.msra.mxu0 0
  %262 = vmatprep.subr.bf16.mxu0 0
  %263 = vmatpush1.bf16.msra.mxu0 0
  %264 = vmatprep.subr.bf16.mxu0 0
  %265 = vmatpush1.bf16.msra.mxu0 0
  %266 = vmatprep.subr.bf16.mxu0 0
  %267 = vmatpush1.bf16.msra.mxu0 0
  %268 = vmatprep.subr.bf16.mxu0 0
  %269 = vmatpush1.bf16.msra.mxu0 0
  %270 = vmatprep.subr.bf16.mxu0 0
  %271 = vmatpush1.bf16.msra.mxu0 %v251
  %272 = vmatprep.subr.bf16.mxu0 0
  %273 = vmatpush2.bf16.msra.mxu0 0
  %274 = vmatprep.subr.bf16.mxu0 0
  %275 = vmatpush2.bf16.msra.mxu0 0
  %276 = vmatprep.subr.bf16.mxu0 0
  %277 = vmatpush2.bf16.msra.mxu0 0
  %278 = vmatprep.subr.bf16.mxu0 0
  %279 = vmatpush2.bf16.msra.mxu0 0
  %280 = vmatprep.subr.bf16.mxu0 0
  %281 = vmatpush2.bf16.msra.mxu0 0
  %282 = vmatprep.subr.bf16.mxu0 0
  %283 = vmatpush2.bf16.msra.mxu0 0
  %284 = vmatprep.subr.bf16.mxu0 0
  %285 = vmatpush2.bf16.msra.mxu0 0
  %286 = vmatprep.subr.bf16.mxu0 0
  %287 = vmatpush2.bf16.msra.mxu0 0
  %288 = vmatprep.mubr.bf16.mxu0 0
  %289 = vmatmul.mubr.bf16.gmra.mxu0 %v254
  %v290 = vpop.f32.mrf.mxu0
  %v291 = vadd.f32 0.0, %v290
  %v292 = vpop.f32.mrf.mxu0
  %v293 = vpop.f32.mrf.mxu0
  %v294 = vpop.f32.mrf.mxu0
  %295 = vdwg.mxu0
  %v296 = vadd.f32 %v231, %v291
  %s297 = scalar_lea.vmem %s6, 24
  %v298 = vld [vmem:[%s297] sm:$0xff]
  %v299 = vmul.f32 %v239, %v298
  %v300 = vpack.c.bf16 %v299, %v299
  %s301 = scalar_lea.vmem %s5, 24
  %v302 = vld [vmem:[%s301] sm:$0xf]
  %v303 = vld [vmem:[%s301 + $0x4] sm:$0xf]
  %v306 = vunpack.c.l.b16 %v302
  %v307 = vunpack.c.l.b16 %v303
  %v308 = vpack.c.b16 %v307, %v306
  %v311 = vsel %vm143, %v300, 0
  %313 = vmatprep.subr.bf16.mxu0 0
  %314 = vmatpush1.bf16.msra.mxu0 0
  %315 = vmatprep.subr.bf16.mxu0 0
  %316 = vmatpush1.bf16.msra.mxu0 0
  %317 = vmatprep.subr.bf16.mxu0 0
  %318 = vmatpush1.bf16.msra.mxu0 0
  %319 = vmatprep.subr.bf16.mxu0 0
  %320 = vmatpush1.bf16.msra.mxu0 0
  %321 = vmatprep.subr.bf16.mxu0 0
  %322 = vmatpush1.bf16.msra.mxu0 0
  %323 = vmatprep.subr.bf16.mxu0 0
  %324 = vmatpush1.bf16.msra.mxu0 0
  %325 = vmatprep.subr.bf16.mxu0 0
  %326 = vmatpush1.bf16.msra.mxu0 0
  %327 = vmatprep.subr.bf16.mxu0 0
  %328 = vmatpush1.bf16.msra.mxu0 %v308
  %329 = vmatprep.subr.bf16.mxu0 0
  %330 = vmatpush2.bf16.msra.mxu0 0
  %331 = vmatprep.subr.bf16.mxu0 0
  %332 = vmatpush2.bf16.msra.mxu0 0
  %333 = vmatprep.subr.bf16.mxu0 0
  %334 = vmatpush2.bf16.msra.mxu0 0
  %335 = vmatprep.subr.bf16.mxu0 0
  %336 = vmatpush2.bf16.msra.mxu0 0
  %337 = vmatprep.subr.bf16.mxu0 0
  %338 = vmatpush2.bf16.msra.mxu0 0
  %339 = vmatprep.subr.bf16.mxu0 0
  %340 = vmatpush2.bf16.msra.mxu0 0
  %341 = vmatprep.subr.bf16.mxu0 0
  %342 = vmatpush2.bf16.msra.mxu0 0
  %343 = vmatprep.subr.bf16.mxu0 0
  %344 = vmatpush2.bf16.msra.mxu0 0
  %345 = vmatprep.mubr.bf16.mxu0 0
  %346 = vmatmul.mubr.bf16.gmra.mxu0 %v311
  %v347 = vpop.f32.mrf.mxu0
  %v348 = vadd.f32 0.0, %v347
  %v349 = vpop.f32.mrf.mxu0
  %v350 = vpop.f32.mrf.mxu0
  %v351 = vpop.f32.mrf.mxu0
  %352 = vdwg.mxu0
  %v353 = vadd.f32 %v296, %v348
  %s354 = scalar_lea.vmem %s6, 32
  %v355 = vld [vmem:[%s354] sm:$0xff]
  %v356 = vmul.f32 %v115, %v355
  %v357 = vpack.c.bf16 %v356, %v356
  %s358 = scalar_lea.vmem %s5, 32
  %v359 = vld [vmem:[%s358] sm:$0xf]
  %v360 = vld [vmem:[%s358 + $0x4] sm:$0xf]
  %v363 = vunpack.c.l.b16 %v359
  %v364 = vunpack.c.l.b16 %v360
  %v365 = vpack.c.b16 %v364, %v363
  %v368 = vsel %vm143, %v357, 0
  %370 = vmatprep.subr.bf16.mxu0 0
  %371 = vmatpush1.bf16.msra.mxu0 0
  %372 = vmatprep.subr.bf16.mxu0 0
  %373 = vmatpush1.bf16.msra.mxu0 0
  %374 = vmatprep.subr.bf16.mxu0 0
  %375 = vmatpush1.bf16.msra.mxu0 0
  %376 = vmatprep.subr.bf16.mxu0 0
  %377 = vmatpush1.bf16.msra.mxu0 0
  %378 = vmatprep.subr.bf16.mxu0 0
  %379 = vmatpush1.bf16.msra.mxu0 0
  %380 = vmatprep.subr.bf16.mxu0 0
  %381 = vmatpush1.bf16.msra.mxu0 0
  %382 = vmatprep.subr.bf16.mxu0 0
  %383 = vmatpush1.bf16.msra.mxu0 0
  %384 = vmatprep.subr.bf16.mxu0 0
  %385 = vmatpush1.bf16.msra.mxu0 %v365
  %386 = vmatprep.subr.bf16.mxu0 0
  %387 = vmatpush2.bf16.msra.mxu0 0
  %388 = vmatprep.subr.bf16.mxu0 0
  %389 = vmatpush2.bf16.msra.mxu0 0
  %390 = vmatprep.subr.bf16.mxu0 0
  %391 = vmatpush2.bf16.msra.mxu0 0
  %392 = vmatprep.subr.bf16.mxu0 0
  %393 = vmatpush2.bf16.msra.mxu0 0
  %394 = vmatprep.subr.bf16.mxu0 0
  %395 = vmatpush2.bf16.msra.mxu0 0
  %396 = vmatprep.subr.bf16.mxu0 0
  %397 = vmatpush2.bf16.msra.mxu0 0
  %398 = vmatprep.subr.bf16.mxu0 0
  %399 = vmatpush2.bf16.msra.mxu0 0
  %400 = vmatprep.subr.bf16.mxu0 0
  %401 = vmatpush2.bf16.msra.mxu0 0
  %402 = vmatprep.mubr.bf16.mxu0 0
  %403 = vmatmul.mubr.bf16.gmra.mxu0 %v368
  %v404 = vpop.f32.mrf.mxu0
  %v405 = vadd.f32 0.0, %v404
  %v406 = vpop.f32.mrf.mxu0
  %v407 = vpop.f32.mrf.mxu0
  %v408 = vpop.f32.mrf.mxu0
  %409 = vdwg.mxu0
  %v410 = vadd.f32 %v353, %v405
  %v411 = vrot.slane %v115, 1
  %vm413 = vcmask 1046528
  %v414 = vsel %vm413, %v411, 0.0
  %s415 = scalar_lea.vmem %s6, 40
  %v416 = vld [vmem:[%s415] sm:$0xff]
  %v417 = vmul.f32 %v414, %v416
  %v418 = vpack.c.bf16 %v417, %v417
  %s419 = scalar_lea.vmem %s5, 40
  %v420 = vld [vmem:[%s419] sm:$0xf]
  %v421 = vld [vmem:[%s419 + $0x4] sm:$0xf]
  %v424 = vunpack.c.l.b16 %v420
  %v425 = vunpack.c.l.b16 %v421
  %v426 = vpack.c.b16 %v425, %v424
  %v429 = vsel %vm143, %v418, 0
  %431 = vmatprep.subr.bf16.mxu0 0
  %432 = vmatpush1.bf16.msra.mxu0 0
  %433 = vmatprep.subr.bf16.mxu0 0
  %434 = vmatpush1.bf16.msra.mxu0 0
  %435 = vmatprep.subr.bf16.mxu0 0
  %436 = vmatpush1.bf16.msra.mxu0 0
  %437 = vmatprep.subr.bf16.mxu0 0
  %438 = vmatpush1.bf16.msra.mxu0 0
  %439 = vmatprep.subr.bf16.mxu0 0
  %440 = vmatpush1.bf16.msra.mxu0 0
  %441 = vmatprep.subr.bf16.mxu0 0
  %442 = vmatpush1.bf16.msra.mxu0 0
  %443 = vmatprep.subr.bf16.mxu0 0
  %444 = vmatpush1.bf16.msra.mxu0 0
  %445 = vmatprep.subr.bf16.mxu0 0
  %446 = vmatpush1.bf16.msra.mxu0 %v426
  %447 = vmatprep.subr.bf16.mxu0 0
  %448 = vmatpush2.bf16.msra.mxu0 0
  %449 = vmatprep.subr.bf16.mxu0 0
  %450 = vmatpush2.bf16.msra.mxu0 0
  %451 = vmatprep.subr.bf16.mxu0 0
  %452 = vmatpush2.bf16.msra.mxu0 0
  %453 = vmatprep.subr.bf16.mxu0 0
  %454 = vmatpush2.bf16.msra.mxu0 0
  %455 = vmatprep.subr.bf16.mxu0 0
  %456 = vmatpush2.bf16.msra.mxu0 0
  %457 = vmatprep.subr.bf16.mxu0 0
  %458 = vmatpush2.bf16.msra.mxu0 0
  %459 = vmatprep.subr.bf16.mxu0 0
  %460 = vmatpush2.bf16.msra.mxu0 0
  %461 = vmatprep.subr.bf16.mxu0 0
  %462 = vmatpush2.bf16.msra.mxu0 0
  %463 = vmatprep.mubr.bf16.mxu0 0
  %464 = vmatmul.mubr.bf16.gmra.mxu0 %v429
  %v465 = vpop.f32.mrf.mxu0
  %v466 = vadd.f32 0.0, %v465
  %v467 = vpop.f32.mrf.mxu0
  %v468 = vpop.f32.mrf.mxu0
  %v469 = vpop.f32.mrf.mxu0
  %470 = vdwg.mxu0
  %v471 = vadd.f32 %v410, %v466
  %s472 = scalar_lea.vmem %s6, 48
  %v473 = vld [vmem:[%s472] sm:$0xff]
  %v474 = vmul.f32 %v414, %v473
  %v475 = vpack.c.bf16 %v474, %v474
  %s476 = scalar_lea.vmem %s5, 48
  %v477 = vld [vmem:[%s476] sm:$0xf]
  %v478 = vld [vmem:[%s476 + $0x4] sm:$0xf]
  %v481 = vunpack.c.l.b16 %v477
  %v482 = vunpack.c.l.b16 %v478
  %v483 = vpack.c.b16 %v482, %v481
  %v486 = vsel %vm143, %v475, 0
  %488 = vmatprep.subr.bf16.mxu0 0
  %489 = vmatpush1.bf16.msra.mxu0 0
  %490 = vmatprep.subr.bf16.mxu0 0
  %491 = vmatpush1.bf16.msra.mxu0 0
  %492 = vmatprep.subr.bf16.mxu0 0
  %493 = vmatpush1.bf16.msra.mxu0 0
  %494 = vmatprep.subr.bf16.mxu0 0
  %495 = vmatpush1.bf16.msra.mxu0 0
  %496 = vmatprep.subr.bf16.mxu0 0
  %497 = vmatpush1.bf16.msra.mxu0 0
  %498 = vmatprep.subr.bf16.mxu0 0
  %499 = vmatpush1.bf16.msra.mxu0 0
  %500 = vmatprep.subr.bf16.mxu0 0
  %501 = vmatpush1.bf16.msra.mxu0 0
  %502 = vmatprep.subr.bf16.mxu0 0
  %503 = vmatpush1.bf16.msra.mxu0 %v483
  %504 = vmatprep.subr.bf16.mxu0 0
  %505 = vmatpush2.bf16.msra.mxu0 0
  %506 = vmatprep.subr.bf16.mxu0 0
  %507 = vmatpush2.bf16.msra.mxu0 0
  %508 = vmatprep.subr.bf16.mxu0 0
  %509 = vmatpush2.bf16.msra.mxu0 0
  %510 = vmatprep.subr.bf16.mxu0 0
  %511 = vmatpush2.bf16.msra.mxu0 0
  %512 = vmatprep.subr.bf16.mxu0 0
  %513 = vmatpush2.bf16.msra.mxu0 0
  %514 = vmatprep.subr.bf16.mxu0 0
  %515 = vmatpush2.bf16.msra.mxu0 0
  %516 = vmatprep.subr.bf16.mxu0 0
  %517 = vmatpush2.bf16.msra.mxu0 0
  %518 = vmatprep.subr.bf16.mxu0 0
  %519 = vmatpush2.bf16.msra.mxu0 0
  %520 = vmatprep.mubr.bf16.mxu0 0
  %521 = vmatmul.mubr.bf16.gmra.mxu0 %v486
  %v522 = vpop.f32.mrf.mxu0
  %v523 = vadd.f32 0.0, %v522
  %v524 = vpop.f32.mrf.mxu0
  %v525 = vpop.f32.mrf.mxu0
  %v526 = vpop.f32.mrf.mxu0
  %527 = vdwg.mxu0
  %v528 = vadd.f32 %v471, %v523
  %v529 = vrot.slane %v115, 2
  %vm531 = vcmask 1045504
  %v532 = vsel %vm531, %v529, 0.0
  %s533 = scalar_lea.vmem %s6, 56
  %v534 = vld [vmem:[%s533] sm:$0xff]
  %v535 = vmul.f32 %v532, %v534
  %v536 = vpack.c.bf16 %v535, %v535
  %s537 = scalar_lea.vmem %s5, 56
  %v538 = vld [vmem:[%s537] sm:$0xf]
  %v539 = vld [vmem:[%s537 + $0x4] sm:$0xf]
  %v542 = vunpack.c.l.b16 %v538
  %v543 = vunpack.c.l.b16 %v539
  %v544 = vpack.c.b16 %v543, %v542
  %v547 = vsel %vm143, %v536, 0
  %549 = vmatprep.subr.bf16.mxu0 0
  %550 = vmatpush1.bf16.msra.mxu0 0
  %551 = vmatprep.subr.bf16.mxu0 0
  %552 = vmatpush1.bf16.msra.mxu0 0
  %553 = vmatprep.subr.bf16.mxu0 0
  %554 = vmatpush1.bf16.msra.mxu0 0
  %555 = vmatprep.subr.bf16.mxu0 0
  %556 = vmatpush1.bf16.msra.mxu0 0
  %557 = vmatprep.subr.bf16.mxu0 0
  %558 = vmatpush1.bf16.msra.mxu0 0
  %559 = vmatprep.subr.bf16.mxu0 0
  %560 = vmatpush1.bf16.msra.mxu0 0
  %561 = vmatprep.subr.bf16.mxu0 0
  %562 = vmatpush1.bf16.msra.mxu0 0
  %563 = vmatprep.subr.bf16.mxu0 0
  %564 = vmatpush1.bf16.msra.mxu0 %v544
  %565 = vmatprep.subr.bf16.mxu0 0
  %566 = vmatpush2.bf16.msra.mxu0 0
  %567 = vmatprep.subr.bf16.mxu0 0
  %568 = vmatpush2.bf16.msra.mxu0 0
  %569 = vmatprep.subr.bf16.mxu0 0
  %570 = vmatpush2.bf16.msra.mxu0 0
  %571 = vmatprep.subr.bf16.mxu0 0
  %572 = vmatpush2.bf16.msra.mxu0 0
  %573 = vmatprep.subr.bf16.mxu0 0
  %574 = vmatpush2.bf16.msra.mxu0 0
  %575 = vmatprep.subr.bf16.mxu0 0
  %576 = vmatpush2.bf16.msra.mxu0 0
  %577 = vmatprep.subr.bf16.mxu0 0
  %578 = vmatpush2.bf16.msra.mxu0 0
  %579 = vmatprep.subr.bf16.mxu0 0
  %580 = vmatpush2.bf16.msra.mxu0 0
  %581 = vmatprep.mubr.bf16.mxu0 0
  %582 = vmatmul.mubr.bf16.gmra.mxu0 %v547
  %v583 = vpop.f32.mrf.mxu0
  %v584 = vadd.f32 0.0, %v583
  %v585 = vpop.f32.mrf.mxu0
  %v586 = vpop.f32.mrf.mxu0
  %v587 = vpop.f32.mrf.mxu0
  %588 = vdwg.mxu0
  %v589 = vadd.f32 %v528, %v584
  %v590 = vrot.slane %v115, 3
  %vm592 = vcmask 1044480
  %v593 = vsel %vm592, %v590, 0.0
  %s594 = scalar_lea.vmem %s6, 64
  %v595 = vld [vmem:[%s594] sm:$0xff]
  %v596 = vmul.f32 %v593, %v595
  %v597 = vpack.c.bf16 %v596, %v596
  %s598 = scalar_lea.vmem %s5, 64
  %v599 = vld [vmem:[%s598] sm:$0xf]
  %v600 = vld [vmem:[%s598 + $0x4] sm:$0xf]
  %v603 = vunpack.c.l.b16 %v599
  %v604 = vunpack.c.l.b16 %v600
  %v605 = vpack.c.b16 %v604, %v603
  %v608 = vsel %vm143, %v597, 0
  %610 = vmatprep.subr.bf16.mxu0 0
  %611 = vmatpush1.bf16.msra.mxu0 0
  %612 = vmatprep.subr.bf16.mxu0 0
  %613 = vmatpush1.bf16.msra.mxu0 0
  %614 = vmatprep.subr.bf16.mxu0 0
  %615 = vmatpush1.bf16.msra.mxu0 0
  %616 = vmatprep.subr.bf16.mxu0 0
  %617 = vmatpush1.bf16.msra.mxu0 0
  %618 = vmatprep.subr.bf16.mxu0 0
  %619 = vmatpush1.bf16.msra.mxu0 0
  %620 = vmatprep.subr.bf16.mxu0 0
  %621 = vmatpush1.bf16.msra.mxu0 0
  %622 = vmatprep.subr.bf16.mxu0 0
  %623 = vmatpush1.bf16.msra.mxu0 0
  %624 = vmatprep.subr.bf16.mxu0 0
  %625 = vmatpush1.bf16.msra.mxu0 %v605
  %626 = vmatprep.subr.bf16.mxu0 0
  %627 = vmatpush2.bf16.msra.mxu0 0
  %628 = vmatprep.subr.bf16.mxu0 0
  %629 = vmatpush2.bf16.msra.mxu0 0
  %630 = vmatprep.subr.bf16.mxu0 0
  %631 = vmatpush2.bf16.msra.mxu0 0
  %632 = vmatprep.subr.bf16.mxu0 0
  %633 = vmatpush2.bf16.msra.mxu0 0
  %634 = vmatprep.subr.bf16.mxu0 0
  %635 = vmatpush2.bf16.msra.mxu0 0
  %636 = vmatprep.subr.bf16.mxu0 0
  %637 = vmatpush2.bf16.msra.mxu0 0
  %638 = vmatprep.subr.bf16.mxu0 0
  %639 = vmatpush2.bf16.msra.mxu0 0
  %640 = vmatprep.subr.bf16.mxu0 0
  %641 = vmatpush2.bf16.msra.mxu0 0
  %642 = vmatprep.mubr.bf16.mxu0 0
  %643 = vmatmul.mubr.bf16.gmra.mxu0 %v608
  %v644 = vpop.f32.mrf.mxu0
  %v645 = vadd.f32 0.0, %v644
  %v646 = vpop.f32.mrf.mxu0
  %v647 = vpop.f32.mrf.mxu0
  %v648 = vpop.f32.mrf.mxu0
  %649 = vdwg.mxu0
  %v650 = vadd.f32 %v589, %v645
  %652 = vrot.lane.b32.xlu0 %v650, 16
  %v653 = vpop.permute.xlu0 %652
  %vm655 = vcmask 195712
  %656 = vst.msk [vmem:[%s7] sm:$0xff] %vm655, %v653
  %v657 = vld [vmem:[%s7] sm:$0xff]
  %s658 = scalar_lea.vmem %s1, 1
  %v659 = vld [vmem:[%s658] sm:$0x1]
  %v661 = vlaneseq
  %v662 = vshrl.u32 %v661, 7
  %v663 = vsub.s32 0, %v662
  %v664 = vrot.slane %v659, %v663
  %v666 = vmul.f32 %v657, %v664
  %s667 = scalar_lea.vmem %s2, 1
  %v668 = vld [vmem:[%s667] sm:$0x1]
  %v670 = vlaneseq
  %v671 = vshrl.u32 %v670, 7
  %v672 = vsub.s32 0, %v671
  %v673 = vrot.slane %v668, %v672
  %v675 = vadd.f32 %v666, %v673
  %v676 = vmax.f32 %v675, 0.0
  %v677 = vpack.c.bf16 %v676, %v676
  %s678 = scalar_lea.vmem %s3, 16
  %v679 = vld [vmem:[%s678] sm:$0xf]
  %v680 = vld [vmem:[%s678 + $0x4] sm:$0xf]
  %v681 = vld [vmem:[%s678 + $0x8] sm:$0xf]
  %v682 = vld [vmem:[%s678 + $0xc] sm:$0xf]
  %s683 = scalar_lea.vmem %s4, 1
  %v684 = vld [vmem:[%s683] sm:$0x1]
  %v686 = vlaneseq
  %v687 = vshrl.u32 %v686, 7
  %v688 = vsub.s32 0, %v687
  %v689 = vrot.slane %v684, %v688
  %v695 = vunpack.c.l.b16 %v679
  %v696 = vunpack.c.l.b16 %v680
  %v697 = vunpack.c.l.b16 %v681
  %v698 = vunpack.c.l.b16 %v682
  %v699 = vpack.c.b16 %v696, %v695
  %v700 = vpack.c.b16 %v698, %v697
  %v704 = vsel %vm28, %v677, 0
  %706 = vmatprep.subr.bf16.mxu0 0
  %707 = vmatpush1.bf16.msra.mxu0 0
  %708 = vmatprep.subr.bf16.mxu0 0
  %709 = vmatpush1.bf16.msra.mxu0 0
  %710 = vmatprep.subr.bf16.mxu0 0
  %711 = vmatpush1.bf16.msra.mxu0 0
  %712 = vmatprep.subr.bf16.mxu0 0
  %713 = vmatpush1.bf16.msra.mxu0 0
  %714 = vmatprep.subr.bf16.mxu0 0
  %715 = vmatpush1.bf16.msra.mxu0 0
  %716 = vmatprep.subr.bf16.mxu0 0
  %717 = vmatpush1.bf16.msra.mxu0 0
  %718 = vmatprep.subr.bf16.mxu0 0
  %719 = vmatpush1.bf16.msra.mxu0 %v700
  %720 = vmatprep.subr.bf16.mxu0 0
  %721 = vmatpush1.bf16.msra.mxu0 %v699
  %722 = vmatprep.subr.bf16.mxu0 0
  %723 = vmatpush2.bf16.msra.mxu0 0
  %724 = vmatprep.subr.bf16.mxu0 0
  %725 = vmatpush2.bf16.msra.mxu0 0
  %726 = vmatprep.subr.bf16.mxu0 0
  %727 = vmatpush2.bf16.msra.mxu0 0
  %728 = vmatprep.subr.bf16.mxu0 0
  %729 = vmatpush2.bf16.msra.mxu0 0
  %730 = vmatprep.subr.bf16.mxu0 0
  %731 = vmatpush2.bf16.msra.mxu0 0
  %732 = vmatprep.subr.bf16.mxu0 0
  %733 = vmatpush2.bf16.msra.mxu0 0
  %734 = vmatprep.subr.bf16.mxu0 0
  %735 = vmatpush2.bf16.msra.mxu0 0
  %736 = vmatprep.subr.bf16.mxu0 0
  %737 = vmatpush2.bf16.msra.mxu0 0
  %738 = vmatprep.mubr.bf16.mxu0 0
  %739 = vmatmul.mubr.bf16.gmra.mxu0 %v704
  %v740 = vpop.f32.mrf.mxu0
  %v741 = vadd.f32 %v689, %v740
  %v742 = vpop.f32.mrf.mxu0
  %v743 = vpop.f32.mrf.mxu0
  %v744 = vpop.f32.mrf.mxu0
  %745 = vdwg.mxu0
  %v746 = vmax.f32 %v741, 0.0
  %v748 = vrot.slane %v746, 5
  %v750 = vsel %vm119, 0.0, %v748
  %v751 = vld [vmem:[%s6] sm:$0xff]
  %v752 = vmul.f32 %v750, %v751
  %v753 = vpack.c.bf16 %v752, %v752
  %s754 = scalar_lea.vmem %s5, 72
  %v755 = vld [vmem:[%s754] sm:$0xf]
  %v756 = vld [vmem:[%s754 + $0x4] sm:$0xf]
  %v757 = vrot.slane %v746, 6
  %v759 = vsel %vm128, 0.0, %v757
  %v760 = vld [vmem:[%s130] sm:$0xff]
  %v761 = vmul.f32 %v759, %v760
  %v762 = vpack.c.bf16 %v761, %v761
  %s763 = scalar_lea.vmem %s5, 80
  %v764 = vld [vmem:[%s763] sm:$0xf]
  %v765 = vld [vmem:[%s763 + $0x4] sm:$0xf]
  %v768 = vunpack.c.l.b16 %v764
  %v769 = vunpack.c.l.b16 %v765
  %v770 = vpack.c.b16 %v769, %v768
  %v773 = vsel %vm143, %v762, 0
  %775 = vmatprep.subr.bf16.mxu0 0
  %776 = vmatpush1.bf16.msra.mxu0 0
  %777 = vmatprep.subr.bf16.mxu0 0
  %778 = vmatpush1.bf16.msra.mxu0 0
  %779 = vmatprep.subr.bf16.mxu0 0
  %780 = vmatpush1.bf16.msra.mxu0 0
  %781 = vmatprep.subr.bf16.mxu0 0
  %782 = vmatpush1.bf16.msra.mxu0 0
  %783 = vmatprep.subr.bf16.mxu0 0
  %784 = vmatpush1.bf16.msra.mxu0 0
  %785 = vmatprep.subr.bf16.mxu0 0
  %786 = vmatpush1.bf16.msra.mxu0 0
  %787 = vmatprep.subr.bf16.mxu0 0
  %788 = vmatpush1.bf16.msra.mxu0 0
  %789 = vmatprep.subr.bf16.mxu0 0
  %790 = vmatpush1.bf16.msra.mxu0 %v770
  %791 = vmatprep.subr.bf16.mxu0 0
  %792 = vmatpush2.bf16.msra.mxu0 0
  %793 = vmatprep.subr.bf16.mxu0 0
  %794 = vmatpush2.bf16.msra.mxu0 0
  %795 = vmatprep.subr.bf16.mxu0 0
  %796 = vmatpush2.bf16.msra.mxu0 0
  %797 = vmatprep.subr.bf16.mxu0 0
  %798 = vmatpush2.bf16.msra.mxu0 0
  %799 = vmatprep.subr.bf16.mxu0 0
  %800 = vmatpush2.bf16.msra.mxu0 0
  %801 = vmatprep.subr.bf16.mxu0 0
  %802 = vmatpush2.bf16.msra.mxu0 0
  %803 = vmatprep.subr.bf16.mxu0 0
  %804 = vmatpush2.bf16.msra.mxu0 0
  %805 = vmatprep.subr.bf16.mxu0 0
  %806 = vmatpush2.bf16.msra.mxu0 0
  %807 = vmatprep.mubr.bf16.mxu0 0
  %808 = vmatmul.mubr.bf16.gmra.mxu0 %v773
  %v809 = vpop.f32.mrf.mxu0
  %v810 = vadd.f32 0.0, %v809
  %v811 = vpop.f32.mrf.mxu0
  %v812 = vpop.f32.mrf.mxu0
  %v813 = vpop.f32.mrf.mxu0
  %814 = vdwg.mxu0
  %v817 = vunpack.c.l.b16 %v755
  %v818 = vunpack.c.l.b16 %v756
  %v819 = vpack.c.b16 %v818, %v817
  %v822 = vsel %vm143, %v753, 0
  %824 = vmatprep.subr.bf16.mxu0 0
  %825 = vmatpush1.bf16.msra.mxu0 0
  %826 = vmatprep.subr.bf16.mxu0 0
  %827 = vmatpush1.bf16.msra.mxu0 0
  %828 = vmatprep.subr.bf16.mxu0 0
  %829 = vmatpush1.bf16.msra.mxu0 0
  %830 = vmatprep.subr.bf16.mxu0 0
  %831 = vmatpush1.bf16.msra.mxu0 0
  %832 = vmatprep.subr.bf16.mxu0 0
  %833 = vmatpush1.bf16.msra.mxu0 0
  %834 = vmatprep.subr.bf16.mxu0 0
  %835 = vmatpush1.bf16.msra.mxu0 0
  %836 = vmatprep.subr.bf16.mxu0 0
  %837 = vmatpush1.bf16.msra.mxu0 0
  %838 = vmatprep.subr.bf16.mxu0 0
  %839 = vmatpush1.bf16.msra.mxu0 %v819
  %840 = vmatprep.subr.bf16.mxu0 0
  %841 = vmatpush2.bf16.msra.mxu0 0
  %842 = vmatprep.subr.bf16.mxu0 0
  %843 = vmatpush2.bf16.msra.mxu0 0
  %844 = vmatprep.subr.bf16.mxu0 0
  %845 = vmatpush2.bf16.msra.mxu0 0
  %846 = vmatprep.subr.bf16.mxu0 0
  %847 = vmatpush2.bf16.msra.mxu0 0
  %848 = vmatprep.subr.bf16.mxu0 0
  %849 = vmatpush2.bf16.msra.mxu0 0
  %850 = vmatprep.subr.bf16.mxu0 0
  %851 = vmatpush2.bf16.msra.mxu0 0
  %852 = vmatprep.subr.bf16.mxu0 0
  %853 = vmatpush2.bf16.msra.mxu0 0
  %854 = vmatprep.subr.bf16.mxu0 0
  %855 = vmatpush2.bf16.msra.mxu0 0
  %856 = vmatprep.mubr.bf16.mxu0 0
  %857 = vmatmul.mubr.bf16.gmra.mxu0 %v822
  %v858 = vpop.f32.mrf.mxu0
  %v859 = vadd.f32 %v810, %v858
  %v860 = vpop.f32.mrf.mxu0
  %v861 = vpop.f32.mrf.mxu0
  %v862 = vpop.f32.mrf.mxu0
  %863 = vdwg.mxu0
  %v864 = vrot.slane %v746, 7
  %v866 = vsel %vm238, 0.0, %v864
  %v867 = vld [vmem:[%s240] sm:$0xff]
  %v868 = vmul.f32 %v866, %v867
  %v869 = vpack.c.bf16 %v868, %v868
  %s870 = scalar_lea.vmem %s5, 88
  %v871 = vld [vmem:[%s870] sm:$0xf]
  %v872 = vld [vmem:[%s870 + $0x4] sm:$0xf]
  %v875 = vunpack.c.l.b16 %v871
  %v876 = vunpack.c.l.b16 %v872
  %v877 = vpack.c.b16 %v876, %v875
  %v880 = vsel %vm143, %v869, 0
  %882 = vmatprep.subr.bf16.mxu0 0
  %883 = vmatpush1.bf16.msra.mxu0 0
  %884 = vmatprep.subr.bf16.mxu0 0
  %885 = vmatpush1.bf16.msra.mxu0 0
  %886 = vmatprep.subr.bf16.mxu0 0
  %887 = vmatpush1.bf16.msra.mxu0 0
  %888 = vmatprep.subr.bf16.mxu0 0
  %889 = vmatpush1.bf16.msra.mxu0 0
  %890 = vmatprep.subr.bf16.mxu0 0
  %891 = vmatpush1.bf16.msra.mxu0 0
  %892 = vmatprep.subr.bf16.mxu0 0
  %893 = vmatpush1.bf16.msra.mxu0 0
  %894 = vmatprep.subr.bf16.mxu0 0
  %895 = vmatpush1.bf16.msra.mxu0 0
  %896 = vmatprep.subr.bf16.mxu0 0
  %897 = vmatpush1.bf16.msra.mxu0 %v877
  %898 = vmatprep.subr.bf16.mxu0 0
  %899 = vmatpush2.bf16.msra.mxu0 0
  %900 = vmatprep.subr.bf16.mxu0 0
  %901 = vmatpush2.bf16.msra.mxu0 0
  %902 = vmatprep.subr.bf16.mxu0 0
  %903 = vmatpush2.bf16.msra.mxu0 0
  %904 = vmatprep.subr.bf16.mxu0 0
  %905 = vmatpush2.bf16.msra.mxu0 0
  %906 = vmatprep.subr.bf16.mxu0 0
  %907 = vmatpush2.bf16.msra.mxu0 0
  %908 = vmatprep.subr.bf16.mxu0 0
  %909 = vmatpush2.bf16.msra.mxu0 0
  %910 = vmatprep.subr.bf16.mxu0 0
  %911 = vmatpush2.bf16.msra.mxu0 0
  %912 = vmatprep.subr.bf16.mxu0 0
  %913 = vmatpush2.bf16.msra.mxu0 0
  %914 = vmatprep.mubr.bf16.mxu0 0
  %915 = vmatmul.mubr.bf16.gmra.mxu0 %v880
  %v916 = vpop.f32.mrf.mxu0
  %v917 = vadd.f32 0.0, %v916
  %v918 = vpop.f32.mrf.mxu0
  %v919 = vpop.f32.mrf.mxu0
  %v920 = vpop.f32.mrf.mxu0
  %921 = vdwg.mxu0
  %v922 = vadd.f32 %v859, %v917
  %v923 = vld [vmem:[%s297] sm:$0xff]
  %v924 = vmul.f32 %v866, %v923
  %v925 = vpack.c.bf16 %v924, %v924
  %s926 = scalar_lea.vmem %s5, 96
  %v927 = vld [vmem:[%s926] sm:$0xf]
  %v928 = vld [vmem:[%s926 + $0x4] sm:$0xf]
  %v931 = vunpack.c.l.b16 %v927
  %v932 = vunpack.c.l.b16 %v928
  %v933 = vpack.c.b16 %v932, %v931
  %v936 = vsel %vm143, %v925, 0
  %938 = vmatprep.subr.bf16.mxu0 0
  %939 = vmatpush1.bf16.msra.mxu0 0
  %940 = vmatprep.subr.bf16.mxu0 0
  %941 = vmatpush1.bf16.msra.mxu0 0
  %942 = vmatprep.subr.bf16.mxu0 0
  %943 = vmatpush1.bf16.msra.mxu0 0
  %944 = vmatprep.subr.bf16.mxu0 0
  %945 = vmatpush1.bf16.msra.mxu0 0
  %946 = vmatprep.subr.bf16.mxu0 0
  %947 = vmatpush1.bf16.msra.mxu0 0
  %948 = vmatprep.subr.bf16.mxu0 0
  %949 = vmatpush1.bf16.msra.mxu0 0
  %950 = vmatprep.subr.bf16.mxu0 0
  %951 = vmatpush1.bf16.msra.mxu0 0
  %952 = vmatprep.subr.bf16.mxu0 0
  %953 = vmatpush1.bf16.msra.mxu0 %v933
  %954 = vmatprep.subr.bf16.mxu0 0
  %955 = vmatpush2.bf16.msra.mxu0 0
  %956 = vmatprep.subr.bf16.mxu0 0
  %957 = vmatpush2.bf16.msra.mxu0 0
  %958 = vmatprep.subr.bf16.mxu0 0
  %959 = vmatpush2.bf16.msra.mxu0 0
  %960 = vmatprep.subr.bf16.mxu0 0
  %961 = vmatpush2.bf16.msra.mxu0 0
  %962 = vmatprep.subr.bf16.mxu0 0
  %963 = vmatpush2.bf16.msra.mxu0 0
  %964 = vmatprep.subr.bf16.mxu0 0
  %965 = vmatpush2.bf16.msra.mxu0 0
  %966 = vmatprep.subr.bf16.mxu0 0
  %967 = vmatpush2.bf16.msra.mxu0 0
  %968 = vmatprep.subr.bf16.mxu0 0
  %969 = vmatpush2.bf16.msra.mxu0 0
  %970 = vmatprep.mubr.bf16.mxu0 0
  %971 = vmatmul.mubr.bf16.gmra.mxu0 %v936
  %v972 = vpop.f32.mrf.mxu0
  %v973 = vadd.f32 0.0, %v972
  %v974 = vpop.f32.mrf.mxu0
  %v975 = vpop.f32.mrf.mxu0
  %v976 = vpop.f32.mrf.mxu0
  %977 = vdwg.mxu0
  %v978 = vadd.f32 %v922, %v973
  %v979 = vld [vmem:[%s354] sm:$0xff]
  %v980 = vmul.f32 %v746, %v979
  %v981 = vpack.c.bf16 %v980, %v980
  %s982 = scalar_lea.vmem %s5, 104
  %v983 = vld [vmem:[%s982] sm:$0xf]
  %v984 = vld [vmem:[%s982 + $0x4] sm:$0xf]
  %v987 = vunpack.c.l.b16 %v983
  %v988 = vunpack.c.l.b16 %v984
  %v989 = vpack.c.b16 %v988, %v987
  %v992 = vsel %vm143, %v981, 0
  %994 = vmatprep.subr.bf16.mxu0 0
  %995 = vmatpush1.bf16.msra.mxu0 0
  %996 = vmatprep.subr.bf16.mxu0 0
  %997 = vmatpush1.bf16.msra.mxu0 0
  %998 = vmatprep.subr.bf16.mxu0 0
  %999 = vmatpush1.bf16.msra.mxu0 0
  %1000 = vmatprep.subr.bf16.mxu0 0
  %1001 = vmatpush1.bf16.msra.mxu0 0
  %1002 = vmatprep.subr.bf16.mxu0 0
  %1003 = vmatpush1.bf16.msra.mxu0 0
  %1004 = vmatprep.subr.bf16.mxu0 0
  %1005 = vmatpush1.bf16.msra.mxu0 0
  %1006 = vmatprep.subr.bf16.mxu0 0
  %1007 = vmatpush1.bf16.msra.mxu0 0
  %1008 = vmatprep.subr.bf16.mxu0 0
  %1009 = vmatpush1.bf16.msra.mxu0 %v989
  %1010 = vmatprep.subr.bf16.mxu0 0
  %1011 = vmatpush2.bf16.msra.mxu0 0
  %1012 = vmatprep.subr.bf16.mxu0 0
  %1013 = vmatpush2.bf16.msra.mxu0 0
  %1014 = vmatprep.subr.bf16.mxu0 0
  %1015 = vmatpush2.bf16.msra.mxu0 0
  %1016 = vmatprep.subr.bf16.mxu0 0
  %1017 = vmatpush2.bf16.msra.mxu0 0
  %1018 = vmatprep.subr.bf16.mxu0 0
  %1019 = vmatpush2.bf16.msra.mxu0 0
  %1020 = vmatprep.subr.bf16.mxu0 0
  %1021 = vmatpush2.bf16.msra.mxu0 0
  %1022 = vmatprep.subr.bf16.mxu0 0
  %1023 = vmatpush2.bf16.msra.mxu0 0
  %1024 = vmatprep.subr.bf16.mxu0 0
  %1025 = vmatpush2.bf16.msra.mxu0 0
  %1026 = vmatprep.mubr.bf16.mxu0 0
  %1027 = vmatmul.mubr.bf16.gmra.mxu0 %v992
  %v1028 = vpop.f32.mrf.mxu0
  %v1029 = vadd.f32 0.0, %v1028
  %v1030 = vpop.f32.mrf.mxu0
  %v1031 = vpop.f32.mrf.mxu0
  %v1032 = vpop.f32.mrf.mxu0
  %1033 = vdwg.mxu0
  %v1034 = vadd.f32 %v978, %v1029
  %v1035 = vrot.slane %v746, 1
  %v1037 = vsel %vm413, %v1035, 0.0
  %v1038 = vld [vmem:[%s415] sm:$0xff]
  %v1039 = vmul.f32 %v1037, %v1038
  %v1040 = vpack.c.bf16 %v1039, %v1039
  %s1041 = scalar_lea.vmem %s5, 112
  %v1042 = vld [vmem:[%s1041] sm:$0xf]
  %v1043 = vld [vmem:[%s1041 + $0x4] sm:$0xf]
  %v1046 = vunpack.c.l.b16 %v1042
  %v1047 = vunpack.c.l.b16 %v1043
  %v1048 = vpack.c.b16 %v1047, %v1046
  %v1051 = vsel %vm143, %v1040, 0
  %1053 = vmatprep.subr.bf16.mxu0 0
  %1054 = vmatpush1.bf16.msra.mxu0 0
  %1055 = vmatprep.subr.bf16.mxu0 0
  %1056 = vmatpush1.bf16.msra.mxu0 0
  %1057 = vmatprep.subr.bf16.mxu0 0
  %1058 = vmatpush1.bf16.msra.mxu0 0
  %1059 = vmatprep.subr.bf16.mxu0 0
  %1060 = vmatpush1.bf16.msra.mxu0 0
  %1061 = vmatprep.subr.bf16.mxu0 0
  %1062 = vmatpush1.bf16.msra.mxu0 0
  %1063 = vmatprep.subr.bf16.mxu0 0
  %1064 = vmatpush1.bf16.msra.mxu0 0
  %1065 = vmatprep.subr.bf16.mxu0 0
  %1066 = vmatpush1.bf16.msra.mxu0 0
  %1067 = vmatprep.subr.bf16.mxu0 0
  %1068 = vmatpush1.bf16.msra.mxu0 %v1048
  %1069 = vmatprep.subr.bf16.mxu0 0
  %1070 = vmatpush2.bf16.msra.mxu0 0
  %1071 = vmatprep.subr.bf16.mxu0 0
  %1072 = vmatpush2.bf16.msra.mxu0 0
  %1073 = vmatprep.subr.bf16.mxu0 0
  %1074 = vmatpush2.bf16.msra.mxu0 0
  %1075 = vmatprep.subr.bf16.mxu0 0
  %1076 = vmatpush2.bf16.msra.mxu0 0
  %1077 = vmatprep.subr.bf16.mxu0 0
  %1078 = vmatpush2.bf16.msra.mxu0 0
  %1079 = vmatprep.subr.bf16.mxu0 0
  %1080 = vmatpush2.bf16.msra.mxu0 0
  %1081 = vmatprep.subr.bf16.mxu0 0
  %1082 = vmatpush2.bf16.msra.mxu0 0
  %1083 = vmatprep.subr.bf16.mxu0 0
  %1084 = vmatpush2.bf16.msra.mxu0 0
  %1085 = vmatprep.mubr.bf16.mxu0 0
  %1086 = vmatmul.mubr.bf16.gmra.mxu0 %v1051
  %v1087 = vpop.f32.mrf.mxu0
  %v1088 = vadd.f32 0.0, %v1087
  %v1089 = vpop.f32.mrf.mxu0
  %v1090 = vpop.f32.mrf.mxu0
  %v1091 = vpop.f32.mrf.mxu0
  %1092 = vdwg.mxu0
  %v1093 = vadd.f32 %v1034, %v1088
  %v1094 = vld [vmem:[%s472] sm:$0xff]
  %v1095 = vmul.f32 %v1037, %v1094
  %v1096 = vpack.c.bf16 %v1095, %v1095
  %s1097 = scalar_lea.vmem %s5, 120
  %v1098 = vld [vmem:[%s1097] sm:$0xf]
  %v1099 = vld [vmem:[%s1097 + $0x4] sm:$0xf]
  %v1102 = vunpack.c.l.b16 %v1098
  %v1103 = vunpack.c.l.b16 %v1099
  %v1104 = vpack.c.b16 %v1103, %v1102
  %v1107 = vsel %vm143, %v1096, 0
  %1109 = vmatprep.subr.bf16.mxu0 0
  %1110 = vmatpush1.bf16.msra.mxu0 0
  %1111 = vmatprep.subr.bf16.mxu0 0
  %1112 = vmatpush1.bf16.msra.mxu0 0
  %1113 = vmatprep.subr.bf16.mxu0 0
  %1114 = vmatpush1.bf16.msra.mxu0 0
  %1115 = vmatprep.subr.bf16.mxu0 0
  %1116 = vmatpush1.bf16.msra.mxu0 0
  %1117 = vmatprep.subr.bf16.mxu0 0
  %1118 = vmatpush1.bf16.msra.mxu0 0
  %1119 = vmatprep.subr.bf16.mxu0 0
  %1120 = vmatpush1.bf16.msra.mxu0 0
  %1121 = vmatprep.subr.bf16.mxu0 0
  %1122 = vmatpush1.bf16.msra.mxu0 0
  %1123 = vmatprep.subr.bf16.mxu0 0
  %1124 = vmatpush1.bf16.msra.mxu0 %v1104
  %1125 = vmatprep.subr.bf16.mxu0 0
  %1126 = vmatpush2.bf16.msra.mxu0 0
  %1127 = vmatprep.subr.bf16.mxu0 0
  %1128 = vmatpush2.bf16.msra.mxu0 0
  %1129 = vmatprep.subr.bf16.mxu0 0
  %1130 = vmatpush2.bf16.msra.mxu0 0
  %1131 = vmatprep.subr.bf16.mxu0 0
  %1132 = vmatpush2.bf16.msra.mxu0 0
  %1133 = vmatprep.subr.bf16.mxu0 0
  %1134 = vmatpush2.bf16.msra.mxu0 0
  %1135 = vmatprep.subr.bf16.mxu0 0
  %1136 = vmatpush2.bf16.msra.mxu0 0
  %1137 = vmatprep.subr.bf16.mxu0 0
  %1138 = vmatpush2.bf16.msra.mxu0 0
  %1139 = vmatprep.subr.bf16.mxu0 0
  %1140 = vmatpush2.bf16.msra.mxu0 0
  %1141 = vmatprep.mubr.bf16.mxu0 0
  %1142 = vmatmul.mubr.bf16.gmra.mxu0 %v1107
  %v1143 = vpop.f32.mrf.mxu0
  %v1144 = vadd.f32 0.0, %v1143
  %v1145 = vpop.f32.mrf.mxu0
  %v1146 = vpop.f32.mrf.mxu0
  %v1147 = vpop.f32.mrf.mxu0
  %1148 = vdwg.mxu0
  %v1149 = vadd.f32 %v1093, %v1144
  %v1150 = vrot.slane %v746, 2
  %v1152 = vsel %vm531, %v1150, 0.0
  %v1153 = vld [vmem:[%s533] sm:$0xff]
  %v1154 = vmul.f32 %v1152, %v1153
  %v1155 = vpack.c.bf16 %v1154, %v1154
  %s1156 = scalar_lea.vmem %s5, 128
  %v1157 = vld [vmem:[%s1156] sm:$0xf]
  %v1158 = vld [vmem:[%s1156 + $0x4] sm:$0xf]
  %v1161 = vunpack.c.l.b16 %v1157
  %v1162 = vunpack.c.l.b16 %v1158
  %v1163 = vpack.c.b16 %v1162, %v1161
  %v1166 = vsel %vm143, %v1155, 0
  %1168 = vmatprep.subr.bf16.mxu0 0
  %1169 = vmatpush1.bf16.msra.mxu0 0
  %1170 = vmatprep.subr.bf16.mxu0 0
  %1171 = vmatpush1.bf16.msra.mxu0 0
  %1172 = vmatprep.subr.bf16.mxu0 0
  %1173 = vmatpush1.bf16.msra.mxu0 0
  %1174 = vmatprep.subr.bf16.mxu0 0
  %1175 = vmatpush1.bf16.msra.mxu0 0
  %1176 = vmatprep.subr.bf16.mxu0 0
  %1177 = vmatpush1.bf16.msra.mxu0 0
  %1178 = vmatprep.subr.bf16.mxu0 0
  %1179 = vmatpush1.bf16.msra.mxu0 0
  %1180 = vmatprep.subr.bf16.mxu0 0
  %1181 = vmatpush1.bf16.msra.mxu0 0
  %1182 = vmatprep.subr.bf16.mxu0 0
  %1183 = vmatpush1.bf16.msra.mxu0 %v1163
  %1184 = vmatprep.subr.bf16.mxu0 0
  %1185 = vmatpush2.bf16.msra.mxu0 0
  %1186 = vmatprep.subr.bf16.mxu0 0
  %1187 = vmatpush2.bf16.msra.mxu0 0
  %1188 = vmatprep.subr.bf16.mxu0 0
  %1189 = vmatpush2.bf16.msra.mxu0 0
  %1190 = vmatprep.subr.bf16.mxu0 0
  %1191 = vmatpush2.bf16.msra.mxu0 0
  %1192 = vmatprep.subr.bf16.mxu0 0
  %1193 = vmatpush2.bf16.msra.mxu0 0
  %1194 = vmatprep.subr.bf16.mxu0 0
  %1195 = vmatpush2.bf16.msra.mxu0 0
  %1196 = vmatprep.subr.bf16.mxu0 0
  %1197 = vmatpush2.bf16.msra.mxu0 0
  %1198 = vmatprep.subr.bf16.mxu0 0
  %1199 = vmatpush2.bf16.msra.mxu0 0
  %1200 = vmatprep.mubr.bf16.mxu0 0
  %1201 = vmatmul.mubr.bf16.gmra.mxu0 %v1166
  %v1202 = vpop.f32.mrf.mxu0
  %v1203 = vadd.f32 0.0, %v1202
  %v1204 = vpop.f32.mrf.mxu0
  %v1205 = vpop.f32.mrf.mxu0
  %v1206 = vpop.f32.mrf.mxu0
  %1207 = vdwg.mxu0
  %v1208 = vadd.f32 %v1149, %v1203
  %v1209 = vrot.slane %v746, 3
  %v1211 = vsel %vm592, %v1209, 0.0
  %v1212 = vld [vmem:[%s594] sm:$0xff]
  %v1213 = vmul.f32 %v1211, %v1212
  %v1214 = vpack.c.bf16 %v1213, %v1213
  %s1215 = scalar_lea.vmem %s5, 136
  %v1216 = vld [vmem:[%s1215] sm:$0xf]
  %v1217 = vld [vmem:[%s1215 + $0x4] sm:$0xf]
  %v1220 = vunpack.c.l.b16 %v1216
  %v1221 = vunpack.c.l.b16 %v1217
  %v1222 = vpack.c.b16 %v1221, %v1220
  %v1225 = vsel %vm143, %v1214, 0
  %1227 = vmatprep.subr.bf16.mxu0 0
  %1228 = vmatpush1.bf16.msra.mxu0 0
  %1229 = vmatprep.subr.bf16.mxu0 0
  %1230 = vmatpush1.bf16.msra.mxu0 0
  %1231 = vmatprep.subr.bf16.mxu0 0
  %1232 = vmatpush1.bf16.msra.mxu0 0
  %1233 = vmatprep.subr.bf16.mxu0 0
  %1234 = vmatpush1.bf16.msra.mxu0 0
  %1235 = vmatprep.subr.bf16.mxu0 0
  %1236 = vmatpush1.bf16.msra.mxu0 0
  %1237 = vmatprep.subr.bf16.mxu0 0
  %1238 = vmatpush1.bf16.msra.mxu0 0
  %1239 = vmatprep.subr.bf16.mxu0 0
  %1240 = vmatpush1.bf16.msra.mxu0 0
  %1241 = vmatprep.subr.bf16.mxu0 0
  %1242 = vmatpush1.bf16.msra.mxu0 %v1222
  %1243 = vmatprep.subr.bf16.mxu0 0
  %1244 = vmatpush2.bf16.msra.mxu0 0
  %1245 = vmatprep.subr.bf16.mxu0 0
  %1246 = vmatpush2.bf16.msra.mxu0 0
  %1247 = vmatprep.subr.bf16.mxu0 0
  %1248 = vmatpush2.bf16.msra.mxu0 0
  %1249 = vmatprep.subr.bf16.mxu0 0
  %1250 = vmatpush2.bf16.msra.mxu0 0
  %1251 = vmatprep.subr.bf16.mxu0 0
  %1252 = vmatpush2.bf16.msra.mxu0 0
  %1253 = vmatprep.subr.bf16.mxu0 0
  %1254 = vmatpush2.bf16.msra.mxu0 0
  %1255 = vmatprep.subr.bf16.mxu0 0
  %1256 = vmatpush2.bf16.msra.mxu0 0
  %1257 = vmatprep.subr.bf16.mxu0 0
  %1258 = vmatpush2.bf16.msra.mxu0 0
  %1259 = vmatprep.mubr.bf16.mxu0 0
  %1260 = vmatmul.mubr.bf16.gmra.mxu0 %v1225
  %v1261 = vpop.f32.mrf.mxu0
  %v1262 = vadd.f32 0.0, %v1261
  %v1263 = vpop.f32.mrf.mxu0
  %v1264 = vpop.f32.mrf.mxu0
  %v1265 = vpop.f32.mrf.mxu0
  %1266 = vdwg.mxu0
  %v1267 = vadd.f32 %v1208, %v1262
  %1269 = vrot.lane.b32.xlu0 %v1267, 24
  %v1270 = vpop.permute.xlu0 %1269
  %vm1272 = vcmask 261312
  %1273 = vst.msk [vmem:[%s7] sm:$0xff] %vm1272, %v1270
  // Predicated region
  $region30: #{a_call__.8} parent=0 // pred_check
    _
  $region31: #{a_call__.8} parent=0 // pred_check_branch
    %1275 = sbr.rel (0) target = $region33
  $region32: #{a_call__.8} parent=0 // pred_region
    _
  $region33: #{a_call__.8} parent=0 // pred_fallthru
    _
  // Predicated region
  $region34: #{a_call__.8} parent=0 // pred_check
    _
  $region35: #{a_call__.8} parent=0 // pred_check_branch
    %1277 = sbr.rel (0) target = $region37
  $region36: #{a_call__.8} parent=0 // pred_region
    _
  $region37: #{a_call__.8} parent=0 // pred_fallthru
    _

// kernel: a_call__.6
$region0: #{a_call__.6}
  #allocation0 [shape = 'u32[]', space=smem, size = 0x4, offset = 0x4, fixed_abs, tag = 'smem constant byte address 0x4 - core index']
  #allocation1 [shape = 'u32[144,128]{1,0:T(1,128)}', space=vmem, size = 0x12000, scoped, tag = 'internal scratch']
  %s0 = inlined_call_operand.vmem [shape: f32[32,32], index: 0, kind: input, shape index: {}]
  %s1 = inlined_call_operand.vmem [shape: f32[2,1,32], index: 1, kind: input, shape index: {}]
  %s2 = inlined_call_operand.vmem [shape: f32[2,1,32], index: 2, kind: input, shape index: {}]
  %s3 = inlined_call_operand.vmem [shape: bf16[2,32,16], index: 3, kind: input, shape index: {}]
  %s4 = inlined_call_operand.vmem [shape: f32[2,1,16], index: 4, kind: input, shape index: {}]
  %s5 = inlined_call_operand.vmem [shape: bf16[18,16,8], index: 5, kind: input, shape index: {}]
  %s6 = inlined_call_operand.vmem [shape: f32[9,32,16], index: 6, kind: input, shape index: {}]
  %s7 = inlined_call_operand.vmem [shape: f32[32,32], index: 7, kind: output, shape index: {}]
  %s8 = sld [smem:[#allocation0]]
  $region38: #{a_call__.6} parent=0
    _
  %s10 = ssub.s32 1, %s8
  %s11 = scalar_select 0, %s10, %s8
  // Predicated region
  $region2: #{a_call__.6} parent=0 // pred_check
    _
  $region3: #{a_call__.6} parent=0 // pred_check_branch
    %13 = sbr.rel (0) target = $region5
  $region4: #{a_call__.6} parent=0 // pred_region
    _
  $region5: #{a_call__.6} parent=0 // pred_fallthru
    _
  // Predicated region
  $region6: #{a_call__.6} parent=0 // pred_check
    _
  $region7: #{a_call__.6} parent=0 // pred_check_branch
    %15 = sbr.rel (0) target = $region9
  $region8: #{a_call__.6} parent=0 // pred_region
    _
  $region9: #{a_call__.6} parent=0 // pred_fallthru
    _
  // Predicated region
  $region10: #{a_call__.6} parent=0 // pred_check
    _
  $region11: #{a_call__.6} parent=0 // pred_check_branch
    %17 = sbr.rel (0) target = $region13
  $region12: #{a_call__.6} parent=0 // pred_region
    _
  $region13: #{a_call__.6} parent=0 // pred_fallthru
    _
  // Predicated region
  $region14: #{a_call__.6} parent=0 // pred_check
    _
  $region15: #{a_call__.6} parent=0 // pred_check_branch
    %19 = sbr.rel (0) target = $region17
  $region16: #{a_call__.6} parent=0 // pred_region
    _
  $region17: #{a_call__.6} parent=0 // pred_fallthru
    _
  // Predicated region
  $region18: #{a_call__.6} parent=0 // pred_check
    _
  $region19: #{a_call__.6} parent=0 // pred_check_branch
    %21 = sbr.rel (0) target = $region21
  $region20: #{a_call__.6} parent=0 // pred_region
    _
  $region21: #{a_call__.6} parent=0 // pred_fallthru
    _
  // Predicated region
  $region22: #{a_call__.6} parent=0 // pred_check
    _
  $region23: #{a_call__.6} parent=0 // pred_check_branch
    %23 = sbr.rel (0) target = $region25
  $region24: #{a_call__.6} parent=0 // pred_region
    _
  $region25: #{a_call__.6} parent=0 // pred_fallthru
    _
  // Predicated region
  $region26: #{a_call__.6} parent=0 // pred_check
    _
  $region27: #{a_call__.6} parent=0 // pred_check_branch
    %25 = sbr.rel (0) target = $region29
  $region28: #{a_call__.6} parent=0 // pred_region
    _
  $region29: #{a_call__.6} parent=0 // pred_fallthru
    _
  %v27 = vld [vmem:[%s0] sm:$0xff]
  %v28 = vld [vmem:[%s0 + $0x8] sm:$0xff]
  %v29 = vld [vmem:[%s0 + $0x10] sm:$0xff]
  %v30 = vld [vmem:[%s0 + $0x18] sm:$0xff]
  %vm31 = vcmask 261120
  %32 = vst.msk [vmem:[%s7] sm:$0xff] %vm31, %v27
  %33 = vst.msk [vmem:[%s7 + $0x8] sm:$0xff] %vm31, %v28
  %34 = vst.msk [vmem:[%s7 + $0x10] sm:$0xff] %vm31, %v29
  %35 = vst.msk [vmem:[%s7 + $0x18] sm:$0xff] %vm31, %v30
  %v36 = vld [vmem:[%s7] sm:$0xff]
  %v37 = vld [vmem:[%s7 + $0x8] sm:$0xff]
  %v38 = vld [vmem:[%s7 + $0x10] sm:$0xff]
  %v39 = vld [vmem:[%s7 + $0x18] sm:$0xff]
  %v40 = vld [vmem:[%s1] sm:$0x1]
  %v42 = vlaneseq
  %v43 = vshrl.u32 %v42, 7
  %v44 = vsub.s32 0, %v43
  %v45 = vrot.slane %v40, %v44
  %v47 = vmul.f32 %v36, %v45
  %v48 = vmul.f32 %v37, %v45
  %v49 = vmul.f32 %v38, %v45
  %v50 = vmul.f32 %v39, %v45
  %v51 = vld [vmem:[%s2] sm:$0x1]
  %v53 = vlaneseq
  %v54 = vshrl.u32 %v53, 7
  %v55 = vsub.s32 0, %v54
  %v56 = vrot.slane %v51, %v55
  %v58 = vadd.f32 %v47, %v56
  %v59 = vadd.f32 %v48, %v56
  %v60 = vadd.f32 %v49, %v56
  %v61 = vadd.f32 %v50, %v56
  %v62 = vmax.f32 %v58, 0.0
  %v63 = vmax.f32 %v59, 0.0
  %v64 = vmax.f32 %v60, 0.0
  %v65 = vmax.f32 %v61, 0.0
  %v66 = vpack.c.bf16 %v63, %v62
  %v67 = vpack.c.bf16 %v65, %v64
  %v68 = vld [vmem:[%s3] sm:$0xf]
  %v69 = vld [vmem:[%s3 + $0x4] sm:$0xf]
  %v70 = vld [vmem:[%s3 + $0x8] sm:$0xf]
  %v71 = vld [vmem:[%s3 + $0xc] sm:$0xf]
  %v72 = vld [vmem:[%s4] sm:$0x1]
  %v74 = vlaneseq
  %v75 = vshrl.u32 %v74, 7
  %v76 = vsub.s32 0, %v75
  %v77 = vrot.slane %v72, %v76
  %v83 = vunpack.c.l.b16 %v68
  %v84 = vunpack.c.l.b16 %v69
  %v85 = vunpack.c.l.b16 %v70
  %v86 = vunpack.c.l.b16 %v71
  %v87 = vpack.c.b16 %v84, %v83
  %v88 = vpack.c.b16 %v86, %v85
  %v92 = vsel %vm31, %v66, 0
  %v95 = vsel %vm31, %v67, 0
  %97 = vmatprep.subr.bf16.mxu0 0
  %98 = vmatpush1.bf16.msra.mxu0 0
  %99 = vmatprep.subr.bf16.mxu0 0
  %100 = vmatpush1.bf16.msra.mxu0 0
  %101 = vmatprep.subr.bf16.mxu0 0
  %102 = vmatpush1.bf16.msra.mxu0 0
  %103 = vmatprep.subr.bf16.mxu0 0
  %104 = vmatpush1.bf16.msra.mxu0 0
  %105 = vmatprep.subr.bf16.mxu0 0
  %106 = vmatpush1.bf16.msra.mxu0 0
  %107 = vmatprep.subr.bf16.mxu0 0
  %108 = vmatpush1.bf16.msra.mxu0 0
  %109 = vmatprep.subr.bf16.mxu0 0
  %110 = vmatpush1.bf16.msra.mxu0 %v88
  %111 = vmatprep.subr.bf16.mxu0 0
  %112 = vmatpush1.bf16.msra.mxu0 %v87
  %113 = vmatprep.subr.bf16.mxu0 0
  %114 = vmatpush2.bf16.msra.mxu0 0
  %115 = vmatprep.subr.bf16.mxu0 0
  %116 = vmatpush2.bf16.msra.mxu0 0
  %117 = vmatprep.subr.bf16.mxu0 0
  %118 = vmatpush2.bf16.msra.mxu0 0
  %119 = vmatprep.subr.bf16.mxu0 0
  %120 = vmatpush2.bf16.msra.mxu0 0
  %121 = vmatprep.subr.bf16.mxu0 0
  %122 = vmatpush2.bf16.msra.mxu0 0
  %123 = vmatprep.subr.bf16.mxu0 0
  %124 = vmatpush2.bf16.msra.mxu0 0
  %125 = vmatprep.subr.bf16.mxu0 0
  %126 = vmatpush2.bf16.msra.mxu0 0
  %127 = vmatprep.subr.bf16.mxu0 0
  %128 = vmatpush2.bf16.msra.mxu0 0
  %129 = vmatprep.mubr.bf16.mxu0 0
  %130 = vmatmul.mubr.bf16.gmra.mxu0 %v92
  %v131 = vpop.f32.mrf.mxu0
  %v132 = vadd.f32 %v77, %v131
  %v133 = vpop.f32.mrf.mxu0
  %v134 = vpop.f32.mrf.mxu0
  %v135 = vadd.f32 %v77, %v134
  %v136 = vpop.f32.mrf.mxu0
  %137 = vmatprep.mubr.bf16.mxu0 0
  %138 = vmatmul.mubr.bf16.gmra.mxu0 %v95
  %v139 = vpop.f32.mrf.mxu0
  %v140 = vadd.f32 %v77, %v139
  %v141 = vpop.f32.mrf.mxu0
  %v142 = vpop.f32.mrf.mxu0
  %v143 = vadd.f32 %v77, %v142
  %v144 = vpop.f32.mrf.mxu0
  %145 = vdwg.mxu0
  %v146 = vmax.f32 %v132, 0.0
  %v147 = vmax.f32 %v135, 0.0
  %v148 = vmax.f32 %v140, 0.0
  %v149 = vmax.f32 %v143, 0.0
  %vm154 = vcmask 1044480
  %v155 = vrot.slane %v146, 3
  %v156 = vrot.slane %v147, 3
  %v157 = vsel %vm154, %v155, %v156
  %v158 = vrot.slane %v148, 3
  %v159 = vsel %vm154, %v156, %v158
  %v160 = vrot.slane %v149, 3
  %v161 = vsel %vm154, %v158, %v160
  %v166 = vsel %vm154, 0.0, %v155
  %v167 = vld [vmem:[%s6] sm:$0xff]
  %v168 = vld [vmem:[%s6 + $0x8] sm:$0xff]
  %v169 = vld [vmem:[%s6 + $0x10] sm:$0xff]
  %v170 = vld [vmem:[%s6 + $0x18] sm:$0xff]
  %v171 = vmul.f32 %v166, %v167
  %v172 = vmul.f32 %v157, %v168
  %v173 = vmul.f32 %v159, %v169
  %v174 = vmul.f32 %v161, %v170
  %v175 = vpack.c.bf16 %v172, %v171
  %v176 = vpack.c.bf16 %v174, %v173
  %v177 = vld [vmem:[%s5] sm:$0xf]
  %v178 = vld [vmem:[%s5 + $0x4] sm:$0xf]
  %vm179 = vcmask 1043456
  %v180 = vrot.slane %v146, 4
  %v181 = vrot.slane %v147, 4
  %v182 = vsel %vm179, %v180, %v181
  %v183 = vrot.slane %v148, 4
  %v184 = vsel %vm179, %v181, %v183
  %v185 = vrot.slane %v149, 4
  %v186 = vsel %vm179, %v183, %v185
  %v191 = vsel %vm179, 0.0, %v180
  %s192 = scalar_lea.vmem %s6, 32
  %v193 = vld [vmem:[%s192] sm:$0xff]
  %v194 = vld [vmem:[%s192 + $0x8] sm:$0xff]
  %v195 = vld [vmem:[%s192 + $0x10] sm:$0xff]
  %v196 = vld [vmem:[%s192 + $0x18] sm:$0xff]
  %v197 = vmul.f32 %v191, %v193
  %v198 = vmul.f32 %v182, %v194
  %v199 = vmul.f32 %v184, %v195
  %v200 = vmul.f32 %v186, %v196
  %v201 = vpack.c.bf16 %v198, %v197
  %v202 = vpack.c.bf16 %v200, %v199
  %s203 = scalar_lea.vmem %s5, 8
  %v204 = vld [vmem:[%s203] sm:$0xf]
  %v205 = vld [vmem:[%s203 + $0x4] sm:$0xf]
  %v208 = vunpack.c.l.b16 %v204
  %v209 = vunpack.c.l.b16 %v205
  %v210 = vpack.c.b16 %v209, %v208
  %vm212 = vcmask 130048
  %v214 = vsel %vm212, %v201, 0
  %v217 = vsel %vm212, %v202, 0
  %219 = vmatprep.subr.bf16.mxu0 0
  %220 = vmatpush1.bf16.msra.mxu0 0
  %221 = vmatprep.subr.bf16.mxu0 0
  %222 = vmatpush1.bf16.msra.mxu0 0
  %223 = vmatprep.subr.bf16.mxu0 0
  %224 = vmatpush1.bf16.msra.mxu0 0
  %225 = vmatprep.subr.bf16.mxu0 0
  %226 = vmatpush1.bf16.msra.mxu0 0
  %227 = vmatprep.subr.bf16.mxu0 0
  %228 = vmatpush1.bf16.msra.mxu0 0
  %229 = vmatprep.subr.bf16.mxu0 0
  %230 = vmatpush1.bf16.msra.mxu0 0
  %231 = vmatprep.subr.bf16.mxu0 0
  %232 = vmatpush1.bf16.msra.mxu0 0
  %233 = vmatprep.subr.bf16.mxu0 0
  %234 = vmatpush1.bf16.msra.mxu0 %v210
  %235 = vmatprep.subr.bf16.mxu0 0
  %236 = vmatpush2.bf16.msra.mxu0 0
  %237 = vmatprep.subr.bf16.mxu0 0
  %238 = vmatpush2.bf16.msra.mxu0 0
  %239 = vmatprep.subr.bf16.mxu0 0
  %240 = vmatpush2.bf16.msra.mxu0 0
  %241 = vmatprep.subr.bf16.mxu0 0
  %242 = vmatpush2.bf16.msra.mxu0 0
  %243 = vmatprep.subr.bf16.mxu0 0
  %244 = vmatpush2.bf16.msra.mxu0 0
  %245 = vmatprep.subr.bf16.mxu0 0
  %246 = vmatpush2.bf16.msra.mxu0 0
  %247 = vmatprep.subr.bf16.mxu0 0
  %248 = vmatpush2.bf16.msra.mxu0 0
  %249 = vmatprep.subr.bf16.mxu0 0
  %250 = vmatpush2.bf16.msra.mxu0 0
  %251 = vmatprep.mubr.bf16.mxu0 0
  %252 = vmatmul.mubr.bf16.gmra.mxu0 %v214
  %v253 = vpop.f32.mrf.mxu0
  %v254 = vadd.f32 0.0, %v253
  %v255 = vpop.f32.mrf.mxu0
  %v256 = vpop.f32.mrf.mxu0
  %v257 = vadd.f32 0.0, %v256
  %v258 = vpop.f32.mrf.mxu0
  %259 = vmatprep.mubr.bf16.mxu0 0
  %260 = vmatmul.mubr.bf16.gmra.mxu0 %v217
  %v261 = vpop.f32.mrf.mxu0
  %v262 = vadd.f32 0.0, %v261
  %v263 = vpop.f32.mrf.mxu0
  %v264 = vpop.f32.mrf.mxu0
  %v265 = vadd.f32 0.0, %v264
  %v266 = vpop.f32.mrf.mxu0
  %267 = vdwg.mxu0
  %v270 = vunpack.c.l.b16 %v177
  %v271 = vunpack.c.l.b16 %v178
  %v272 = vpack.c.b16 %v271, %v270
  %v275 = vsel %vm212, %v175, 0
  %v278 = vsel %vm212, %v176, 0
  %280 = vmatprep.subr.bf16.mxu0 0
  %281 = vmatpush1.bf16.msra.mxu0 0
  %282 = vmatprep.subr.bf16.mxu0 0
  %283 = vmatpush1.bf16.msra.mxu0 0
  %284 = vmatprep.subr.bf16.mxu0 0
  %285 = vmatpush1.bf16.msra.mxu0 0
  %286 = vmatprep.subr.bf16.mxu0 0
  %287 = vmatpush1.bf16.msra.mxu0 0
  %288 = vmatprep.subr.bf16.mxu0 0
  %289 = vmatpush1.bf16.msra.mxu0 0
  %290 = vmatprep.subr.bf16.mxu0 0
  %291 = vmatpush1.bf16.msra.mxu0 0
  %292 = vmatprep.subr.bf16.mxu0 0
  %293 = vmatpush1.bf16.msra.mxu0 0
  %294 = vmatprep.subr.bf16.mxu0 0
  %295 = vmatpush1.bf16.msra.mxu0 %v272
  %296 = vmatprep.subr.bf16.mxu0 0
  %297 = vmatpush2.bf16.msra.mxu0 0
  %298 = vmatprep.subr.bf16.mxu0 0
  %299 = vmatpush2.bf16.msra.mxu0 0
  %300 = vmatprep.subr.bf16.mxu0 0
  %301 = vmatpush2.bf16.msra.mxu0 0
  %302 = vmatprep.subr.bf16.mxu0 0
  %303 = vmatpush2.bf16.msra.mxu0 0
  %304 = vmatprep.subr.bf16.mxu0 0
  %305 = vmatpush2.bf16.msra.mxu0 0
  %306 = vmatprep.subr.bf16.mxu0 0
  %307 = vmatpush2.bf16.msra.mxu0 0
  %308 = vmatprep.subr.bf16.mxu0 0
  %309 = vmatpush2.bf16.msra.mxu0 0
  %310 = vmatprep.subr.bf16.mxu0 0
  %311 = vmatpush2.bf16.msra.mxu0 0
  %312 = vmatprep.mubr.bf16.mxu0 0
  %313 = vmatmul.mubr.bf16.gmra.mxu0 %v275
  %v314 = vpop.f32.mrf.mxu0
  %v315 = vadd.f32 %v254, %v314
  %v316 = vpop.f32.mrf.mxu0
  %v317 = vpop.f32.mrf.mxu0
  %v318 = vadd.f32 %v257, %v317
  %v319 = vpop.f32.mrf.mxu0
  %320 = vmatprep.mubr.bf16.mxu0 0
  %321 = vmatmul.mubr.bf16.gmra.mxu0 %v278
  %v322 = vpop.f32.mrf.mxu0
  %v323 = vadd.f32 %v262, %v322
  %v324 = vpop.f32.mrf.mxu0
  %v325 = vpop.f32.mrf.mxu0
  %v326 = vadd.f32 %v265, %v325
  %v327 = vpop.f32.mrf.mxu0
  %328 = vdwg.mxu0
  %vm329 = vcmask 1042432
  %v330 = vrot.slane %v146, 5
  %v331 = vrot.slane %v147, 5
  %v332 = vsel %vm329, %v330, %v331
  %v333 = vrot.slane %v148, 5
  %v334 = vsel %vm329, %v331, %v333
  %v335 = vrot.slane %v149, 5
  %v336 = vsel %vm329, %v333, %v335
  %v341 = vsel %vm329, 0.0, %v330
  %s342 = scalar_lea.vmem %s6, 64
  %v343 = vld [vmem:[%s342] sm:$0xff]
  %v344 = vld [vmem:[%s342 + $0x8] sm:$0xff]
  %v345 = vld [vmem:[%s342 + $0x10] sm:$0xff]
  %v346 = vld [vmem:[%s342 + $0x18] sm:$0xff]
  %v347 = vmul.f32 %v341, %v343
  %v348 = vmul.f32 %v332, %v344
  %v349 = vmul.f32 %v334, %v345
  %v350 = vmul.f32 %v336, %v346
  %v351 = vpack.c.bf16 %v348, %v347
  %v352 = vpack.c.bf16 %v350, %v349
  %s353 = scalar_lea.vmem %s5, 16
  %v354 = vld [vmem:[%s353] sm:$0xf]
  %v355 = vld [vmem:[%s353 + $0x4] sm:$0xf]
  %v358 = vunpack.c.l.b16 %v354
  %v359 = vunpack.c.l.b16 %v355
  %v360 = vpack.c.b16 %v359, %v358
  %v363 = vsel %vm212, %v351, 0
  %v366 = vsel %vm212, %v352, 0
  %368 = vmatprep.subr.bf16.mxu0 0
  %369 = vmatpush1.bf16.msra.mxu0 0
  %370 = vmatprep.subr.bf16.mxu0 0
  %371 = vmatpush1.bf16.msra.mxu0 0
  %372 = vmatprep.subr.bf16.mxu0 0
  %373 = vmatpush1.bf16.msra.mxu0 0
  %374 = vmatprep.subr.bf16.mxu0 0
  %375 = vmatpush1.bf16.msra.mxu0 0
  %376 = vmatprep.subr.bf16.mxu0 0
  %377 = vmatpush1.bf16.msra.mxu0 0
  %378 = vmatprep.subr.bf16.mxu0 0
  %379 = vmatpush1.bf16.msra.mxu0 0
  %380 = vmatprep.subr.bf16.mxu0 0
  %381 = vmatpush1.bf16.msra.mxu0 0
  %382 = vmatprep.subr.bf16.mxu0 0
  %383 = vmatpush1.bf16.msra.mxu0 %v360
  %384 = vmatprep.subr.bf16.mxu0 0
  %385 = vmatpush2.bf16.msra.mxu0 0
  %386 = vmatprep.subr.bf16.mxu0 0
  %387 = vmatpush2.bf16.msra.mxu0 0
  %388 = vmatprep.subr.bf16.mxu0 0
  %389 = vmatpush2.bf16.msra.mxu0 0
  %390 = vmatprep.subr.bf16.mxu0 0
  %391 = vmatpush2.bf16.msra.mxu0 0
  %392 = vmatprep.subr.bf16.mxu0 0
  %393 = vmatpush2.bf16.msra.mxu0 0
  %394 = vmatprep.subr.bf16.mxu0 0
  %395 = vmatpush2.bf16.msra.mxu0 0
  %396 = vmatprep.subr.bf16.mxu0 0
  %397 = vmatpush2.bf16.msra.mxu0 0
  %398 = vmatprep.subr.bf16.mxu0 0
  %399 = vmatpush2.bf16.msra.mxu0 0
  %400 = vmatprep.mubr.bf16.mxu0 0
  %401 = vmatmul.mubr.bf16.gmra.mxu0 %v363
  %v402 = vpop.f32.mrf.mxu0
  %v403 = vadd.f32 0.0, %v402
  %v404 = vpop.f32.mrf.mxu0
  %v405 = vpop.f32.mrf.mxu0
  %v406 = vadd.f32 0.0, %v405
  %v407 = vpop.f32.mrf.mxu0
  %408 = vmatprep.mubr.bf16.mxu0 0
  %409 = vmatmul.mubr.bf16.gmra.mxu0 %v366
  %v410 = vpop.f32.mrf.mxu0
  %v411 = vadd.f32 0.0, %v410
  %v412 = vpop.f32.mrf.mxu0
  %v413 = vpop.f32.mrf.mxu0
  %v414 = vadd.f32 0.0, %v413
  %v415 = vpop.f32.mrf.mxu0
  %416 = vdwg.mxu0
  %v417 = vadd.f32 %v315, %v403
  %v418 = vadd.f32 %v318, %v406
  %v419 = vadd.f32 %v323, %v411
  %v420 = vadd.f32 %v326, %v414
  %vm421 = vcmask 1040384
  %v422 = vrot.slane %v146, 7
  %v423 = vrot.slane %v147, 7
  %v424 = vsel %vm421, %v422, %v423
  %v425 = vrot.slane %v148, 7
  %v426 = vsel %vm421, %v423, %v425
  %v427 = vrot.slane %v149, 7
  %v428 = vsel %vm421, %v425, %v427
  %v433 = vsel %vm421, 0.0, %v422
  %s434 = scalar_lea.vmem %s6, 96
  %v435 = vld [vmem:[%s434] sm:$0xff]
  %v436 = vld [vmem:[%s434 + $0x8] sm:$0xff]
  %v437 = vld [vmem:[%s434 + $0x10] sm:$0xff]
  %v438 = vld [vmem:[%s434 + $0x18] sm:$0xff]
  %v439 = vmul.f32 %v433, %v435
  %v440 = vmul.f32 %v424, %v436
  %v441 = vmul.f32 %v426, %v437
  %v442 = vmul.f32 %v428, %v438
  %v443 = vpack.c.bf16 %v440, %v439
  %v444 = vpack.c.bf16 %v442, %v441
  %s445 = scalar_lea.vmem %s5, 24
  %v446 = vld [vmem:[%s445] sm:$0xf]
  %v447 = vld [vmem:[%s445 + $0x4] sm:$0xf]
  %v450 = vunpack.c.l.b16 %v446
  %v451 = vunpack.c.l.b16 %v447
  %v452 = vpack.c.b16 %v451, %v450
  %v455 = vsel %vm212, %v443, 0
  %v458 = vsel %vm212, %v444, 0
  %460 = vmatprep.subr.bf16.mxu0 0
  %461 = vmatpush1.bf16.msra.mxu0 0
  %462 = vmatprep.subr.bf16.mxu0 0
  %463 = vmatpush1.bf16.msra.mxu0 0
  %464 = vmatprep.subr.bf16.mxu0 0
  %465 = vmatpush1.bf16.msra.mxu0 0
  %466 = vmatprep.subr.bf16.mxu0 0
  %467 = vmatpush1.bf16.msra.mxu0 0
  %468 = vmatprep.subr.bf16.mxu0 0
  %469 = vmatpush1.bf16.msra.mxu0 0
  %470 = vmatprep.subr.bf16.mxu0 0
  %471 = vmatpush1.bf16.msra.mxu0 0
  %472 = vmatprep.subr.bf16.mxu0 0
  %473 = vmatpush1.bf16.msra.mxu0 0
  %474 = vmatprep.subr.bf16.mxu0 0
  %475 = vmatpush1.bf16.msra.mxu0 %v452
  %476 = vmatprep.subr.bf16.mxu0 0
  %477 = vmatpush2.bf16.msra.mxu0 0
  %478 = vmatprep.subr.bf16.mxu0 0
  %479 = vmatpush2.bf16.msra.mxu0 0
  %480 = vmatprep.subr.bf16.mxu0 0
  %481 = vmatpush2.bf16.msra.mxu0 0
  %482 = vmatprep.subr.bf16.mxu0 0
  %483 = vmatpush2.bf16.msra.mxu0 0
  %484 = vmatprep.subr.bf16.mxu0 0
  %485 = vmatpush2.bf16.msra.mxu0 0
  %486 = vmatprep.subr.bf16.mxu0 0
  %487 = vmatpush2.bf16.msra.mxu0 0
  %488 = vmatprep.subr.bf16.mxu0 0
  %489 = vmatpush2.bf16.msra.mxu0 0
  %490 = vmatprep.subr.bf16.mxu0 0
  %491 = vmatpush2.bf16.msra.mxu0 0
  %492 = vmatprep.mubr.bf16.mxu0 0
  %493 = vmatmul.mubr.bf16.gmra.mxu0 %v455
  %v494 = vpop.f32.mrf.mxu0
  %v495 = vadd.f32 0.0, %v494
  %v496 = vpop.f32.mrf.mxu0
  %v497 = vpop.f32.mrf.mxu0
  %v498 = vadd.f32 0.0, %v497
  %v499 = vpop.f32.mrf.mxu0
  %500 = vmatprep.mubr.bf16.mxu0 0
  %501 = vmatmul.mubr.bf16.gmra.mxu0 %v458
  %v502 = vpop.f32.mrf.mxu0
  %v503 = vadd.f32 0.0, %v502
  %v504 = vpop.f32.mrf.mxu0
  %v505 = vpop.f32.mrf.mxu0
  %v506 = vadd.f32 0.0, %v505
  %v507 = vpop.f32.mrf.mxu0
  %508 = vdwg.mxu0
  %v509 = vadd.f32 %v417, %v495
  %v510 = vadd.f32 %v418, %v498
  %v511 = vadd.f32 %v419, %v503
  %v512 = vadd.f32 %v420, %v506
  %s513 = scalar_lea.vmem %s6, 128
  %v514 = vld [vmem:[%s513] sm:$0xff]
  %v515 = vld [vmem:[%s513 + $0x8] sm:$0xff]
  %v516 = vld [vmem:[%s513 + $0x10] sm:$0xff]
  %v517 = vld [vmem:[%s513 + $0x18] sm:$0xff]
  %v518 = vmul.f32 %v146, %v514
  %v519 = vmul.f32 %v147, %v515
  %v520 = vmul.f32 %v148, %v516
  %v521 = vmul.f32 %v149, %v517
  %v522 = vpack.c.bf16 %v519, %v518
  %v523 = vpack.c.bf16 %v521, %v520
  %s524 = scalar_lea.vmem %s5, 32
  %v525 = vld [vmem:[%s524] sm:$0xf]
  %v526 = vld [vmem:[%s524 + $0x4] sm:$0xf]
  %v529 = vunpack.c.l.b16 %v525
  %v530 = vunpack.c.l.b16 %v526
  %v531 = vpack.c.b16 %v530, %v529
  %v534 = vsel %vm212, %v522, 0
  %v537 = vsel %vm212, %v523, 0
  %539 = vmatprep.subr.bf16.mxu0 0
  %540 = vmatpush1.bf16.msra.mxu0 0
  %541 = vmatprep.subr.bf16.mxu0 0
  %542 = vmatpush1.bf16.msra.mxu0 0
  %543 = vmatprep.subr.bf16.mxu0 0
  %544 = vmatpush1.bf16.msra.mxu0 0
  %545 = vmatprep.subr.bf16.mxu0 0
  %546 = vmatpush1.bf16.msra.mxu0 0
  %547 = vmatprep.subr.bf16.mxu0 0
  %548 = vmatpush1.bf16.msra.mxu0 0
  %549 = vmatprep.subr.bf16.mxu0 0
  %550 = vmatpush1.bf16.msra.mxu0 0
  %551 = vmatprep.subr.bf16.mxu0 0
  %552 = vmatpush1.bf16.msra.mxu0 0
  %553 = vmatprep.subr.bf16.mxu0 0
  %554 = vmatpush1.bf16.msra.mxu0 %v531
  %555 = vmatprep.subr.bf16.mxu0 0
  %556 = vmatpush2.bf16.msra.mxu0 0
  %557 = vmatprep.subr.bf16.mxu0 0
  %558 = vmatpush2.bf16.msra.mxu0 0
  %559 = vmatprep.subr.bf16.mxu0 0
  %560 = vmatpush2.bf16.msra.mxu0 0
  %561 = vmatprep.subr.bf16.mxu0 0
  %562 = vmatpush2.bf16.msra.mxu0 0
  %563 = vmatprep.subr.bf16.mxu0 0
  %564 = vmatpush2.bf16.msra.mxu0 0
  %565 = vmatprep.subr.bf16.mxu0 0
  %566 = vmatpush2.bf16.msra.mxu0 0
  %567 = vmatprep.subr.bf16.mxu0 0
  %568 = vmatpush2.bf16.msra.mxu0 0
  %569 = vmatprep.subr.bf16.mxu0 0
  %570 = vmatpush2.bf16.msra.mxu0 0
  %571 = vmatprep.mubr.bf16.mxu0 0
  %572 = vmatmul.mubr.bf16.gmra.mxu0 %v534
  %v573 = vpop.f32.mrf.mxu0
  %v574 = vadd.f32 0.0, %v573
  %v575 = vpop.f32.mrf.mxu0
  %v576 = vpop.f32.mrf.mxu0
  %v577 = vadd.f32 0.0, %v576
  %v578 = vpop.f32.mrf.mxu0
  %579 = vmatprep.mubr.bf16.mxu0 0
  %580 = vmatmul.mubr.bf16.gmra.mxu0 %v537
  %v581 = vpop.f32.mrf.mxu0
  %v582 = vadd.f32 0.0, %v581
  %v583 = vpop.f32.mrf.mxu0
  %v584 = vpop.f32.mrf.mxu0
  %v585 = vadd.f32 0.0, %v584
  %v586 = vpop.f32.mrf.mxu0
  %587 = vdwg.mxu0
  %v588 = vadd.f32 %v509, %v574
  %v589 = vadd.f32 %v510, %v577
  %v590 = vadd.f32 %v511, %v582
  %v591 = vadd.f32 %v512, %v585
  %vm592 = vcmask 1046528
  %v593 = vrot.slane %v146, 1
  %v594 = vrot.slane %v147, 1
  %v595 = vsel %vm592, %v593, %v594
  %v596 = vrot.slane %v148, 1
  %v597 = vsel %vm592, %v594, %v596
  %v598 = vrot.slane %v149, 1
  %v599 = vsel %vm592, %v596, %v598
  %v604 = vsel %vm592, %v598, 0.0
  %s605 = scalar_lea.vmem %s6, 160
  %v606 = vld [vmem:[%s605] sm:$0xff]
  %v607 = vld [vmem:[%s605 + $0x8] sm:$0xff]
  %v608 = vld [vmem:[%s605 + $0x10] sm:$0xff]
  %v609 = vld [vmem:[%s605 + $0x18] sm:$0xff]
  %v610 = vmul.f32 %v595, %v606
  %v611 = vmul.f32 %v597, %v607
  %v612 = vmul.f32 %v599, %v608
  %v613 = vmul.f32 %v604, %v609
  %v614 = vpack.c.bf16 %v611, %v610
  %v615 = vpack.c.bf16 %v613, %v612
  %s616 = scalar_lea.vmem %s5, 40
  %v617 = vld [vmem:[%s616] sm:$0xf]
  %v618 = vld [vmem:[%s616 + $0x4] sm:$0xf]
  %v621 = vunpack.c.l.b16 %v617
  %v622 = vunpack.c.l.b16 %v618
  %v623 = vpack.c.b16 %v622, %v621
  %v626 = vsel %vm212, %v614, 0
  %v629 = vsel %vm212, %v615, 0
  %631 = vmatprep.subr.bf16.mxu0 0
  %632 = vmatpush1.bf16.msra.mxu0 0
  %633 = vmatprep.subr.bf16.mxu0 0
  %634 = vmatpush1.bf16.msra.mxu0 0
  %635 = vmatprep.subr.bf16.mxu0 0
  %636 = vmatpush1.bf16.msra.mxu0 0
  %637 = vmatprep.subr.bf16.mxu0 0
  %638 = vmatpush1.bf16.msra.mxu0 0
  %639 = vmatprep.subr.bf16.mxu0 0
  %640 = vmatpush1.bf16.msra.mxu0 0
  %641 = vmatprep.subr.bf16.mxu0 0
  %642 = vmatpush1.bf16.msra.mxu0 0
  %643 = vmatprep.subr.bf16.mxu0 0
  %644 = vmatpush1.bf16.msra.mxu0 0
  %645 = vmatprep.subr.bf16.mxu0 0
  %646 = vmatpush1.bf16.msra.mxu0 %v623
  %647 = vmatprep.subr.bf16.mxu0 0
  %648 = vmatpush2.bf16.msra.mxu0 0
  %649 = vmatprep.subr.bf16.mxu0 0
  %650 = vmatpush2.bf16.msra.mxu0 0
  %651 = vmatprep.subr.bf16.mxu0 0
  %652 = vmatpush2.bf16.msra.mxu0 0
  %653 = vmatprep.subr.bf16.mxu0 0
  %654 = vmatpush2.bf16.msra.mxu0 0
  %655 = vmatprep.subr.bf16.mxu0 0
  %656 = vmatpush2.bf16.msra.mxu0 0
  %657 = vmatprep.subr.bf16.mxu0 0
  %658 = vmatpush2.bf16.msra.mxu0 0
  %659 = vmatprep.subr.bf16.mxu0 0
  %660 = vmatpush2.bf16.msra.mxu0 0
  %661 = vmatprep.subr.bf16.mxu0 0
  %662 = vmatpush2.bf16.msra.mxu0 0
  %663 = vmatprep.mubr.bf16.mxu0 0
  %664 = vmatmul.mubr.bf16.gmra.mxu0 %v626
  %v665 = vpop.f32.mrf.mxu0
  %v666 = vadd.f32 0.0, %v665
  %v667 = vpop.f32.mrf.mxu0
  %v668 = vpop.f32.mrf.mxu0
  %v669 = vadd.f32 0.0, %v668
  %v670 = vpop.f32.mrf.mxu0
  %671 = vmatprep.mubr.bf16.mxu0 0
  %672 = vmatmul.mubr.bf16.gmra.mxu0 %v629
  %v673 = vpop.f32.mrf.mxu0
  %v674 = vadd.f32 0.0, %v673
  %v675 = vpop.f32.mrf.mxu0
  %v676 = vpop.f32.mrf.mxu0
  %v677 = vadd.f32 0.0, %v676
  %v678 = vpop.f32.mrf.mxu0
  %679 = vdwg.mxu0
  %v680 = vadd.f32 %v588, %v666
  %v681 = vadd.f32 %v589, %v669
  %v682 = vadd.f32 %v590, %v674
  %v683 = vadd.f32 %v591, %v677
  %v685 = vsel %vm154, %v160, 0.0
  %s686 = scalar_lea.vmem %s6, 192
  %v687 = vld [vmem:[%s686] sm:$0xff]
  %v688 = vld [vmem:[%s686 + $0x8] sm:$0xff]
  %v689 = vld [vmem:[%s686 + $0x10] sm:$0xff]
  %v690 = vld [vmem:[%s686 + $0x18] sm:$0xff]
  %v691 = vmul.f32 %v157, %v687
  %v692 = vmul.f32 %v159, %v688
  %v693 = vmul.f32 %v161, %v689
  %v694 = vmul.f32 %v685, %v690
  %v695 = vpack.c.bf16 %v692, %v691
  %v696 = vpack.c.bf16 %v694, %v693
  %s697 = scalar_lea.vmem %s5, 48
  %v698 = vld [vmem:[%s697] sm:$0xf]
  %v699 = vld [vmem:[%s697 + $0x4] sm:$0xf]
  %v702 = vunpack.c.l.b16 %v698
  %v703 = vunpack.c.l.b16 %v699
  %v704 = vpack.c.b16 %v703, %v702
  %v707 = vsel %vm212, %v695, 0
  %v710 = vsel %vm212, %v696, 0
  %712 = vmatprep.subr.bf16.mxu0 0
  %713 = vmatpush1.bf16.msra.mxu0 0
  %714 = vmatprep.subr.bf16.mxu0 0
  %715 = vmatpush1.bf16.msra.mxu0 0
  %716 = vmatprep.subr.bf16.mxu0 0
  %717 = vmatpush1.bf16.msra.mxu0 0
  %718 = vmatprep.subr.bf16.mxu0 0
  %719 = vmatpush1.bf16.msra.mxu0 0
  %720 = vmatprep.subr.bf16.mxu0 0
  %721 = vmatpush1.bf16.msra.mxu0 0
  %722 = vmatprep.subr.bf16.mxu0 0
  %723 = vmatpush1.bf16.msra.mxu0 0
  %724 = vmatprep.subr.bf16.mxu0 0
  %725 = vmatpush1.bf16.msra.mxu0 0
  %726 = vmatprep.subr.bf16.mxu0 0
  %727 = vmatpush1.bf16.msra.mxu0 %v704
  %728 = vmatprep.subr.bf16.mxu0 0
  %729 = vmatpush2.bf16.msra.mxu0 0
  %730 = vmatprep.subr.bf16.mxu0 0
  %731 = vmatpush2.bf16.msra.mxu0 0
  %732 = vmatprep.subr.bf16.mxu0 0
  %733 = vmatpush2.bf16.msra.mxu0 0
  %734 = vmatprep.subr.bf16.mxu0 0
  %735 = vmatpush2.bf16.msra.mxu0 0
  %736 = vmatprep.subr.bf16.mxu0 0
  %737 = vmatpush2.bf16.msra.mxu0 0
  %738 = vmatprep.subr.bf16.mxu0 0
  %739 = vmatpush2.bf16.msra.mxu0 0
  %740 = vmatprep.subr.bf16.mxu0 0
  %741 = vmatpush2.bf16.msra.mxu0 0
  %742 = vmatprep.subr.bf16.mxu0 0
  %743 = vmatpush2.bf16.msra.mxu0 0
  %744 = vmatprep.mubr.bf16.mxu0 0
  %745 = vmatmul.mubr.bf16.gmra.mxu0 %v707
  %v746 = vpop.f32.mrf.mxu0
  %v747 = vadd.f32 0.0, %v746
  %v748 = vpop.f32.mrf.mxu0
  %v749 = vpop.f32.mrf.mxu0
  %v750 = vadd.f32 0.0, %v749
  %v751 = vpop.f32.mrf.mxu0
  %752 = vmatprep.mubr.bf16.mxu0 0
  %753 = vmatmul.mubr.bf16.gmra.mxu0 %v710
  %v754 = vpop.f32.mrf.mxu0
  %v755 = vadd.f32 0.0, %v754
  %v756 = vpop.f32.mrf.mxu0
  %v757 = vpop.f32.mrf.mxu0
  %v758 = vadd.f32 0.0, %v757
  %v759 = vpop.f32.mrf.mxu0
  %760 = vdwg.mxu0
  %v761 = vadd.f32 %v680, %v747
  %v762 = vadd.f32 %v681, %v750
  %v763 = vadd.f32 %v682, %v755
  %v764 = vadd.f32 %v683, %v758
  %v766 = vsel %vm179, %v185, 0.0
  %s767 = scalar_lea.vmem %s6, 224
  %v768 = vld [vmem:[%s767] sm:$0xff]
  %v769 = vld [vmem:[%s767 + $0x8] sm:$0xff]
  %v770 = vld [vmem:[%s767 + $0x10] sm:$0xff]
  %v771 = vld [vmem:[%s767 + $0x18] sm:$0xff]
  %v772 = vmul.f32 %v182, %v768
  %v773 = vmul.f32 %v184, %v769
  %v774 = vmul.f32 %v186, %v770
  %v775 = vmul.f32 %v766, %v771
  %v776 = vpack.c.bf16 %v773, %v772
  %v777 = vpack.c.bf16 %v775, %v774
  %s778 = scalar_lea.vmem %s5, 56
  %v779 = vld [vmem:[%s778] sm:$0xf]
  %v780 = vld [vmem:[%s778 + $0x4] sm:$0xf]
  %v783 = vunpack.c.l.b16 %v779
  %v784 = vunpack.c.l.b16 %v780
  %v785 = vpack.c.b16 %v784, %v783
  %v788 = vsel %vm212, %v776, 0
  %v791 = vsel %vm212, %v777, 0
  %793 = vmatprep.subr.bf16.mxu0 0
  %794 = vmatpush1.bf16.msra.mxu0 0
  %795 = vmatprep.subr.bf16.mxu0 0
  %796 = vmatpush1.bf16.msra.mxu0 0
  %797 = vmatprep.subr.bf16.mxu0 0
  %798 = vmatpush1.bf16.msra.mxu0 0
  %799 = vmatprep.subr.bf16.mxu0 0
  %800 = vmatpush1.bf16.msra.mxu0 0
  %801 = vmatprep.subr.bf16.mxu0 0
  %802 = vmatpush1.bf16.msra.mxu0 0
  %803 = vmatprep.subr.bf16.mxu0 0
  %804 = vmatpush1.bf16.msra.mxu0 0
  %805 = vmatprep.subr.bf16.mxu0 0
  %806 = vmatpush1.bf16.msra.mxu0 0
  %807 = vmatprep.subr.bf16.mxu0 0
  %808 = vmatpush1.bf16.msra.mxu0 %v785
  %809 = vmatprep.subr.bf16.mxu0 0
  %810 = vmatpush2.bf16.msra.mxu0 0
  %811 = vmatprep.subr.bf16.mxu0 0
  %812 = vmatpush2.bf16.msra.mxu0 0
  %813 = vmatprep.subr.bf16.mxu0 0
  %814 = vmatpush2.bf16.msra.mxu0 0
  %815 = vmatprep.subr.bf16.mxu0 0
  %816 = vmatpush2.bf16.msra.mxu0 0
  %817 = vmatprep.subr.bf16.mxu0 0
  %818 = vmatpush2.bf16.msra.mxu0 0
  %819 = vmatprep.subr.bf16.mxu0 0
  %820 = vmatpush2.bf16.msra.mxu0 0
  %821 = vmatprep.subr.bf16.mxu0 0
  %822 = vmatpush2.bf16.msra.mxu0 0
  %823 = vmatprep.subr.bf16.mxu0 0
  %824 = vmatpush2.bf16.msra.mxu0 0
  %825 = vmatprep.mubr.bf16.mxu0 0
  %826 = vmatmul.mubr.bf16.gmra.mxu0 %v788
  %v827 = vpop.f32.mrf.mxu0
  %v828 = vadd.f32 0.0, %v827
  %v829 = vpop.f32.mrf.mxu0
  %v830 = vpop.f32.mrf.mxu0
  %v831 = vadd.f32 0.0, %v830
  %v832 = vpop.f32.mrf.mxu0
  %833 = vmatprep.mubr.bf16.mxu0 0
  %834 = vmatmul.mubr.bf16.gmra.mxu0 %v791
  %v835 = vpop.f32.mrf.mxu0
  %v836 = vadd.f32 0.0, %v835
  %v837 = vpop.f32.mrf.mxu0
  %v838 = vpop.f32.mrf.mxu0
  %v839 = vadd.f32 0.0, %v838
  %v840 = vpop.f32.mrf.mxu0
  %841 = vdwg.mxu0
  %v842 = vadd.f32 %v761, %v828
  %v843 = vadd.f32 %v762, %v831
  %v844 = vadd.f32 %v763, %v836
  %v845 = vadd.f32 %v764, %v839
  %v847 = vsel %vm329, %v335, 0.0
  %s848 = scalar_lea.vmem %s6, 256
  %v849 = vld [vmem:[%s848] sm:$0xff]
  %v850 = vld [vmem:[%s848 + $0x8] sm:$0xff]
  %v851 = vld [vmem:[%s848 + $0x10] sm:$0xff]
  %v852 = vld [vmem:[%s848 + $0x18] sm:$0xff]
  %v853 = vmul.f32 %v332, %v849
  %v854 = vmul.f32 %v334, %v850
  %v855 = vmul.f32 %v336, %v851
  %v856 = vmul.f32 %v847, %v852
  %v857 = vpack.c.bf16 %v854, %v853
  %v858 = vpack.c.bf16 %v856, %v855
  %s859 = scalar_lea.vmem %s5, 64
  %v860 = vld [vmem:[%s859] sm:$0xf]
  %v861 = vld [vmem:[%s859 + $0x4] sm:$0xf]
  %v864 = vunpack.c.l.b16 %v860
  %v865 = vunpack.c.l.b16 %v861
  %v866 = vpack.c.b16 %v865, %v864
  %v869 = vsel %vm212, %v857, 0
  %v872 = vsel %vm212, %v858, 0
  %874 = vmatprep.subr.bf16.mxu0 0
  %875 = vmatpush1.bf16.msra.mxu0 0
  %876 = vmatprep.subr.bf16.mxu0 0
  %877 = vmatpush1.bf16.msra.mxu0 0
  %878 = vmatprep.subr.bf16.mxu0 0
  %879 = vmatpush1.bf16.msra.mxu0 0
  %880 = vmatprep.subr.bf16.mxu0 0
  %881 = vmatpush1.bf16.msra.mxu0 0
  %882 = vmatprep.subr.bf16.mxu0 0
  %883 = vmatpush1.bf16.msra.mxu0 0
  %884 = vmatprep.subr.bf16.mxu0 0
  %885 = vmatpush1.bf16.msra.mxu0 0
  %886 = vmatprep.subr.bf16.mxu0 0
  %887 = vmatpush1.bf16.msra.mxu0 0
  %888 = vmatprep.subr.bf16.mxu0 0
  %889 = vmatpush1.bf16.msra.mxu0 %v866
  %890 = vmatprep.subr.bf16.mxu0 0
  %891 = vmatpush2.bf16.msra.mxu0 0
  %892 = vmatprep.subr.bf16.mxu0 0
  %893 = vmatpush2.bf16.msra.mxu0 0
  %894 = vmatprep.subr.bf16.mxu0 0
  %895 = vmatpush2.bf16.msra.mxu0 0
  %896 = vmatprep.subr.bf16.mxu0 0
  %897 = vmatpush2.bf16.msra.mxu0 0
  %898 = vmatprep.subr.bf16.mxu0 0
  %899 = vmatpush2.bf16.msra.mxu0 0
  %900 = vmatprep.subr.bf16.mxu0 0
  %901 = vmatpush2.bf16.msra.mxu0 0
  %902 = vmatprep.subr.bf16.mxu0 0
  %903 = vmatpush2.bf16.msra.mxu0 0
  %904 = vmatprep.subr.bf16.mxu0 0
  %905 = vmatpush2.bf16.msra.mxu0 0
  %906 = vmatprep.mubr.bf16.mxu0 0
  %907 = vmatmul.mubr.bf16.gmra.mxu0 %v869
  %v908 = vpop.f32.mrf.mxu0
  %v909 = vadd.f32 0.0, %v908
  %v910 = vpop.f32.mrf.mxu0
  %v911 = vpop.f32.mrf.mxu0
  %v912 = vadd.f32 0.0, %v911
  %v913 = vpop.f32.mrf.mxu0
  %914 = vmatprep.mubr.bf16.mxu0 0
  %915 = vmatmul.mubr.bf16.gmra.mxu0 %v872
  %v916 = vpop.f32.mrf.mxu0
  %v917 = vadd.f32 0.0, %v916
  %v918 = vpop.f32.mrf.mxu0
  %v919 = vpop.f32.mrf.mxu0
  %v920 = vadd.f32 0.0, %v919
  %v921 = vpop.f32.mrf.mxu0
  %922 = vdwg.mxu0
  %v923 = vadd.f32 %v842, %v909
  %v924 = vadd.f32 %v843, %v912
  %v925 = vadd.f32 %v844, %v917
  %v926 = vadd.f32 %v845, %v920
  %931 = vrot.lane.b32.xlu0 %v923, 16
  %v932 = vpop.permute.xlu0 %931
  %933 = vrot.lane.b32.xlu0 %v924, 16
  %v934 = vpop.permute.xlu0 %933
  %935 = vrot.lane.b32.xlu0 %v925, 16
  %v936 = vpop.permute.xlu0 %935
  %937 = vrot.lane.b32.xlu0 %v926, 16
  %v938 = vpop.permute.xlu0 %937
  %vm943 = vcmask 195712
  %944 = vst.msk [vmem:[%s7] sm:$0xff] %vm943, %v932
  %945 = vst.msk [vmem:[%s7 + $0x8] sm:$0xff] %vm943, %v934
  %946 = vst.msk [vmem:[%s7 + $0x10] sm:$0xff] %vm943, %v936
  %947 = vst.msk [vmem:[%s7 + $0x18] sm:$0xff] %vm943, %v938
  %v948 = vld [vmem:[%s7] sm:$0xff]
  %v949 = vld [vmem:[%s7 + $0x8] sm:$0xff]
  %v950 = vld [vmem:[%s7 + $0x10] sm:$0xff]
  %v951 = vld [vmem:[%s7 + $0x18] sm:$0xff]
  %s952 = scalar_lea.vmem %s1, 1
  %v953 = vld [vmem:[%s952] sm:$0x1]
  %v955 = vlaneseq
  %v956 = vshrl.u32 %v955, 7
  %v957 = vsub.s32 0, %v956
  %v958 = vrot.slane %v953, %v957
  %v960 = vmul.f32 %v948, %v958
  %v961 = vmul.f32 %v949, %v958
  %v962 = vmul.f32 %v950, %v958
  %v963 = vmul.f32 %v951, %v958
  %s964 = scalar_lea.vmem %s2, 1
  %v965 = vld [vmem:[%s964] sm:$0x1]
  %v967 = vlaneseq
  %v968 = vshrl.u32 %v967, 7
  %v969 = vsub.s32 0, %v968
  %v970 = vrot.slane %v965, %v969
  %v972 = vadd.f32 %v960, %v970
  %v973 = vadd.f32 %v961, %v970
  %v974 = vadd.f32 %v962, %v970
  %v975 = vadd.f32 %v963, %v970
  %v976 = vmax.f32 %v972, 0.0
  %v977 = vmax.f32 %v973, 0.0
  %v978 = vmax.f32 %v974, 0.0
  %v979 = vmax.f32 %v975, 0.0
  %v980 = vpack.c.bf16 %v977, %v976
  %v981 = vpack.c.bf16 %v979, %v978
  %s982 = scalar_lea.vmem %s3, 16
  %v983 = vld [vmem:[%s982] sm:$0xf]
  %v984 = vld [vmem:[%s982 + $0x4] sm:$0xf]
  %v985 = vld [vmem:[%s982 + $0x8] sm:$0xf]
  %v986 = vld [vmem:[%s982 + $0xc] sm:$0xf]
  %s987 = scalar_lea.vmem %s4, 1
  %v988 = vld [vmem:[%s987] sm:$0x1]
  %v990 = vlaneseq
  %v991 = vshrl.u32 %v990, 7
  %v992 = vsub.s32 0, %v991
  %v993 = vrot.slane %v988, %v992
  %v999 = vunpack.c.l.b16 %v983
  %v1000 = vunpack.c.l.b16 %v984
  %v1001 = vunpack.c.l.b16 %v985
  %v1002 = vunpack.c.l.b16 %v986
  %v1003 = vpack.c.b16 %v1000, %v999
  %v1004 = vpack.c.b16 %v1002, %v1001
  %v1008 = vsel %vm31, %v980, 0
  %v1011 = vsel %vm31, %v981, 0
  %1013 = vmatprep.subr.bf16.mxu0 0
  %1014 = vmatpush1.bf16.msra.mxu0 0
  %1015 = vmatprep.subr.bf16.mxu0 0
  %1016 = vmatpush1.bf16.msra.mxu0 0
  %1017 = vmatprep.subr.bf16.mxu0 0
  %1018 = vmatpush1.bf16.msra.mxu0 0
  %1019 = vmatprep.subr.bf16.mxu0 0
  %1020 = vmatpush1.bf16.msra.mxu0 0
  %1021 = vmatprep.subr.bf16.mxu0 0
  %1022 = vmatpush1.bf16.msra.mxu0 0
  %1023 = vmatprep.subr.bf16.mxu0 0
  %1024 = vmatpush1.bf16.msra.mxu0 0
  %1025 = vmatprep.subr.bf16.mxu0 0
  %1026 = vmatpush1.bf16.msra.mxu0 %v1004
  %1027 = vmatprep.subr.bf16.mxu0 0
  %1028 = vmatpush1.bf16.msra.mxu0 %v1003
  %1029 = vmatprep.subr.bf16.mxu0 0
  %1030 = vmatpush2.bf16.msra.mxu0 0
  %1031 = vmatprep.subr.bf16.mxu0 0
  %1032 = vmatpush2.bf16.msra.mxu0 0
  %1033 = vmatprep.subr.bf16.mxu0 0
  %1034 = vmatpush2.bf16.msra.mxu0 0
  %1035 = vmatprep.subr.bf16.mxu0 0
  %1036 = vmatpush2.bf16.msra.mxu0 0
  %1037 = vmatprep.subr.bf16.mxu0 0
  %1038 = vmatpush2.bf16.msra.mxu0 0
  %1039 = vmatprep.subr.bf16.mxu0 0
  %1040 = vmatpush2.bf16.msra.mxu0 0
  %1041 = vmatprep.subr.bf16.mxu0 0
  %1042 = vmatpush2.bf16.msra.mxu0 0
  %1043 = vmatprep.subr.bf16.mxu0 0
  %1044 = vmatpush2.bf16.msra.mxu0 0
  %1045 = vmatprep.mubr.bf16.mxu0 0
  %1046 = vmatmul.mubr.bf16.gmra.mxu0 %v1008
  %v1047 = vpop.f32.mrf.mxu0
  %v1048 = vadd.f32 %v993, %v1047
  %v1049 = vpop.f32.mrf.mxu0
  %v1050 = vpop.f32.mrf.mxu0
  %v1051 = vadd.f32 %v993, %v1050
  %v1052 = vpop.f32.mrf.mxu0
  %1053 = vmatprep.mubr.bf16.mxu0 0
  %1054 = vmatmul.mubr.bf16.gmra.mxu0 %v1011
  %v1055 = vpop.f32.mrf.mxu0
  %v1056 = vadd.f32 %v993, %v1055
  %v1057 = vpop.f32.mrf.mxu0
  %v1058 = vpop.f32.mrf.mxu0
  %v1059 = vadd.f32 %v993, %v1058
  %v1060 = vpop.f32.mrf.mxu0
  %1061 = vdwg.mxu0
  %v1062 = vmax.f32 %v1048, 0.0
  %v1063 = vmax.f32 %v1051, 0.0
  %v1064 = vmax.f32 %v1056, 0.0
  %v1065 = vmax.f32 %v1059, 0.0
  %v1070 = vrot.slane %v1062, 3
  %v1071 = vrot.slane %v1063, 3
  %v1072 = vsel %vm154, %v1070, %v1071
  %v1073 = vrot.slane %v1064, 3
  %v1074 = vsel %vm154, %v1071, %v1073
  %v1075 = vrot.slane %v1065, 3
  %v1076 = vsel %vm154, %v1073, %v1075
  %v1081 = vsel %vm154, 0.0, %v1070
  %v1082 = vld [vmem:[%s6] sm:$0xff]
  %v1083 = vld [vmem:[%s6 + $0x8] sm:$0xff]
  %v1084 = vld [vmem:[%s6 + $0x10] sm:$0xff]
  %v1085 = vld [vmem:[%s6 + $0x18] sm:$0xff]
  %v1086 = vmul.f32 %v1081, %v1082
  %v1087 = vmul.f32 %v1072, %v1083
  %v1088 = vmul.f32 %v1074, %v1084
  %v1089 = vmul.f32 %v1076, %v1085
  %v1090 = vpack.c.bf16 %v1087, %v1086
  %v1091 = vpack.c.bf16 %v1089, %v1088
  %s1092 = scalar_lea.vmem %s5, 72
  %v1093 = vld [vmem:[%s1092] sm:$0xf]
  %v1094 = vld [vmem:[%s1092 + $0x4] sm:$0xf]
  %v1095 = vrot.slane %v1062, 4
  %v1096 = vrot.slane %v1063, 4
  %v1097 = vsel %vm179, %v1095, %v1096
  %v1098 = vrot.slane %v1064, 4
  %v1099 = vsel %vm179, %v1096, %v1098
  %v1100 = vrot.slane %v1065, 4
  %v1101 = vsel %vm179, %v1098, %v1100
  %v1106 = vsel %vm179, 0.0, %v1095
  %v1107 = vld [vmem:[%s192] sm:$0xff]
  %v1108 = vld [vmem:[%s192 + $0x8] sm:$0xff]
  %v1109 = vld [vmem:[%s192 + $0x10] sm:$0xff]
  %v1110 = vld [vmem:[%s192 + $0x18] sm:$0xff]
  %v1111 = vmul.f32 %v1106, %v1107
  %v1112 = vmul.f32 %v1097, %v1108
  %v1113 = vmul.f32 %v1099, %v1109
  %v1114 = vmul.f32 %v1101, %v1110
  %v1115 = vpack.c.bf16 %v1112, %v1111
  %v1116 = vpack.c.bf16 %v1114, %v1113
  %s1117 = scalar_lea.vmem %s5, 80
  %v1118 = vld [vmem:[%s1117] sm:$0xf]
  %v1119 = vld [vmem:[%s1117 + $0x4] sm:$0xf]
  %v1122 = vunpack.c.l.b16 %v1118
  %v1123 = vunpack.c.l.b16 %v1119
  %v1124 = vpack.c.b16 %v1123, %v1122
  %v1127 = vsel %vm212, %v1115, 0
  %v1130 = vsel %vm212, %v1116, 0
  %1132 = vmatprep.subr.bf16.mxu0 0
  %1133 = vmatpush1.bf16.msra.mxu0 0
  %1134 = vmatprep.subr.bf16.mxu0 0
  %1135 = vmatpush1.bf16.msra.mxu0 0
  %1136 = vmatprep.subr.bf16.mxu0 0
  %1137 = vmatpush1.bf16.msra.mxu0 0
  %1138 = vmatprep.subr.bf16.mxu0 0
  %1139 = vmatpush1.bf16.msra.mxu0 0
  %1140 = vmatprep.subr.bf16.mxu0 0
  %1141 = vmatpush1.bf16.msra.mxu0 0
  %1142 = vmatprep.subr.bf16.mxu0 0
  %1143 = vmatpush1.bf16.msra.mxu0 0
  %1144 = vmatprep.subr.bf16.mxu0 0
  %1145 = vmatpush1.bf16.msra.mxu0 0
  %1146 = vmatprep.subr.bf16.mxu0 0
  %1147 = vmatpush1.bf16.msra.mxu0 %v1124
  %1148 = vmatprep.subr.bf16.mxu0 0
  %1149 = vmatpush2.bf16.msra.mxu0 0
  %1150 = vmatprep.subr.bf16.mxu0 0
  %1151 = vmatpush2.bf16.msra.mxu0 0
  %1152 = vmatprep.subr.bf16.mxu0 0
  %1153 = vmatpush2.bf16.msra.mxu0 0
  %1154 = vmatprep.subr.bf16.mxu0 0
  %1155 = vmatpush2.bf16.msra.mxu0 0
  %1156 = vmatprep.subr.bf16.mxu0 0
  %1157 = vmatpush2.bf16.msra.mxu0 0
  %1158 = vmatprep.subr.bf16.mxu0 0
  %1159 = vmatpush2.bf16.msra.mxu0 0
  %1160 = vmatprep.subr.bf16.mxu0 0
  %1161 = vmatpush2.bf16.msra.mxu0 0
  %1162 = vmatprep.subr.bf16.mxu0 0
  %1163 = vmatpush2.bf16.msra.mxu0 0
  %1164 = vmatprep.mubr.bf16.mxu0 0
  %1165 = vmatmul.mubr.bf16.gmra.mxu0 %v1127
  %v1166 = vpop.f32.mrf.mxu0
  %v1167 = vadd.f32 0.0, %v1166
  %v1168 = vpop.f32.mrf.mxu0
  %v1169 = vpop.f32.mrf.mxu0
  %v1170 = vadd.f32 0.0, %v1169
  %v1171 = vpop.f32.mrf.mxu0
  %1172 = vmatprep.mubr.bf16.mxu0 0
  %1173 = vmatmul.mubr.bf16.gmra.mxu0 %v1130
  %v1174 = vpop.f32.mrf.mxu0
  %v1175 = vadd.f32 0.0, %v1174
  %v1176 = vpop.f32.mrf.mxu0
  %v1177 = vpop.f32.mrf.mxu0
  %v1178 = vadd.f32 0.0, %v1177
  %v1179 = vpop.f32.mrf.mxu0
  %1180 = vdwg.mxu0
  %v1183 = vunpack.c.l.b16 %v1093
  %v1184 = vunpack.c.l.b16 %v1094
  %v1185 = vpack.c.b16 %v1184, %v1183
  %v1188 = vsel %vm212, %v1090, 0
  %v1191 = vsel %vm212, %v1091, 0
  %1193 = vmatprep.subr.bf16.mxu0 0
  %1194 = vmatpush1.bf16.msra.mxu0 0
  %1195 = vmatprep.subr.bf16.mxu0 0
  %1196 = vmatpush1.bf16.msra.mxu0 0
  %1197 = vmatprep.subr.bf16.mxu0 0
  %1198 = vmatpush1.bf16.msra.mxu0 0
  %1199 = vmatprep.subr.bf16.mxu0 0
  %1200 = vmatpush1.bf16.msra.mxu0 0
  %1201 = vmatprep.subr.bf16.mxu0 0
  %1202 = vmatpush1.bf16.msra.mxu0 0
  %1203 = vmatprep.subr.bf16.mxu0 0
  %1204 = vmatpush1.bf16.msra.mxu0 0
  %1205 = vmatprep.subr.bf16.mxu0 0
  %1206 = vmatpush1.bf16.msra.mxu0 0
  %1207 = vmatprep.subr.bf16.mxu0 0
  %1208 = vmatpush1.bf16.msra.mxu0 %v1185
  %1209 = vmatprep.subr.bf16.mxu0 0
  %1210 = vmatpush2.bf16.msra.mxu0 0
  %1211 = vmatprep.subr.bf16.mxu0 0
  %1212 = vmatpush2.bf16.msra.mxu0 0
  %1213 = vmatprep.subr.bf16.mxu0 0
  %1214 = vmatpush2.bf16.msra.mxu0 0
  %1215 = vmatprep.subr.bf16.mxu0 0
  %1216 = vmatpush2.bf16.msra.mxu0 0
  %1217 = vmatprep.subr.bf16.mxu0 0
  %1218 = vmatpush2.bf16.msra.mxu0 0
  %1219 = vmatprep.subr.bf16.mxu0 0
  %1220 = vmatpush2.bf16.msra.mxu0 0
  %1221 = vmatprep.subr.bf16.mxu0 0
  %1222 = vmatpush2.bf16.msra.mxu0 0
  %1223 = vmatprep.subr.bf16.mxu0 0
  %1224 = vmatpush2.bf16.msra.mxu0 0
  %1225 = vmatprep.mubr.bf16.mxu0 0
  %1226 = vmatmul.mubr.bf16.gmra.mxu0 %v1188
  %v1227 = vpop.f32.mrf.mxu0
  %v1228 = vadd.f32 %v1167, %v1227
  %v1229 = vpop.f32.mrf.mxu0
  %v1230 = vpop.f32.mrf.mxu0
  %v1231 = vadd.f32 %v1170, %v1230
  %v1232 = vpop.f32.mrf.mxu0
  %1233 = vmatprep.mubr.bf16.mxu0 0
  %1234 = vmatmul.mubr.bf16.gmra.mxu0 %v1191
  %v1235 = vpop.f32.mrf.mxu0
  %v1236 = vadd.f32 %v1175, %v1235
  %v1237 = vpop.f32.mrf.mxu0
  %v1238 = vpop.f32.mrf.mxu0
  %v1239 = vadd.f32 %v1178, %v1238
  %v1240 = vpop.f32.mrf.mxu0
  %1241 = vdwg.mxu0
  %v1242 = vrot.slane %v1062, 5
  %v1243 = vrot.slane %v1063, 5
  %v1244 = vsel %vm329, %v1242, %v1243
  %v1245 = vrot.slane %v1064, 5
  %v1246 = vsel %vm329, %v1243, %v1245
  %v1247 = vrot.slane %v1065, 5
  %v1248 = vsel %vm329, %v1245, %v1247
  %v1253 = vsel %vm329, 0.0, %v1242
  %v1254 = vld [vmem:[%s342] sm:$0xff]
  %v1255 = vld [vmem:[%s342 + $0x8] sm:$0xff]
  %v1256 = vld [vmem:[%s342 + $0x10] sm:$0xff]
  %v1257 = vld [vmem:[%s342 + $0x18] sm:$0xff]
  %v1258 = vmul.f32 %v1253, %v1254
  %v1259 = vmul.f32 %v1244, %v1255
  %v1260 = vmul.f32 %v1246, %v1256
  %v1261 = vmul.f32 %v1248, %v1257
  %v1262 = vpack.c.bf16 %v1259, %v1258
  %v1263 = vpack.c.bf16 %v1261, %v1260
  %s1264 = scalar_lea.vmem %s5, 88
  %v1265 = vld [vmem:[%s1264] sm:$0xf]
  %v1266 = vld [vmem:[%s1264 + $0x4] sm:$0xf]
  %v1269 = vunpack.c.l.b16 %v1265
  %v1270 = vunpack.c.l.b16 %v1266
  %v1271 = vpack.c.b16 %v1270, %v1269
  %v1274 = vsel %vm212, %v1262, 0
  %v1277 = vsel %vm212, %v1263, 0
  %1279 = vmatprep.subr.bf16.mxu0 0
  %1280 = vmatpush1.bf16.msra.mxu0 0
  %1281 = vmatprep.subr.bf16.mxu0 0
  %1282 = vmatpush1.bf16.msra.mxu0 0
  %1283 = vmatprep.subr.bf16.mxu0 0
  %1284 = vmatpush1.bf16.msra.mxu0 0
  %1285 = vmatprep.subr.bf16.mxu0 0
  %1286 = vmatpush1.bf16.msra.mxu0 0
  %1287 = vmatprep.subr.bf16.mxu0 0
  %1288 = vmatpush1.bf16.msra.mxu0 0
  %1289 = vmatprep.subr.bf16.mxu0 0
  %1290 = vmatpush1.bf16.msra.mxu0 0
  %1291 = vmatprep.subr.bf16.mxu0 0
  %1292 = vmatpush1.bf16.msra.mxu0 0
  %1293 = vmatprep.subr.bf16.mxu0 0
  %1294 = vmatpush1.bf16.msra.mxu0 %v1271
  %1295 = vmatprep.subr.bf16.mxu0 0
  %1296 = vmatpush2.bf16.msra.mxu0 0
  %1297 = vmatprep.subr.bf16.mxu0 0
  %1298 = vmatpush2.bf16.msra.mxu0 0
  %1299 = vmatprep.subr.bf16.mxu0 0
  %1300 = vmatpush2.bf16.msra.mxu0 0
  %1301 = vmatprep.subr.bf16.mxu0 0
  %1302 = vmatpush2.bf16.msra.mxu0 0
  %1303 = vmatprep.subr.bf16.mxu0 0
  %1304 = vmatpush2.bf16.msra.mxu0 0
  %1305 = vmatprep.subr.bf16.mxu0 0
  %1306 = vmatpush2.bf16.msra.mxu0 0
  %1307 = vmatprep.subr.bf16.mxu0 0
  %1308 = vmatpush2.bf16.msra.mxu0 0
  %1309 = vmatprep.subr.bf16.mxu0 0
  %1310 = vmatpush2.bf16.msra.mxu0 0
  %1311 = vmatprep.mubr.bf16.mxu0 0
  %1312 = vmatmul.mubr.bf16.gmra.mxu0 %v1274
  %v1313 = vpop.f32.mrf.mxu0
  %v1314 = vadd.f32 0.0, %v1313
  %v1315 = vpop.f32.mrf.mxu0
  %v1316 = vpop.f32.mrf.mxu0
  %v1317 = vadd.f32 0.0, %v1316
  %v1318 = vpop.f32.mrf.mxu0
  %1319 = vmatprep.mubr.bf16.mxu0 0
  %1320 = vmatmul.mubr.bf16.gmra.mxu0 %v1277
  %v1321 = vpop.f32.mrf.mxu0
  %v1322 = vadd.f32 0.0, %v1321
  %v1323 = vpop.f32.mrf.mxu0
  %v1324 = vpop.f32.mrf.mxu0
  %v1325 = vadd.f32 0.0, %v1324
  %v1326 = vpop.f32.mrf.mxu0
  %1327 = vdwg.mxu0
  %v1328 = vadd.f32 %v1228, %v1314
  %v1329 = vadd.f32 %v1231, %v1317
  %v1330 = vadd.f32 %v1236, %v1322
  %v1331 = vadd.f32 %v1239, %v1325
  %v1332 = vrot.slane %v1062, 7
  %v1333 = vrot.slane %v1063, 7
  %v1334 = vsel %vm421, %v1332, %v1333
  %v1335 = vrot.slane %v1064, 7
  %v1336 = vsel %vm421, %v1333, %v1335
  %v1337 = vrot.slane %v1065, 7
  %v1338 = vsel %vm421, %v1335, %v1337
  %v1343 = vsel %vm421, 0.0, %v1332
  %v1344 = vld [vmem:[%s434] sm:$0xff]
  %v1345 = vld [vmem:[%s434 + $0x8] sm:$0xff]
  %v1346 = vld [vmem:[%s434 + $0x10] sm:$0xff]
  %v1347 = vld [vmem:[%s434 + $0x18] sm:$0xff]
  %v1348 = vmul.f32 %v1343, %v1344
  %v1349 = vmul.f32 %v1334, %v1345
  %v1350 = vmul.f32 %v1336, %v1346
  %v1351 = vmul.f32 %v1338, %v1347
  %v1352 = vpack.c.bf16 %v1349, %v1348
  %v1353 = vpack.c.bf16 %v1351, %v1350
  %s1354 = scalar_lea.vmem %s5, 96
  %v1355 = vld [vmem:[%s1354] sm:$0xf]
  %v1356 = vld [vmem:[%s1354 + $0x4] sm:$0xf]
  %v1359 = vunpack.c.l.b16 %v1355
  %v1360 = vunpack.c.l.b16 %v1356
  %v1361 = vpack.c.b16 %v1360, %v1359
  %v1364 = vsel %vm212, %v1352, 0
  %v1367 = vsel %vm212, %v1353, 0
  %1369 = vmatprep.subr.bf16.mxu0 0
  %1370 = vmatpush1.bf16.msra.mxu0 0
  %1371 = vmatprep.subr.bf16.mxu0 0
  %1372 = vmatpush1.bf16.msra.mxu0 0
  %1373 = vmatprep.subr.bf16.mxu0 0
  %1374 = vmatpush1.bf16.msra.mxu0 0
  %1375 = vmatprep.subr.bf16.mxu0 0
  %1376 = vmatpush1.bf16.msra.mxu0 0
  %1377 = vmatprep.subr.bf16.mxu0 0
  %1378 = vmatpush1.bf16.msra.mxu0 0
  %1379 = vmatprep.subr.bf16.mxu0 0
  %1380 = vmatpush1.bf16.msra.mxu0 0
  %1381 = vmatprep.subr.bf16.mxu0 0
  %1382 = vmatpush1.bf16.msra.mxu0 0
  %1383 = vmatprep.subr.bf16.mxu0 0
  %1384 = vmatpush1.bf16.msra.mxu0 %v1361
  %1385 = vmatprep.subr.bf16.mxu0 0
  %1386 = vmatpush2.bf16.msra.mxu0 0
  %1387 = vmatprep.subr.bf16.mxu0 0
  %1388 = vmatpush2.bf16.msra.mxu0 0
  %1389 = vmatprep.subr.bf16.mxu0 0
  %1390 = vmatpush2.bf16.msra.mxu0 0
  %1391 = vmatprep.subr.bf16.mxu0 0
  %1392 = vmatpush2.bf16.msra.mxu0 0
  %1393 = vmatprep.subr.bf16.mxu0 0
  %1394 = vmatpush2.bf16.msra.mxu0 0
  %1395 = vmatprep.subr.bf16.mxu0 0
  %1396 = vmatpush2.bf16.msra.mxu0 0
  %1397 = vmatprep.subr.bf16.mxu0 0
  %1398 = vmatpush2.bf16.msra.mxu0 0
  %1399 = vmatprep.subr.bf16.mxu0 0
  %1400 = vmatpush2.bf16.msra.mxu0 0
  %1401 = vmatprep.mubr.bf16.mxu0 0
  %1402 = vmatmul.mubr.bf16.gmra.mxu0 %v1364
  %v1403 = vpop.f32.mrf.mxu0
  %v1404 = vadd.f32 0.0, %v1403
  %v1405 = vpop.f32.mrf.mxu0
  %v1406 = vpop.f32.mrf.mxu0
  %v1407 = vadd.f32 0.0, %v1406
  %v1408 = vpop.f32.mrf.mxu0
  %1409 = vmatprep.mubr.bf16.mxu0 0
  %1410 = vmatmul.mubr.bf16.gmra.mxu0 %v1367
  %v1411 = vpop.f32.mrf.mxu0
  %v1412 = vadd.f32 0.0, %v1411
  %v1413 = vpop.f32.mrf.mxu0
  %v1414 = vpop.f32.mrf.mxu0
  %v1415 = vadd.f32 0.0, %v1414
  %v1416 = vpop.f32.mrf.mxu0
  %1417 = vdwg.mxu0
  %v1418 = vadd.f32 %v1328, %v1404
  %v1419 = vadd.f32 %v1329, %v1407
  %v1420 = vadd.f32 %v1330, %v1412
  %v1421 = vadd.f32 %v1331, %v1415
  %v1422 = vld [vmem:[%s513] sm:$0xff]
  %v1423 = vld [vmem:[%s513 + $0x8] sm:$0xff]
  %v1424 = vld [vmem:[%s513 + $0x10] sm:$0xff]
  %v1425 = vld [vmem:[%s513 + $0x18] sm:$0xff]
  %v1426 = vmul.f32 %v1062, %v1422
  %v1427 = vmul.f32 %v1063, %v1423
  %v1428 = vmul.f32 %v1064, %v1424
  %v1429 = vmul.f32 %v1065, %v1425
  %v1430 = vpack.c.bf16 %v1427, %v1426
  %v1431 = vpack.c.bf16 %v1429, %v1428
  %s1432 = scalar_lea.vmem %s5, 104
  %v1433 = vld [vmem:[%s1432] sm:$0xf]
  %v1434 = vld [vmem:[%s1432 + $0x4] sm:$0xf]
  %v1437 = vunpack.c.l.b16 %v1433
  %v1438 = vunpack.c.l.b16 %v1434
  %v1439 = vpack.c.b16 %v1438, %v1437
  %v1442 = vsel %vm212, %v1430, 0
  %v1445 = vsel %vm212, %v1431, 0
  %1447 = vmatprep.subr.bf16.mxu0 0
  %1448 = vmatpush1.bf16.msra.mxu0 0
  %1449 = vmatprep.subr.bf16.mxu0 0
  %1450 = vmatpush1.bf16.msra.mxu0 0
  %1451 = vmatprep.subr.bf16.mxu0 0
  %1452 = vmatpush1.bf16.msra.mxu0 0
  %1453 = vmatprep.subr.bf16.mxu0 0
  %1454 = vmatpush1.bf16.msra.mxu0 0
  %1455 = vmatprep.subr.bf16.mxu0 0
  %1456 = vmatpush1.bf16.msra.mxu0 0
  %1457 = vmatprep.subr.bf16.mxu0 0
  %1458 = vmatpush1.bf16.msra.mxu0 0
  %1459 = vmatprep.subr.bf16.mxu0 0
  %1460 = vmatpush1.bf16.msra.mxu0 0
  %1461 = vmatprep.subr.bf16.mxu0 0
  %1462 = vmatpush1.bf16.msra.mxu0 %v1439
  %1463 = vmatprep.subr.bf16.mxu0 0
  %1464 = vmatpush2.bf16.msra.mxu0 0
  %1465 = vmatprep.subr.bf16.mxu0 0
  %1466 = vmatpush2.bf16.msra.mxu0 0
  %1467 = vmatprep.subr.bf16.mxu0 0
  %1468 = vmatpush2.bf16.msra.mxu0 0
  %1469 = vmatprep.subr.bf16.mxu0 0
  %1470 = vmatpush2.bf16.msra.mxu0 0
  %1471 = vmatprep.subr.bf16.mxu0 0
  %1472 = vmatpush2.bf16.msra.mxu0 0
  %1473 = vmatprep.subr.bf16.mxu0 0
  %1474 = vmatpush2.bf16.msra.mxu0 0
  %1475 = vmatprep.subr.bf16.mxu0 0
  %1476 = vmatpush2.bf16.msra.mxu0 0
  %1477 = vmatprep.subr.bf16.mxu0 0
  %1478 = vmatpush2.bf16.msra.mxu0 0
  %1479 = vmatprep.mubr.bf16.mxu0 0
  %1480 = vmatmul.mubr.bf16.gmra.mxu0 %v1442
  %v1481 = vpop.f32.mrf.mxu0
  %v1482 = vadd.f32 0.0, %v1481
  %v1483 = vpop.f32.mrf.mxu0
  %v1484 = vpop.f32.mrf.mxu0
  %v1485 = vadd.f32 0.0, %v1484
  %v1486 = vpop.f32.mrf.mxu0
  %1487 = vmatprep.mubr.bf16.mxu0 0
  %1488 = vmatmul.mubr.bf16.gmra.mxu0 %v1445
  %v1489 = vpop.f32.mrf.mxu0
  %v1490 = vadd.f32 0.0, %v1489
  %v1491 = vpop.f32.mrf.mxu0
  %v1492 = vpop.f32.mrf.mxu0
  %v1493 = vadd.f32 0.0, %v1492
  %v1494 = vpop.f32.mrf.mxu0
  %1495 = vdwg.mxu0
  %v1496 = vadd.f32 %v1418, %v1482
  %v1497 = vadd.f32 %v1419, %v1485
  %v1498 = vadd.f32 %v1420, %v1490
  %v1499 = vadd.f32 %v1421, %v1493
  %v1500 = vrot.slane %v1062, 1
  %v1501 = vrot.slane %v1063, 1
  %v1502 = vsel %vm592, %v1500, %v1501
  %v1503 = vrot.slane %v1064, 1
  %v1504 = vsel %vm592, %v1501, %v1503
  %v1505 = vrot.slane %v1065, 1
  %v1506 = vsel %vm592, %v1503, %v1505
  %v1511 = vsel %vm592, %v1505, 0.0
  %v1512 = vld [vmem:[%s605] sm:$0xff]
  %v1513 = vld [vmem:[%s605 + $0x8] sm:$0xff]
  %v1514 = vld [vmem:[%s605 + $0x10] sm:$0xff]
  %v1515 = vld [vmem:[%s605 + $0x18] sm:$0xff]
  %v1516 = vmul.f32 %v1502, %v1512
  %v1517 = vmul.f32 %v1504, %v1513
  %v1518 = vmul.f32 %v1506, %v1514
  %v1519 = vmul.f32 %v1511, %v1515
  %v1520 = vpack.c.bf16 %v1517, %v1516
  %v1521 = vpack.c.bf16 %v1519, %v1518
  %s1522 = scalar_lea.vmem %s5, 112
  %v1523 = vld [vmem:[%s1522] sm:$0xf]
  %v1524 = vld [vmem:[%s1522 + $0x4] sm:$0xf]
  %v1527 = vunpack.c.l.b16 %v1523
  %v1528 = vunpack.c.l.b16 %v1524
  %v1529 = vpack.c.b16 %v1528, %v1527
  %v1532 = vsel %vm212, %v1520, 0
  %v1535 = vsel %vm212, %v1521, 0
  %1537 = vmatprep.subr.bf16.mxu0 0
  %1538 = vmatpush1.bf16.msra.mxu0 0
  %1539 = vmatprep.subr.bf16.mxu0 0
  %1540 = vmatpush1.bf16.msra.mxu0 0
  %1541 = vmatprep.subr.bf16.mxu0 0
  %1542 = vmatpush1.bf16.msra.mxu0 0
  %1543 = vmatprep.subr.bf16.mxu0 0
  %1544 = vmatpush1.bf16.msra.mxu0 0
  %1545 = vmatprep.subr.bf16.mxu0 0
  %1546 = vmatpush1.bf16.msra.mxu0 0
  %1547 = vmatprep.subr.bf16.mxu0 0
  %1548 = vmatpush1.bf16.msra.mxu0 0
  %1549 = vmatprep.subr.bf16.mxu0 0
  %1550 = vmatpush1.bf16.msra.mxu0 0
  %1551 = vmatprep.subr.bf16.mxu0 0
  %1552 = vmatpush1.bf16.msra.mxu0 %v1529
  %1553 = vmatprep.subr.bf16.mxu0 0
  %1554 = vmatpush2.bf16.msra.mxu0 0
  %1555 = vmatprep.subr.bf16.mxu0 0
  %1556 = vmatpush2.bf16.msra.mxu0 0
  %1557 = vmatprep.subr.bf16.mxu0 0
  %1558 = vmatpush2.bf16.msra.mxu0 0
  %1559 = vmatprep.subr.bf16.mxu0 0
  %1560 = vmatpush2.bf16.msra.mxu0 0
  %1561 = vmatprep.subr.bf16.mxu0 0
  %1562 = vmatpush2.bf16.msra.mxu0 0
  %1563 = vmatprep.subr.bf16.mxu0 0
  %1564 = vmatpush2.bf16.msra.mxu0 0
  %1565 = vmatprep.subr.bf16.mxu0 0
  %1566 = vmatpush2.bf16.msra.mxu0 0
  %1567 = vmatprep.subr.bf16.mxu0 0
  %1568 = vmatpush2.bf16.msra.mxu0 0
  %1569 = vmatprep.mubr.bf16.mxu0 0
  %1570 = vmatmul.mubr.bf16.gmra.mxu0 %v1532
  %v1571 = vpop.f32.mrf.mxu0
  %v1572 = vadd.f32 0.0, %v1571
  %v1573 = vpop.f32.mrf.mxu0
  %v1574 = vpop.f32.mrf.mxu0
  %v1575 = vadd.f32 0.0, %v1574
  %v1576 = vpop.f32.mrf.mxu0
  %1577 = vmatprep.mubr.bf16.mxu0 0
  %1578 = vmatmul.mubr.bf16.gmra.mxu0 %v1535
  %v1579 = vpop.f32.mrf.mxu0
  %v1580 = vadd.f32 0.0, %v1579
  %v1581 = vpop.f32.mrf.mxu0
  %v1582 = vpop.f32.mrf.mxu0
  %v1583 = vadd.f32 0.0, %v1582
  %v1584 = vpop.f32.mrf.mxu0
  %1585 = vdwg.mxu0
  %v1586 = vadd.f32 %v1496, %v1572
  %v1587 = vadd.f32 %v1497, %v1575
  %v1588 = vadd.f32 %v1498, %v1580
  %v1589 = vadd.f32 %v1499, %v1583
  %v1591 = vsel %vm154, %v1075, 0.0
  %v1592 = vld [vmem:[%s686] sm:$0xff]
  %v1593 = vld [vmem:[%s686 + $0x8] sm:$0xff]
  %v1594 = vld [vmem:[%s686 + $0x10] sm:$0xff]
  %v1595 = vld [vmem:[%s686 + $0x18] sm:$0xff]
  %v1596 = vmul.f32 %v1072, %v1592
  %v1597 = vmul.f32 %v1074, %v1593
  %v1598 = vmul.f32 %v1076, %v1594
  %v1599 = vmul.f32 %v1591, %v1595
  %v1600 = vpack.c.bf16 %v1597, %v1596
  %v1601 = vpack.c.bf16 %v1599, %v1598
  %s1602 = scalar_lea.vmem %s5, 120
  %v1603 = vld [vmem:[%s1602] sm:$0xf]
  %v1604 = vld [vmem:[%s1602 + $0x4] sm:$0xf]
  %v1607 = vunpack.c.l.b16 %v1603
  %v1608 = vunpack.c.l.b16 %v1604
  %v1609 = vpack.c.b16 %v1608, %v1607
  %v1612 = vsel %vm212, %v1600, 0
  %v1615 = vsel %vm212, %v1601, 0
  %1617 = vmatprep.subr.bf16.mxu0 0
  %1618 = vmatpush1.bf16.msra.mxu0 0
  %1619 = vmatprep.subr.bf16.mxu0 0
  %1620 = vmatpush1.bf16.msra.mxu0 0
  %1621 = vmatprep.subr.bf16.mxu0 0
  %1622 = vmatpush1.bf16.msra.mxu0 0
  %1623 = vmatprep.subr.bf16.mxu0 0
  %1624 = vmatpush1.bf16.msra.mxu0 0
  %1625 = vmatprep.subr.bf16.mxu0 0
  %1626 = vmatpush1.bf16.msra.mxu0 0
  %1627 = vmatprep.subr.bf16.mxu0 0
  %1628 = vmatpush1.bf16.msra.mxu0 0
  %1629 = vmatprep.subr.bf16.mxu0 0
  %1630 = vmatpush1.bf16.msra.mxu0 0
  %1631 = vmatprep.subr.bf16.mxu0 0
  %1632 = vmatpush1.bf16.msra.mxu0 %v1609
  %1633 = vmatprep.subr.bf16.mxu0 0
  %1634 = vmatpush2.bf16.msra.mxu0 0
  %1635 = vmatprep.subr.bf16.mxu0 0
  %1636 = vmatpush2.bf16.msra.mxu0 0
  %1637 = vmatprep.subr.bf16.mxu0 0
  %1638 = vmatpush2.bf16.msra.mxu0 0
  %1639 = vmatprep.subr.bf16.mxu0 0
  %1640 = vmatpush2.bf16.msra.mxu0 0
  %1641 = vmatprep.subr.bf16.mxu0 0
  %1642 = vmatpush2.bf16.msra.mxu0 0
  %1643 = vmatprep.subr.bf16.mxu0 0
  %1644 = vmatpush2.bf16.msra.mxu0 0
  %1645 = vmatprep.subr.bf16.mxu0 0
  %1646 = vmatpush2.bf16.msra.mxu0 0
  %1647 = vmatprep.subr.bf16.mxu0 0
  %1648 = vmatpush2.bf16.msra.mxu0 0
  %1649 = vmatprep.mubr.bf16.mxu0 0
  %1650 = vmatmul.mubr.bf16.gmra.mxu0 %v1612
  %v1651 = vpop.f32.mrf.mxu0
  %v1652 = vadd.f32 0.0, %v1651
  %v1653 = vpop.f32.mrf.mxu0
  %v1654 = vpop.f32.mrf.mxu0
  %v1655 = vadd.f32 0.0, %v1654
  %v1656 = vpop.f32.mrf.mxu0
  %1657 = vmatprep.mubr.bf16.mxu0 0
  %1658 = vmatmul.mubr.bf16.gmra.mxu0 %v1615
  %v1659 = vpop.f32.mrf.mxu0
  %v1660 = vadd.f32 0.0, %v1659
  %v1661 = vpop.f32.mrf.mxu0
  %v1662 = vpop.f32.mrf.mxu0
  %v1663 = vadd.f32 0.0, %v1662
  %v1664 = vpop.f32.mrf.mxu0
  %1665 = vdwg.mxu0
  %v1666 = vadd.f32 %v1586, %v1652
  %v1667 = vadd.f32 %v1587, %v1655
  %v1668 = vadd.f32 %v1588, %v1660
  %v1669 = vadd.f32 %v1589, %v1663
  %v1671 = vsel %vm179, %v1100, 0.0
  %v1672 = vld [vmem:[%s767] sm:$0xff]
  %v1673 = vld [vmem:[%s767 + $0x8] sm:$0xff]
  %v1674 = vld [vmem:[%s767 + $0x10] sm:$0xff]
  %v1675 = vld [vmem:[%s767 + $0x18] sm:$0xff]
  %v1676 = vmul.f32 %v1097, %v1672
  %v1677 = vmul.f32 %v1099, %v1673
  %v1678 = vmul.f32 %v1101, %v1674
  %v1679 = vmul.f32 %v1671, %v1675
  %v1680 = vpack.c.bf16 %v1677, %v1676
  %v1681 = vpack.c.bf16 %v1679, %v1678
  %s1682 = scalar_lea.vmem %s5, 128
  %v1683 = vld [vmem:[%s1682] sm:$0xf]
  %v1684 = vld [vmem:[%s1682 + $0x4] sm:$0xf]
  %v1687 = vunpack.c.l.b16 %v1683
  %v1688 = vunpack.c.l.b16 %v1684
  %v1689 = vpack.c.b16 %v1688, %v1687
  %v1692 = vsel %vm212, %v1680, 0
  %v1695 = vsel %vm212, %v1681, 0
  %1697 = vmatprep.subr.bf16.mxu0 0
  %1698 = vmatpush1.bf16.msra.mxu0 0
  %1699 = vmatprep.subr.bf16.mxu0 0
  %1700 = vmatpush1.bf16.msra.mxu0 0
  %1701 = vmatprep.subr.bf16.mxu0 0
  %1702 = vmatpush1.bf16.msra.mxu0 0
  %1703 = vmatprep.subr.bf16.mxu0 0
  %1704 = vmatpush1.bf16.msra.mxu0 0
  %1705 = vmatprep.subr.bf16.mxu0 0
  %1706 = vmatpush1.bf16.msra.mxu0 0
  %1707 = vmatprep.subr.bf16.mxu0 0
  %1708 = vmatpush1.bf16.msra.mxu0 0
  %1709 = vmatprep.subr.bf16.mxu0 0
  %1710 = vmatpush1.bf16.msra.mxu0 0
  %1711 = vmatprep.subr.bf16.mxu0 0
  %1712 = vmatpush1.bf16.msra.mxu0 %v1689
  %1713 = vmatprep.subr.bf16.mxu0 0
  %1714 = vmatpush2.bf16.msra.mxu0 0
  %1715 = vmatprep.subr.bf16.mxu0 0
  %1716 = vmatpush2.bf16.msra.mxu0 0
  %1717 = vmatprep.subr.bf16.mxu0 0
  %1718 = vmatpush2.bf16.msra.mxu0 0
  %1719 = vmatprep.subr.bf16.mxu0 0
  %1720 = vmatpush2.bf16.msra.mxu0 0
  %1721 = vmatprep.subr.bf16.mxu0 0
  %1722 = vmatpush2.bf16.msra.mxu0 0
  %1723 = vmatprep.subr.bf16.mxu0 0
  %1724 = vmatpush2.bf16.msra.mxu0 0
  %1725 = vmatprep.subr.bf16.mxu0 0
  %1726 = vmatpush2.bf16.msra.mxu0 0
  %1727 = vmatprep.subr.bf16.mxu0 0
  %1728 = vmatpush2.bf16.msra.mxu0 0
  %1729 = vmatprep.mubr.bf16.mxu0 0
  %1730 = vmatmul.mubr.bf16.gmra.mxu0 %v1692
  %v1731 = vpop.f32.mrf.mxu0
  %v1732 = vadd.f32 0.0, %v1731
  %v1733 = vpop.f32.mrf.mxu0
  %v1734 = vpop.f32.mrf.mxu0
  %v1735 = vadd.f32 0.0, %v1734
  %v1736 = vpop.f32.mrf.mxu0
  %1737 = vmatprep.mubr.bf16.mxu0 0
  %1738 = vmatmul.mubr.bf16.gmra.mxu0 %v1695
  %v1739 = vpop.f32.mrf.mxu0
  %v1740 = vadd.f32 0.0, %v1739
  %v1741 = vpop.f32.mrf.mxu0
  %v1742 = vpop.f32.mrf.mxu0
  %v1743 = vadd.f32 0.0, %v1742
  %v1744 = vpop.f32.mrf.mxu0
  %1745 = vdwg.mxu0
  %v1746 = vadd.f32 %v1666, %v1732
  %v1747 = vadd.f32 %v1667, %v1735
  %v1748 = vadd.f32 %v1668, %v1740
  %v1749 = vadd.f32 %v1669, %v1743
  %v1751 = vsel %vm329, %v1247, 0.0
  %v1752 = vld [vmem:[%s848] sm:$0xff]
  %v1753 = vld [vmem:[%s848 + $0x8] sm:$0xff]
  %v1754 = vld [vmem:[%s848 + $0x10] sm:$0xff]
  %v1755 = vld [vmem:[%s848 + $0x18] sm:$0xff]
  %v1756 = vmul.f32 %v1244, %v1752
  %v1757 = vmul.f32 %v1246, %v1753
  %v1758 = vmul.f32 %v1248, %v1754
  %v1759 = vmul.f32 %v1751, %v1755
  %v1760 = vpack.c.bf16 %v1757, %v1756
  %v1761 = vpack.c.bf16 %v1759, %v1758
  %s1762 = scalar_lea.vmem %s5, 136
  %v1763 = vld [vmem:[%s1762] sm:$0xf]
  %v1764 = vld [vmem:[%s1762 + $0x4] sm:$0xf]
  %v1767 = vunpack.c.l.b16 %v1763
  %v1768 = vunpack.c.l.b16 %v1764
  %v1769 = vpack.c.b16 %v1768, %v1767
  %v1772 = vsel %vm212, %v1760, 0
  %v1775 = vsel %vm212, %v1761, 0
  %1777 = vmatprep.subr.bf16.mxu0 0
  %1778 = vmatpush1.bf16.msra.mxu0 0
  %1779 = vmatprep.subr.bf16.mxu0 0
  %1780 = vmatpush1.bf16.msra.mxu0 0
  %1781 = vmatprep.subr.bf16.mxu0 0
  %1782 = vmatpush1.bf16.msra.mxu0 0
  %1783 = vmatprep.subr.bf16.mxu0 0
  %1784 = vmatpush1.bf16.msra.mxu0 0
  %1785 = vmatprep.subr.bf16.mxu0 0
  %1786 = vmatpush1.bf16.msra.mxu0 0
  %1787 = vmatprep.subr.bf16.mxu0 0
  %1788 = vmatpush1.bf16.msra.mxu0 0
  %1789 = vmatprep.subr.bf16.mxu0 0
  %1790 = vmatpush1.bf16.msra.mxu0 0
  %1791 = vmatprep.subr.bf16.mxu0 0
  %1792 = vmatpush1.bf16.msra.mxu0 %v1769
  %1793 = vmatprep.subr.bf16.mxu0 0
  %1794 = vmatpush2.bf16.msra.mxu0 0
  %1795 = vmatprep.subr.bf16.mxu0 0
  %1796 = vmatpush2.bf16.msra.mxu0 0
  %1797 = vmatprep.subr.bf16.mxu0 0
  %1798 = vmatpush2.bf16.msra.mxu0 0
  %1799 = vmatprep.subr.bf16.mxu0 0
  %1800 = vmatpush2.bf16.msra.mxu0 0
  %1801 = vmatprep.subr.bf16.mxu0 0
  %1802 = vmatpush2.bf16.msra.mxu0 0
  %1803 = vmatprep.subr.bf16.mxu0 0
  %1804 = vmatpush2.bf16.msra.mxu0 0
  %1805 = vmatprep.subr.bf16.mxu0 0
  %1806 = vmatpush2.bf16.msra.mxu0 0
  %1807 = vmatprep.subr.bf16.mxu0 0
  %1808 = vmatpush2.bf16.msra.mxu0 0
  %1809 = vmatprep.mubr.bf16.mxu0 0
  %1810 = vmatmul.mubr.bf16.gmra.mxu0 %v1772
  %v1811 = vpop.f32.mrf.mxu0
  %v1812 = vadd.f32 0.0, %v1811
  %v1813 = vpop.f32.mrf.mxu0
  %v1814 = vpop.f32.mrf.mxu0
  %v1815 = vadd.f32 0.0, %v1814
  %v1816 = vpop.f32.mrf.mxu0
  %1817 = vmatprep.mubr.bf16.mxu0 0
  %1818 = vmatmul.mubr.bf16.gmra.mxu0 %v1775
  %v1819 = vpop.f32.mrf.mxu0
  %v1820 = vadd.f32 0.0, %v1819
  %v1821 = vpop.f32.mrf.mxu0
  %v1822 = vpop.f32.mrf.mxu0
  %v1823 = vadd.f32 0.0, %v1822
  %v1824 = vpop.f32.mrf.mxu0
  %1825 = vdwg.mxu0
  %v1826 = vadd.f32 %v1746, %v1812
  %v1827 = vadd.f32 %v1747, %v1815
  %v1828 = vadd.f32 %v1748, %v1820
  %v1829 = vadd.f32 %v1749, %v1823
  %1834 = vrot.lane.b32.xlu0 %v1826, 24
  %v1835 = vpop.permute.xlu0 %1834
  %1836 = vrot.lane.b32.xlu0 %v1827, 24
  %v1837 = vpop.permute.xlu0 %1836
  %1838 = vrot.lane.b32.xlu0 %v1828, 24
  %v1839 = vpop.permute.xlu0 %1838
  %1840 = vrot.lane.b32.xlu0 %v1829, 24
  %v1841 = vpop.permute.xlu0 %1840
  %vm1846 = vcmask 261312
  %1847 = vst.msk [vmem:[%s7] sm:$0xff] %vm1846, %v1835
  %1848 = vst.msk [vmem:[%s7 + $0x8] sm:$0xff] %vm1846, %v1837
  %1849 = vst.msk [vmem:[%s7 + $0x10] sm:$0xff] %vm1846, %v1839
  %1850 = vst.msk [vmem:[%s7 + $0x18] sm:$0xff] %vm1846, %v1841
  // Predicated region
  $region30: #{a_call__.6} parent=0 // pred_check
    _
  $region31: #{a_call__.6} parent=0 // pred_check_branch
    %1852 = sbr.rel (0) target = $region33
  $region32: #{a_call__.6} parent=0 // pred_region
    _
  $region33: #{a_call__.6} parent=0 // pred_fallthru
    _
  // Predicated region
  $region34: #{a_call__.6} parent=0 // pred_check
    _
  $region35: #{a_call__.6} parent=0 // pred_check_branch
    %1854 = sbr.rel (0) target = $region37
  $region36: #{a_call__.6} parent=0 // pred_region
    _
  $region37: #{a_call__.6} parent=0 // pred_fallthru
    _

</llo_original>
